<compile_context>
chip_gen: v7x
topology: tpu7x:2x2x1
jax: 0.10.0
libtpu: 0.0.40
codegen_flags: <defaults>
</compile_context>

<pallas_src>
import jax
import jax.numpy as jnp
from jax.experimental import pallas as pl
from jax.experimental.pallas import tpu as pltpu

NEG_SLOPE = 0.01  # nn.LeakyReLU default


def _leaky(x):
    # max(x, a*x) == LeakyReLU(x) for 0 < a < 1
    return jnp.maximum(x, NEG_SLOPE * x)


# ----------------------------------------------------------------------------
# Fused critic kernel: grid = (branch,)
# ----------------------------------------------------------------------------
def fused_critic_kernel(xm_ref, nf_ref, adj_ref, adj_obj_ref, mask_ref,
                        g1wsm_ref, g1wn_ref, g1b_ref,
                        g2ws_ref, g2wn_ref, g2b_ref,
                        vw0_ref, vb0_ref, vwm_ref, vbm_ref, vwl_ref, vbl_ref,
                        out_ref):
    f32, bf16 = jnp.float32, jnp.bfloat16

    xm = xm_ref[...]        # (N, F+FE) bf16: [node_features, aggregated msg]
    x = nf_ref[...]         # (N, F)    bf16

    # --- GNN stage 1 (QNodeGnn stand-in), fused self + edge-message transform:
    #     h = leaky([x, msg] @ [Ws; Wm] + (A @ x) @ Wn + b)
    nbr = jnp.dot(adj_ref[...], x, preferred_element_type=f32)
    h = jnp.dot(xm, g1wsm_ref[0], preferred_element_type=f32)
    h = h + jnp.dot(nbr.astype(bf16), g1wn_ref[0], preferred_element_type=f32)
    h = _leaky(h + g1b_ref[0])                                     # (N, F) f32

    # --- GNN stage 2 (GlobalNodeGnn stand-in):
    #     h2 = leaky(h @ Ws + (A_obj @ h) @ Wn + b)
    hb = h.astype(bf16)
    nbr2 = jnp.dot(adj_obj_ref[...], hb, preferred_element_type=f32)
    h2 = jnp.dot(hb, g2ws_ref[0], preferred_element_type=f32)
    h2 = h2 + jnp.dot(nbr2.astype(bf16), g2wn_ref[0], preferred_element_type=f32)
    h2 = _leaky(h2 + g2b_ref[0])                                   # (N, F)

    # --- masked mean pooling (1/obj_mass pre-folded into mask)
    of = jnp.dot(mask_ref[...], h2.astype(bf16), preferred_element_type=f32)  # (O, F)

    # --- value MLP head: [LeakyReLU, Linear(F, 256)]
    hcur = jnp.dot(_leaky(of).astype(bf16), vw0_ref[0],
                   preferred_element_type=f32) + vb0_ref[0]        # (O, 256)

    # --- 10 x [LeakyReLU, Linear(256, 256)]: unrolled in-kernel loop, static
    #     indices into the per-branch weight stack (no extra grid steps).
    n_mid = vwm_ref.shape[1]
    for i in range(n_mid):
        hcur = jnp.dot(_leaky(hcur).astype(bf16), vwm_ref[0, i],
                       preferred_element_type=f32) + vbm_ref[0, i]

    # --- final [LeakyReLU, Linear(256, n_classes)]
    out_ref[0] = jnp.dot(_leaky(hcur).astype(bf16), vwl_ref[0],
                         preferred_element_type=f32) + vbl_ref[0]


def double_q_fused(params, xm, nf, adj, adj_obj, mask_norm):
    N, F = nf.shape
    FE = xm.shape[1] - F
    O = mask_norm.shape[0]
    H = params["vw0"].shape[-1]          # 256
    n_mid = params["vwm"].shape[1]       # 10
    n_classes = params["vwl"].shape[-1]  # 1

    def shared(arr):   # same block for both branches
        nd = arr.ndim
        return pl.BlockSpec(arr.shape, lambda b, _n=nd: (0,) * _n)

    def per_branch(arr):  # (2, ...) -> block (1, ...), indexed by branch
        nd = arr.ndim
        return pl.BlockSpec((1,) + arr.shape[1:],
                            lambda b, _n=nd: (b,) + (0,) * (_n - 1))

    ordered_inputs = (
        xm, nf, adj, adj_obj, mask_norm,
        params["g1wsm"], params["g1wn"], params["g1b"],
        params["g2ws"], params["g2wn"], params["g2b"],
        params["vw0"], params["vb0"], params["vwm"], params["vbm"],
        params["vwl"], params["vbl"],
    )
    in_specs = ([shared(a) for a in ordered_inputs[:5]] +
                [per_branch(a) for a in ordered_inputs[5:]])
    out_spec = pl.BlockSpec((1, O, n_classes), lambda b: (b, 0, 0))

    # Advisory cost estimate (both branches).
    flops = 2 * (
        2 * N * N * F                 # A @ x
        + 2 * N * (F + FE) * F        # [x, msg] @ [Ws; Wm]
        + 2 * N * F * F               # nbr @ Wn
        + 2 * N * N * F               # A_obj @ h
        + 2 * 2 * N * F * F           # h @ Ws, nbr2 @ Wn
        + 2 * O * N * F               # pooling
        + 2 * O * F * H               # first MLP layer
        + n_mid * 2 * O * H * H       # mid layers
        + 2 * O * H * n_classes)      # last layer
    bytes_accessed = (sum(int(a.size) * a.dtype.itemsize for a in ordered_inputs)
                      + 2 * O * n_classes * 4)

    out = pl.pallas_call(
        fused_critic_kernel,
        out_shape=jax.ShapeDtypeStruct((2, O, n_classes), jnp.float32),
        grid_spec=pltpu.PrefetchScalarGridSpec(
            num_scalar_prefetch=0,
            grid=(2,),
            in_specs=in_specs,
            out_specs=out_spec,
        ),
        compiler_params=pltpu.CompilerParams(
            # On v7x, pltpu.CORE_PARALLEL here pins one Q head per TensorCore.
            dimension_semantics=(pltpu.PARALLEL,)),
        cost_estimate=pl.CostEstimate(flops=int(flops), transcendentals=0,
                                      bytes_accessed=int(bytes_accessed)),
    )(*ordered_inputs)
    return out[0], out[1]


# ----------------------------------------------------------------------------
# Plain-JAX glue (index handling, concatenations, scatter-add aggregation)
# ----------------------------------------------------------------------------
def build_adjacency(edge_ids, n_nodes):
    src, dst = edge_ids[0], edge_ids[1]
    a = jnp.zeros((n_nodes, n_nodes), jnp.float32)
    return a.at[dst, src].add(1.0)   # parallel edges accumulate counts


def aggregate_edge_messages(edge_ids, edge_feats, n_nodes):
    dst = edge_ids[1]
    m = jnp.zeros((n_nodes, edge_feats.shape[1]), jnp.float32)
    return m.at[dst].add(edge_feats)


def double_q_value_net(params, node_features, actions, edge_ids, edge_feats,
                       obj_edge_ind, obj_node_mask, gt_edges=None,
                       post_data=None):
    # TODO(synk): gt_edges / post_data are consumed inside QNodeGnn (source not
    # provided); the GNN stand-in here ignores them.
    if actions.ndim < 2:
        actions = actions[:, None]
    # node_actions = False -> edge_features = cat([actions, edge_feats], -1)
    edge_features = jnp.concatenate([actions, edge_feats], axis=-1)
    dir_edge_features = jnp.concatenate([edge_features, edge_features], axis=0)
    flipped = jnp.stack([edge_ids[1], edge_ids[0]], axis=0)
    dir_edge_ids = jnp.concatenate([edge_ids, flipped], axis=1)

    n = node_features.shape[0]
    adj = build_adjacency(dir_edge_ids, n)
    msg = aggregate_edge_messages(dir_edge_ids, dir_edge_features, n)

    edge_ids_obj = edge_ids[:, obj_edge_ind]
    flipped_obj = jnp.stack([edge_ids_obj[1], edge_ids_obj[0]], axis=0)
    dir_edge_ids_obj = jnp.concatenate([edge_ids_obj, flipped_obj], axis=1)
    adj_obj = build_adjacency(dir_edge_ids_obj, n)

    # Pre-normalize the object mask: folds /obj_mass into the pooling matmul
    # and avoids divide-by-zero for empty objects (empty objects pool to 0).
    mass = jnp.sum(obj_node_mask, axis=1, keepdims=True)
    mask_norm = obj_node_mask / jnp.maximum(mass, 1e-6)

    # bf16 operands for MXU-native dots (adjacency counts exact in bf16) and
    # wrapper-side concat of [node_features, msg] for the fused stage-1 weight.
    bf = jnp.bfloat16
    nf_b = node_features.astype(bf)
    xm_b = jnp.concatenate([node_features, msg], axis=-1).astype(bf)
    adj_b = adj.astype(bf)
    adj_obj_b = adj_obj.astype(bf)
    mask_b = mask_norm.astype(bf)

    return double_q_fused(params, xm_b, nf_b, adj_b, adj_obj_b, mask_b)


def agent_forward_critic(params, node_embeddings, sp_feat, actions, edge_ids,
                         edge_feats, obj_edge_ind, obj_node_mask):
    # Agent.forward, branch where `actions is not None`
    node_features = jnp.concatenate([node_embeddings, sp_feat], axis=1)
    return double_q_value_net(params, node_features, actions, edge_ids,
                              edge_feats, obj_edge_ind, obj_node_mask)


# ----------------------------------------------------------------------------
# Deterministic parameter initialization (weights stored bf16, biases f32)
# ----------------------------------------------------------------------------
def _uniform(key, shape, fan_in, dtype=jnp.float32):
    bound = 1.0 / jnp.sqrt(jnp.float32(fan_in))
    return jax.random.uniform(key, shape, jnp.float32, -bound, bound).astype(dtype)


def init_agent_params(key, f, fe=4, hidden=256, n_classes=1, n_mid=10):
    bf = jnp.bfloat16
    k = jax.random.split(key, 16)
    # per-branch weights stacked along a leading axis of size 2
    return {
        # GNN stage 1 (QNodeGnn stand-in); [Ws; Wm] pre-fused along fan-in
        "g1wsm": _uniform(k[0], (2, f + fe, f), f + fe, bf),
        "g1wn":  _uniform(k[1], (2, f, f), f, bf),
        "g1b":   _uniform(k[2], (2, 1, f), f),
        # GNN stage 2 (GlobalNodeGnn stand-in)
        "g2ws":  _uniform(k[3], (2, f, f), f, bf),
        "g2wn":  _uniform(k[4], (2, f, f), f, bf),
        "g2b":   _uniform(k[5], (2, 1, f), f),
        # value MLP
        "vw0":   _uniform(k[6], (2, f, hidden), f, bf),
        "vb0":   _uniform(k[7], (2, 1, hidden), f),
        "vwm":   _uniform(k[8], (2, n_mid, hidden, hidden), hidden, bf),
        "vbm":   _uniform(k[9], (2, n_mid, 1, hidden), hidden),
        "vwl":   _uniform(k[10], (2, hidden, n_classes), hidden, bf),
        "vbl":   _uniform(k[11], (2, 1, n_classes), hidden),
    }


# ----------------------------------------------------------------------------
if __name__ == "__main__":
    key = jax.random.PRNGKey(0)
    N, E, O = 16, 24, 4          # nodes, edges, objects
    dim_embeddings = 13
    F = dim_embeddings + 3       # n_in_features = cfg.dim_embeddings + 3 = 16
    FE = 1 + 3                   # n_actions + 3 edge feats

    ks = jax.random.split(key, 8)
    node_embeddings = jax.random.normal(ks[0], (N, dim_embeddings), jnp.float32)
    sp_feat = jax.random.normal(ks[1], (N, 3), jnp.float32)
    edge_ids = jax.random.randint(ks[2], (2, E), 0, N)
    edge_feats = jax.random.normal(ks[3], (E, 3), jnp.float32)
    actions = jax.random.normal(ks[4], (E,), jnp.float32)
    obj_edge_ind = jnp.arange(E // 2, dtype=jnp.int32)
    obj_node_mask = (jnp.arange(N)[None, :] % O == jnp.arange(O)[:, None]).astype(jnp.float32)

    params = init_agent_params(jax.random.PRNGKey(42), F, FE)

    q1, q2 = jax.jit(agent_forward_critic)(
        params, node_embeddings, sp_feat, actions, edge_ids, edge_feats,
        obj_edge_ind, obj_node_mask)
    jax.block_until_ready((q1, q2))

    assert q1.shape == (O, 1) and q2.shape == (O, 1)
    assert bool(jnp.all(jnp.isfinite(q1))) and bool(jnp.all(jnp.isfinite(q2)))
    print("KERNEL_OK")
</pallas_src>

<mosaic_0001>
module attributes {stable_mosaic.version = 11 : i64} {
  func.func private @main(%arg0: i32) attributes {dimension_semantics = [#tpu.dimension_semantics<core_parallel>], iteration_bounds = array<i64: 2>, tpu.core_type = #tpu.core_type<sc_scalar_subcore>, window_params = []} {
    return
  }
}

module attributes {stable_mosaic.version = 11 : i64} {
  func.func private @main(%arg0: i32) attributes {dimension_semantics = [#tpu.dimension_semantics<core_parallel>], iteration_bounds = array<i64: 2>, tpu.core_type = #tpu.core_type<sc_scalar_subcore>, window_params = []} {
    return
  }
}

module attributes {stable_mosaic.version = 11 : i64} {
  func.func @fused_critic_kernel(%arg0: i32, %arg1: memref<16x20xbf16, #tpu.memory_space<vmem>>, %arg2: memref<16x16xbf16, #tpu.memory_space<vmem>>, %arg3: memref<16x16xbf16, #tpu.memory_space<vmem>>, %arg4: memref<16x16xbf16, #tpu.memory_space<vmem>>, %arg5: memref<4x16xbf16, #tpu.memory_space<vmem>>, %arg6: memref<1x20x16xbf16, #tpu.memory_space<vmem>>, %arg7: memref<1x16x16xbf16, #tpu.memory_space<vmem>>, %arg8: memref<1x1x16xf32, #tpu.memory_space<vmem>>, %arg9: memref<1x16x16xbf16, #tpu.memory_space<vmem>>, %arg10: memref<1x16x16xbf16, #tpu.memory_space<vmem>>, %arg11: memref<1x1x16xf32, #tpu.memory_space<vmem>>, %arg12: memref<1x16x256xbf16, #tpu.memory_space<vmem>>, %arg13: memref<1x1x256xf32, #tpu.memory_space<vmem>>, %arg14: memref<1x10x256x256xbf16, #tpu.memory_space<vmem>>, %arg15: memref<1x10x1x256xf32, #tpu.memory_space<vmem>>, %arg16: memref<1x256x1xbf16, #tpu.memory_space<vmem>>, %arg17: memref<1x1x1xf32, #tpu.memory_space<vmem>>, %arg18: memref<1x4x1xf32, #tpu.memory_space<vmem>>) attributes {dimension_semantics = [#tpu.dimension_semantics<parallel>], iteration_bounds = array<i64: 2>, scalar_prefetch = 0 : i64, scratch_operands = 0 : i64, tpu.core_type = #tpu.core_type<tc>, window_params = [{pipeline_mode = #tpu.pipeline_mode<synchronous>, transform_indices = @transform_0, window_bounds = array<i64: 16, 20>}, {pipeline_mode = #tpu.pipeline_mode<synchronous>, transform_indices = @transform_1, window_bounds = array<i64: 16, 16>}, {pipeline_mode = #tpu.pipeline_mode<synchronous>, transform_indices = @transform_2, window_bounds = array<i64: 16, 16>}, {pipeline_mode = #tpu.pipeline_mode<synchronous>, transform_indices = @transform_3, window_bounds = array<i64: 16, 16>}, {pipeline_mode = #tpu.pipeline_mode<synchronous>, transform_indices = @transform_4, window_bounds = array<i64: 4, 16>}, {transform_indices = @transform_5, window_bounds = array<i64: 1, 20, 16>}, {transform_indices = @transform_6, window_bounds = array<i64: 1, 16, 16>}, {transform_indices = @transform_7, window_bounds = array<i64: 1, 1, 16>}, {transform_indices = @transform_8, window_bounds = array<i64: 1, 16, 16>}, {transform_indices = @transform_9, window_bounds = array<i64: 1, 16, 16>}, {transform_indices = @transform_10, window_bounds = array<i64: 1, 1, 16>}, {transform_indices = @transform_11, window_bounds = array<i64: 1, 16, 256>}, {transform_indices = @transform_12, window_bounds = array<i64: 1, 1, 256>}, {transform_indices = @transform_13, window_bounds = array<i64: 1, 10, 256, 256>}, {transform_indices = @transform_14, window_bounds = array<i64: 1, 10, 1, 256>}, {transform_indices = @transform_15, window_bounds = array<i64: 1, 256, 1>}, {transform_indices = @transform_16, window_bounds = array<i64: 1, 1, 1>}, {transform_indices = @transform_17, window_bounds = array<i64: 1, 4, 1>}]} {
    %c0 = arith.constant 0 : index
    %c0_0 = arith.constant 0 : index
    %0 = vector.load %arg1[%c0, %c0_0] : memref<16x20xbf16, #tpu.memory_space<vmem>>, vector<16x20xbf16>
    %c0_1 = arith.constant 0 : index
    %c0_2 = arith.constant 0 : index
    %1 = vector.load %arg2[%c0_1, %c0_2] : memref<16x16xbf16, #tpu.memory_space<vmem>>, vector<16x16xbf16>
    %c0_3 = arith.constant 0 : index
    %c0_4 = arith.constant 0 : index
    %2 = vector.load %arg3[%c0_3, %c0_4] : memref<16x16xbf16, #tpu.memory_space<vmem>>, vector<16x16xbf16>
    %cst = arith.constant dense<0.000000e+00> : vector<16x16xf32>
    %3 = tpu.matmul %2, %1, %cst {dimension_numbers = #tpu.dot_dimension_numbers<[1], [0], [0], [1], [0, 0, 1, 1], [], []>} : vector<16x16xbf16>, vector<16x16xbf16>, vector<16x16xf32> -> vector<16x16xf32>
    %c0_5 = arith.constant 0 : index
    %c0_6 = arith.constant 0 : index
    %c0_7 = arith.constant 0 : index
    %4 = vector.load %arg6[%c0_5, %c0_6, %c0_7] : memref<1x20x16xbf16, #tpu.memory_space<vmem>>, vector<1x20x16xbf16>
    %5 = vector.shape_cast %4 : vector<1x20x16xbf16> to vector<20x16xbf16>
    %cst_8 = arith.constant dense<0.000000e+00> : vector<16x16xf32>
    %6 = tpu.matmul %0, %5, %cst_8 {dimension_numbers = #tpu.dot_dimension_numbers<[1], [0], [0], [1], [0, 0, 1, 1], [], []>} : vector<16x20xbf16>, vector<20x16xbf16>, vector<16x16xf32> -> vector<16x16xf32>
    %7 = arith.truncf %3 : vector<16x16xf32> to vector<16x16xbf16>
    %c0_9 = arith.constant 0 : index
    %c0_10 = arith.constant 0 : index
    %c0_11 = arith.constant 0 : index
    %8 = vector.load %arg7[%c0_9, %c0_10, %c0_11] : memref<1x16x16xbf16, #tpu.memory_space<vmem>>, vector<1x16x16xbf16>
    %9 = vector.shape_cast %8 : vector<1x16x16xbf16> to vector<16x16xbf16>
    %cst_12 = arith.constant dense<0.000000e+00> : vector<16x16xf32>
    %10 = tpu.matmul %7, %9, %cst_12 {dimension_numbers = #tpu.dot_dimension_numbers<[1], [0], [0], [1], [0, 0, 1, 1], [], []>} : vector<16x16xbf16>, vector<16x16xbf16>, vector<16x16xf32> -> vector<16x16xf32>
    %11 = arith.addf %6, %10 : vector<16x16xf32>
    %c0_13 = arith.constant 0 : index
    %c0_14 = arith.constant 0 : index
    %c0_15 = arith.constant 0 : index
    %12 = vector.load %arg8[%c0_13, %c0_14, %c0_15] : memref<1x1x16xf32, #tpu.memory_space<vmem>>, vector<1x1x16xf32>
    %13 = vector.shape_cast %12 : vector<1x1x16xf32> to vector<1x16xf32>
    %14 = vector.broadcast %13 : vector<1x16xf32> to vector<16x16xf32>
    %15 = arith.addf %11, %14 : vector<16x16xf32>
    %cst_16 = arith.constant 0.00999999977 : f32
    %16 = vector.broadcast %cst_16 : f32 to vector<16x16xf32>
    %17 = arith.mulf %16, %15 : vector<16x16xf32>
    %18 = arith.maximumf %15, %17 : vector<16x16xf32>
    %19 = arith.truncf %18 : vector<16x16xf32> to vector<16x16xbf16>
    %c0_17 = arith.constant 0 : index
    %c0_18 = arith.constant 0 : index
    %20 = vector.load %arg4[%c0_17, %c0_18] : memref<16x16xbf16, #tpu.memory_space<vmem>>, vector<16x16xbf16>
    %cst_19 = arith.constant dense<0.000000e+00> : vector<16x16xf32>
    %21 = tpu.matmul %20, %19, %cst_19 {dimension_numbers = #tpu.dot_dimension_numbers<[1], [0], [0], [1], [0, 0, 1, 1], [], []>} : vector<16x16xbf16>, vector<16x16xbf16>, vector<16x16xf32> -> vector<16x16xf32>
    %c0_20 = arith.constant 0 : index
    %c0_21 = arith.constant 0 : index
    %c0_22 = arith.constant 0 : index
    %22 = vector.load %arg9[%c0_20, %c0_21, %c0_22] : memref<1x16x16xbf16, #tpu.memory_space<vmem>>, vector<1x16x16xbf16>
    %23 = vector.shape_cast %22 : vector<1x16x16xbf16> to vector<16x16xbf16>
    %cst_23 = arith.constant dense<0.000000e+00> : vector<16x16xf32>
    %24 = tpu.matmul %19, %23, %cst_23 {dimension_numbers = #tpu.dot_dimension_numbers<[1], [0], [0], [1], [0, 0, 1, 1], [], []>} : vector<16x16xbf16>, vector<16x16xbf16>, vector<16x16xf32> -> vector<16x16xf32>
    %25 = arith.truncf %21 : vector<16x16xf32> to vector<16x16xbf16>
    %c0_24 = arith.constant 0 : index
    %c0_25 = arith.constant 0 : index
    %c0_26 = arith.constant 0 : index
    %26 = vector.load %arg10[%c0_24, %c0_25, %c0_26] : memref<1x16x16xbf16, #tpu.memory_space<vmem>>, vector<1x16x16xbf16>
    %27 = vector.shape_cast %26 : vector<1x16x16xbf16> to vector<16x16xbf16>
    %cst_27 = arith.constant dense<0.000000e+00> : vector<16x16xf32>
    %28 = tpu.matmul %25, %27, %cst_27 {dimension_numbers = #tpu.dot_dimension_numbers<[1], [0], [0], [1], [0, 0, 1, 1], [], []>} : vector<16x16xbf16>, vector<16x16xbf16>, vector<16x16xf32> -> vector<16x16xf32>
    %29 = arith.addf %24, %28 : vector<16x16xf32>
    %c0_28 = arith.constant 0 : index
    %c0_29 = arith.constant 0 : index
    %c0_30 = arith.constant 0 : index
    %30 = vector.load %arg11[%c0_28, %c0_29, %c0_30] : memref<1x1x16xf32, #tpu.memory_space<vmem>>, vector<1x1x16xf32>
    %31 = vector.shape_cast %30 : vector<1x1x16xf32> to vector<1x16xf32>
    %32 = vector.broadcast %31 : vector<1x16xf32> to vector<16x16xf32>
    %33 = arith.addf %29, %32 : vector<16x16xf32>
    %cst_31 = arith.constant 0.00999999977 : f32
    %34 = vector.broadcast %cst_31 : f32 to vector<16x16xf32>
    %35 = arith.mulf %34, %33 : vector<16x16xf32>
    %36 = arith.maximumf %33, %35 : vector<16x16xf32>
    %c0_32 = arith.constant 0 : index
    %c0_33 = arith.constant 0 : index
    %37 = vector.load %arg5[%c0_32, %c0_33] : memref<4x16xbf16, #tpu.memory_space<vmem>>, vector<4x16xbf16>
    %38 = arith.truncf %36 : vector<16x16xf32> to vector<16x16xbf16>
    %cst_34 = arith.constant dense<0.000000e+00> : vector<4x16xf32>
    %39 = tpu.matmul %37, %38, %cst_34 {dimension_numbers = #tpu.dot_dimension_numbers<[1], [0], [0], [1], [0, 0, 1, 1], [], []>} : vector<4x16xbf16>, vector<16x16xbf16>, vector<4x16xf32> -> vector<4x16xf32>
    %cst_35 = arith.constant 0.00999999977 : f32
    %40 = vector.broadcast %cst_35 : f32 to vector<4x16xf32>
    %41 = arith.mulf %40, %39 : vector<4x16xf32>
    %42 = arith.maximumf %39, %41 : vector<4x16xf32>
    %43 = arith.truncf %42 : vector<4x16xf32> to vector<4x16xbf16>
    %c0_36 = arith.constant 0 : index
    %c0_37 = arith.constant 0 : index
    %c0_38 = arith.constant 0 : index
    %44 = vector.load %arg12[%c0_36, %c0_37, %c0_38] : memref<1x16x256xbf16, #tpu.memory_space<vmem>>, vector<1x16x256xbf16>
    %45 = vector.shape_cast %44 : vector<1x16x256xbf16> to vector<16x256xbf16>
    %cst_39 = arith.constant dense<0.000000e+00> : vector<4x256xf32>
    %46 = tpu.matmul %43, %45, %cst_39 {dimension_numbers = #tpu.dot_dimension_numbers<[1], [0], [0], [1], [0, 0, 1, 1], [], []>} : vector<4x16xbf16>, vector<16x256xbf16>, vector<4x256xf32> -> vector<4x256xf32>
    %c0_40 = arith.constant 0 : index
    %c0_41 = arith.constant 0 : index
    %c0_42 = arith.constant 0 : index
    %47 = vector.load %arg13[%c0_40, %c0_41, %c0_42] : memref<1x1x256xf32, #tpu.memory_space<vmem>>, vector<1x1x256xf32>
    %48 = vector.shape_cast %47 : vector<1x1x256xf32> to vector<1x256xf32>
    %49 = vector.broadcast %48 : vector<1x256xf32> to vector<4x256xf32>
    %50 = arith.addf %46, %49 : vector<4x256xf32>
    %cst_43 = arith.constant 0.00999999977 : f32
    %51 = vector.broadcast %cst_43 : f32 to vector<4x256xf32>
    %52 = arith.mulf %51, %50 : vector<4x256xf32>
    %53 = arith.maximumf %50, %52 : vector<4x256xf32>
    %54 = arith.truncf %53 : vector<4x256xf32> to vector<4x256xbf16>
    %c0_44 = arith.constant 0 : index
    %c0_45 = arith.constant 0 : index
    %c0_46 = arith.constant 0 : index
    %c0_47 = arith.constant 0 : index
    %55 = vector.load %arg14[%c0_44, %c0_45, %c0_46, %c0_47] : memref<1x10x256x256xbf16, #tpu.memory_space<vmem>>, vector<1x1x256x256xbf16>
    %56 = vector.shape_cast %55 : vector<1x1x256x256xbf16> to vector<256x256xbf16>
    %cst_48 = arith.constant dense<0.000000e+00> : vector<4x256xf32>
    %57 = tpu.matmul %54, %56, %cst_48 {dimension_numbers = #tpu.dot_dimension_numbers<[1], [0], [0], [1], [0, 0, 1, 1], [], []>} : vector<4x256xbf16>, vector<256x256xbf16>, vector<4x256xf32> -> vector<4x256xf32>
    %c0_49 = arith.constant 0 : index
    %c0_50 = arith.constant 0 : index
    %c0_51 = arith.constant 0 : index
    %c0_52 = arith.constant 0 : index
    %58 = vector.load %arg15[%c0_49, %c0_50, %c0_51, %c0_52] : memref<1x10x1x256xf32, #tpu.memory_space<vmem>>, vector<1x1x1x256xf32>
    %59 = vector.shape_cast %58 : vector<1x1x1x256xf32> to vector<1x256xf32>
    %60 = vector.broadcast %59 : vector<1x256xf32> to vector<4x256xf32>
    %61 = arith.addf %57, %60 : vector<4x256xf32>
    %cst_53 = arith.constant 0.00999999977 : f32
    %62 = vector.broadcast %cst_53 : f32 to vector<4x256xf32>
    %63 = arith.mulf %62, %61 : vector<4x256xf32>
    %64 = arith.maximumf %61, %63 : vector<4x256xf32>
    %65 = arith.truncf %64 : vector<4x256xf32> to vector<4x256xbf16>
    %c0_54 = arith.constant 0 : index
    %c1 = arith.constant 1 : index
    %c0_55 = arith.constant 0 : index
    %c0_56 = arith.constant 0 : index
    %66 = vector.load %arg14[%c0_54, %c1, %c0_55, %c0_56] : memref<1x10x256x256xbf16, #tpu.memory_space<vmem>>, vector<1x1x256x256xbf16>
    %67 = vector.shape_cast %66 : vector<1x1x256x256xbf16> to vector<256x256xbf16>
    %cst_57 = arith.constant dense<0.000000e+00> : vector<4x256xf32>
    %68 = tpu.matmul %65, %67, %cst_57 {dimension_numbers = #tpu.dot_dimension_numbers<[1], [0], [0], [1], [0, 0, 1, 1], [], []>} : vector<4x256xbf16>, vector<256x256xbf16>, vector<4x256xf32> -> vector<4x256xf32>
    %c0_58 = arith.constant 0 : index
    %c1_59 = arith.constant 1 : index
    %c0_60 = arith.constant 0 : index
    %c0_61 = arith.constant 0 : index
    %69 = vector.load %arg15[%c0_58, %c1_59, %c0_60, %c0_61] : memref<1x10x1x256xf32, #tpu.memory_space<vmem>>, vector<1x1x1x256xf32>
    %70 = vector.shape_cast %69 : vector<1x1x1x256xf32> to vector<1x256xf32>
    %71 = vector.broadcast %70 : vector<1x256xf32> to vector<4x256xf32>
    %72 = arith.addf %68, %71 : vector<4x256xf32>
    %cst_62 = arith.constant 0.00999999977 : f32
    %73 = vector.broadcast %cst_62 : f32 to vector<4x256xf32>
    %74 = arith.mulf %73, %72 : vector<4x256xf32>
    %75 = arith.maximumf %72, %74 : vector<4x256xf32>
    %76 = arith.truncf %75 : vector<4x256xf32> to vector<4x256xbf16>
    %c0_63 = arith.constant 0 : index
    %c2 = arith.constant 2 : index
    %c0_64 = arith.constant 0 : index
    %c0_65 = arith.constant 0 : index
    %77 = vector.load %arg14[%c0_63, %c2, %c0_64, %c0_65] : memref<1x10x256x256xbf16, #tpu.memory_space<vmem>>, vector<1x1x256x256xbf16>
    %78 = vector.shape_cast %77 : vector<1x1x256x256xbf16> to vector<256x256xbf16>
    %cst_66 = arith.constant dense<0.000000e+00> : vector<4x256xf32>
    %79 = tpu.matmul %76, %78, %cst_66 {dimension_numbers = #tpu.dot_dimension_numbers<[1], [0], [0], [1], [0, 0, 1, 1], [], []>} : vector<4x256xbf16>, vector<256x256xbf16>, vector<4x256xf32> -> vector<4x256xf32>
    %c0_67 = arith.constant 0 : index
    %c2_68 = arith.constant 2 : index
    %c0_69 = arith.constant 0 : index
    %c0_70 = arith.constant 0 : index
    %80 = vector.load %arg15[%c0_67, %c2_68, %c0_69, %c0_70] : memref<1x10x1x256xf32, #tpu.memory_space<vmem>>, vector<1x1x1x256xf32>
    %81 = vector.shape_cast %80 : vector<1x1x1x256xf32> to vector<1x256xf32>
    %82 = vector.broadcast %81 : vector<1x256xf32> to vector<4x256xf32>
    %83 = arith.addf %79, %82 : vector<4x256xf32>
    %cst_71 = arith.constant 0.00999999977 : f32
    %84 = vector.broadcast %cst_71 : f32 to vector<4x256xf32>
    %85 = arith.mulf %84, %83 : vector<4x256xf32>
    %86 = arith.maximumf %83, %85 : vector<4x256xf32>
    %87 = arith.truncf %86 : vector<4x256xf32> to vector<4x256xbf16>
    %c0_72 = arith.constant 0 : index
    %c3 = arith.constant 3 : index
    %c0_73 = arith.constant 0 : index
    %c0_74 = arith.constant 0 : index
    %88 = vector.load %arg14[%c0_72, %c3, %c0_73, %c0_74] : memref<1x10x256x256xbf16, #tpu.memory_space<vmem>>, vector<1x1x256x256xbf16>
    %89 = vector.shape_cast %88 : vector<1x1x256x256xbf16> to vector<256x256xbf16>
    %cst_75 = arith.constant dense<0.000000e+00> : vector<4x256xf32>
    %90 = tpu.matmul %87, %89, %cst_75 {dimension_numbers = #tpu.dot_dimension_numbers<[1], [0], [0], [1], [0, 0, 1, 1], [], []>} : vector<4x256xbf16>, vector<256x256xbf16>, vector<4x256xf32> -> vector<4x256xf32>
    %c0_76 = arith.constant 0 : index
    %c3_77 = arith.constant 3 : index
    %c0_78 = arith.constant 0 : index
    %c0_79 = arith.constant 0 : index
    %91 = vector.load %arg15[%c0_76, %c3_77, %c0_78, %c0_79] : memref<1x10x1x256xf32, #tpu.memory_space<vmem>>, vector<1x1x1x256xf32>
    %92 = vector.shape_cast %91 : vector<1x1x1x256xf32> to vector<1x256xf32>
    %93 = vector.broadcast %92 : vector<1x256xf32> to vector<4x256xf32>
    %94 = arith.addf %90, %93 : vector<4x256xf32>
    %cst_80 = arith.constant 0.00999999977 : f32
    %95 = vector.broadcast %cst_80 : f32 to vector<4x256xf32>
    %96 = arith.mulf %95, %94 : vector<4x256xf32>
    %97 = arith.maximumf %94, %96 : vector<4x256xf32>
    %98 = arith.truncf %97 : vector<4x256xf32> to vector<4x256xbf16>
    %c0_81 = arith.constant 0 : index
    %c4 = arith.constant 4 : index
    %c0_82 = arith.constant 0 : index
    %c0_83 = arith.constant 0 : index
    %99 = vector.load %arg14[%c0_81, %c4, %c0_82, %c0_83] : memref<1x10x256x256xbf16, #tpu.memory_space<vmem>>, vector<1x1x256x256xbf16>
    %100 = vector.shape_cast %99 : vector<1x1x256x256xbf16> to vector<256x256xbf16>
    %cst_84 = arith.constant dense<0.000000e+00> : vector<4x256xf32>
    %101 = tpu.matmul %98, %100, %cst_84 {dimension_numbers = #tpu.dot_dimension_numbers<[1], [0], [0], [1], [0, 0, 1, 1], [], []>} : vector<4x256xbf16>, vector<256x256xbf16>, vector<4x256xf32> -> vector<4x256xf32>
    %c0_85 = arith.constant 0 : index
    %c4_86 = arith.constant 4 : index
    %c0_87 = arith.constant 0 : index
    %c0_88 = arith.constant 0 : index
    %102 = vector.load %arg15[%c0_85, %c4_86, %c0_87, %c0_88] : memref<1x10x1x256xf32, #tpu.memory_space<vmem>>, vector<1x1x1x256xf32>
    %103 = vector.shape_cast %102 : vector<1x1x1x256xf32> to vector<1x256xf32>
    %104 = vector.broadcast %103 : vector<1x256xf32> to vector<4x256xf32>
    %105 = arith.addf %101, %104 : vector<4x256xf32>
    %cst_89 = arith.constant 0.00999999977 : f32
    %106 = vector.broadcast %cst_89 : f32 to vector<4x256xf32>
    %107 = arith.mulf %106, %105 : vector<4x256xf32>
    %108 = arith.maximumf %105, %107 : vector<4x256xf32>
    %109 = arith.truncf %108 : vector<4x256xf32> to vector<4x256xbf16>
    %c0_90 = arith.constant 0 : index
    %c5 = arith.constant 5 : index
    %c0_91 = arith.constant 0 : index
    %c0_92 = arith.constant 0 : index
    %110 = vector.load %arg14[%c0_90, %c5, %c0_91, %c0_92] : memref<1x10x256x256xbf16, #tpu.memory_space<vmem>>, vector<1x1x256x256xbf16>
    %111 = vector.shape_cast %110 : vector<1x1x256x256xbf16> to vector<256x256xbf16>
    %cst_93 = arith.constant dense<0.000000e+00> : vector<4x256xf32>
    %112 = tpu.matmul %109, %111, %cst_93 {dimension_numbers = #tpu.dot_dimension_numbers<[1], [0], [0], [1], [0, 0, 1, 1], [], []>} : vector<4x256xbf16>, vector<256x256xbf16>, vector<4x256xf32> -> vector<4x256xf32>
    %c0_94 = arith.constant 0 : index
    %c5_95 = arith.constant 5 : index
    %c0_96 = arith.constant 0 : index
    %c0_97 = arith.constant 0 : index
    %113 = vector.load %arg15[%c0_94, %c5_95, %c0_96, %c0_97] : memref<1x10x1x256xf32, #tpu.memory_space<vmem>>, vector<1x1x1x256xf32>
    %114 = vector.shape_cast %113 : vector<1x1x1x256xf32> to vector<1x256xf32>
    %115 = vector.broadcast %114 : vector<1x256xf32> to vector<4x256xf32>
    %116 = arith.addf %112, %115 : vector<4x256xf32>
    %cst_98 = arith.constant 0.00999999977 : f32
    %117 = vector.broadcast %cst_98 : f32 to vector<4x256xf32>
    %118 = arith.mulf %117, %116 : vector<4x256xf32>
    %119 = arith.maximumf %116, %118 : vector<4x256xf32>
    %120 = arith.truncf %119 : vector<4x256xf32> to vector<4x256xbf16>
    %c0_99 = arith.constant 0 : index
    %c6 = arith.constant 6 : index
    %c0_100 = arith.constant 0 : index
    %c0_101 = arith.constant 0 : index
    %121 = vector.load %arg14[%c0_99, %c6, %c0_100, %c0_101] : memref<1x10x256x256xbf16, #tpu.memory_space<vmem>>, vector<1x1x256x256xbf16>
    %122 = vector.shape_cast %121 : vector<1x1x256x256xbf16> to vector<256x256xbf16>
    %cst_102 = arith.constant dense<0.000000e+00> : vector<4x256xf32>
    %123 = tpu.matmul %120, %122, %cst_102 {dimension_numbers = #tpu.dot_dimension_numbers<[1], [0], [0], [1], [0, 0, 1, 1], [], []>} : vector<4x256xbf16>, vector<256x256xbf16>, vector<4x256xf32> -> vector<4x256xf32>
    %c0_103 = arith.constant 0 : index
    %c6_104 = arith.constant 6 : index
    %c0_105 = arith.constant 0 : index
    %c0_106 = arith.constant 0 : index
    %124 = vector.load %arg15[%c0_103, %c6_104, %c0_105, %c0_106] : memref<1x10x1x256xf32, #tpu.memory_space<vmem>>, vector<1x1x1x256xf32>
    %125 = vector.shape_cast %124 : vector<1x1x1x256xf32> to vector<1x256xf32>
    %126 = vector.broadcast %125 : vector<1x256xf32> to vector<4x256xf32>
    %127 = arith.addf %123, %126 : vector<4x256xf32>
    %cst_107 = arith.constant 0.00999999977 : f32
    %128 = vector.broadcast %cst_107 : f32 to vector<4x256xf32>
    %129 = arith.mulf %128, %127 : vector<4x256xf32>
    %130 = arith.maximumf %127, %129 : vector<4x256xf32>
    %131 = arith.truncf %130 : vector<4x256xf32> to vector<4x256xbf16>
    %c0_108 = arith.constant 0 : index
    %c7 = arith.constant 7 : index
    %c0_109 = arith.constant 0 : index
    %c0_110 = arith.constant 0 : index
    %132 = vector.load %arg14[%c0_108, %c7, %c0_109, %c0_110] : memref<1x10x256x256xbf16, #tpu.memory_space<vmem>>, vector<1x1x256x256xbf16>
    %133 = vector.shape_cast %132 : vector<1x1x256x256xbf16> to vector<256x256xbf16>
    %cst_111 = arith.constant dense<0.000000e+00> : vector<4x256xf32>
    %134 = tpu.matmul %131, %133, %cst_111 {dimension_numbers = #tpu.dot_dimension_numbers<[1], [0], [0], [1], [0, 0, 1, 1], [], []>} : vector<4x256xbf16>, vector<256x256xbf16>, vector<4x256xf32> -> vector<4x256xf32>
    %c0_112 = arith.constant 0 : index
    %c7_113 = arith.constant 7 : index
    %c0_114 = arith.constant 0 : index
    %c0_115 = arith.constant 0 : index
    %135 = vector.load %arg15[%c0_112, %c7_113, %c0_114, %c0_115] : memref<1x10x1x256xf32, #tpu.memory_space<vmem>>, vector<1x1x1x256xf32>
    %136 = vector.shape_cast %135 : vector<1x1x1x256xf32> to vector<1x256xf32>
    %137 = vector.broadcast %136 : vector<1x256xf32> to vector<4x256xf32>
    %138 = arith.addf %134, %137 : vector<4x256xf32>
    %cst_116 = arith.constant 0.00999999977 : f32
    %139 = vector.broadcast %cst_116 : f32 to vector<4x256xf32>
    %140 = arith.mulf %139, %138 : vector<4x256xf32>
    %141 = arith.maximumf %138, %140 : vector<4x256xf32>
    %142 = arith.truncf %141 : vector<4x256xf32> to vector<4x256xbf16>
    %c0_117 = arith.constant 0 : index
    %c8 = arith.constant 8 : index
    %c0_118 = arith.constant 0 : index
    %c0_119 = arith.constant 0 : index
    %143 = vector.load %arg14[%c0_117, %c8, %c0_118, %c0_119] : memref<1x10x256x256xbf16, #tpu.memory_space<vmem>>, vector<1x1x256x256xbf16>
    %144 = vector.shape_cast %143 : vector<1x1x256x256xbf16> to vector<256x256xbf16>
    %cst_120 = arith.constant dense<0.000000e+00> : vector<4x256xf32>
    %145 = tpu.matmul %142, %144, %cst_120 {dimension_numbers = #tpu.dot_dimension_numbers<[1], [0], [0], [1], [0, 0, 1, 1], [], []>} : vector<4x256xbf16>, vector<256x256xbf16>, vector<4x256xf32> -> vector<4x256xf32>
    %c0_121 = arith.constant 0 : index
    %c8_122 = arith.constant 8 : index
    %c0_123 = arith.constant 0 : index
    %c0_124 = arith.constant 0 : index
    %146 = vector.load %arg15[%c0_121, %c8_122, %c0_123, %c0_124] : memref<1x10x1x256xf32, #tpu.memory_space<vmem>>, vector<1x1x1x256xf32>
    %147 = vector.shape_cast %146 : vector<1x1x1x256xf32> to vector<1x256xf32>
    %148 = vector.broadcast %147 : vector<1x256xf32> to vector<4x256xf32>
    %149 = arith.addf %145, %148 : vector<4x256xf32>
    %cst_125 = arith.constant 0.00999999977 : f32
    %150 = vector.broadcast %cst_125 : f32 to vector<4x256xf32>
    %151 = arith.mulf %150, %149 : vector<4x256xf32>
    %152 = arith.maximumf %149, %151 : vector<4x256xf32>
    %153 = arith.truncf %152 : vector<4x256xf32> to vector<4x256xbf16>
    %c0_126 = arith.constant 0 : index
    %c9 = arith.constant 9 : index
    %c0_127 = arith.constant 0 : index
    %c0_128 = arith.constant 0 : index
    %154 = vector.load %arg14[%c0_126, %c9, %c0_127, %c0_128] : memref<1x10x256x256xbf16, #tpu.memory_space<vmem>>, vector<1x1x256x256xbf16>
    %155 = vector.shape_cast %154 : vector<1x1x256x256xbf16> to vector<256x256xbf16>
    %cst_129 = arith.constant dense<0.000000e+00> : vector<4x256xf32>
    %156 = tpu.matmul %153, %155, %cst_129 {dimension_numbers = #tpu.dot_dimension_numbers<[1], [0], [0], [1], [0, 0, 1, 1], [], []>} : vector<4x256xbf16>, vector<256x256xbf16>, vector<4x256xf32> -> vector<4x256xf32>
    %c0_130 = arith.constant 0 : index
    %c9_131 = arith.constant 9 : index
    %c0_132 = arith.constant 0 : index
    %c0_133 = arith.constant 0 : index
    %157 = vector.load %arg15[%c0_130, %c9_131, %c0_132, %c0_133] : memref<1x10x1x256xf32, #tpu.memory_space<vmem>>, vector<1x1x1x256xf32>
    %158 = vector.shape_cast %157 : vector<1x1x1x256xf32> to vector<1x256xf32>
    %159 = vector.broadcast %158 : vector<1x256xf32> to vector<4x256xf32>
    %160 = arith.addf %156, %159 : vector<4x256xf32>
    %cst_134 = arith.constant 0.00999999977 : f32
    %161 = vector.broadcast %cst_134 : f32 to vector<4x256xf32>
    %162 = arith.mulf %161, %160 : vector<4x256xf32>
    %163 = arith.maximumf %160, %162 : vector<4x256xf32>
    %164 = arith.truncf %163 : vector<4x256xf32> to vector<4x256xbf16>
    %c0_135 = arith.constant 0 : index
    %c0_136 = arith.constant 0 : index
    %c0_137 = arith.constant 0 : index
    %165 = vector.load %arg16[%c0_135, %c0_136, %c0_137] : memref<1x256x1xbf16, #tpu.memory_space<vmem>>, vector<1x256x1xbf16>
    %166 = vector.shape_cast %165 : vector<1x256x1xbf16> to vector<256x1xbf16>
    %cst_138 = arith.constant dense<0.000000e+00> : vector<4x1xf32>
    %167 = tpu.matmul %164, %166, %cst_138 {dimension_numbers = #tpu.dot_dimension_numbers<[1], [0], [0], [1], [0, 0, 1, 1], [], []>} : vector<4x256xbf16>, vector<256x1xbf16>, vector<4x1xf32> -> vector<4x1xf32>
    %c0_139 = arith.constant 0 : index
    %c0_140 = arith.constant 0 : index
    %c0_141 = arith.constant 0 : index
    %168 = vector.load %arg17[%c0_139, %c0_140, %c0_141] : memref<1x1x1xf32, #tpu.memory_space<vmem>>, vector<1x1x1xf32>
    %169 = vector.shape_cast %168 : vector<1x1x1xf32> to vector<1x1xf32>
    %170 = vector.broadcast %169 : vector<1x1xf32> to vector<4x1xf32>
    %171 = arith.addf %167, %170 : vector<4x1xf32>
    %c0_142 = arith.constant 0 : index
    %c0_143 = arith.constant 0 : index
    %c0_144 = arith.constant 0 : index
    %172 = vector.load %arg18[%c0_142, %c0_143, %c0_144] : memref<1x4x1xf32, #tpu.memory_space<vmem>>, vector<1x4x1xf32>
    %173 = vector.shape_cast %172 : vector<1x4x1xf32> to vector<4x1xf32>
    %174 = vector.shape_cast %171 : vector<4x1xf32> to vector<1x4x1xf32>
    tpu.vector_store %arg18[%c0_142, %c0_143, %c0_144], %174 {strides = array<i32>} : memref<1x4x1xf32, #tpu.memory_space<vmem>>, vector<1x4x1xf32>,
    return
  }
  func.func @transform_0(%arg0: i32) -> (i32, i32) {
    %c0_i32 = arith.constant 0 : i32
    %c0_i32_0 = arith.constant 0 : i32
    %c0_i32_1 = arith.constant 0 : i32
    return %c0_i32, %c0_i32_0 : i32, i32
  }
  func.func @transform_1(%arg0: i32) -> (i32, i32) {
    %c0_i32 = arith.constant 0 : i32
    %c0_i32_0 = arith.constant 0 : i32
    %c0_i32_1 = arith.constant 0 : i32
    return %c0_i32, %c0_i32_0 : i32, i32
  }
  func.func @transform_2(%arg0: i32) -> (i32, i32) {
    %c0_i32 = arith.constant 0 : i32
    %c0_i32_0 = arith.constant 0 : i32
    %c0_i32_1 = arith.constant 0 : i32
    return %c0_i32, %c0_i32_0 : i32, i32
  }
  func.func @transform_3(%arg0: i32) -> (i32, i32) {
    %c0_i32 = arith.constant 0 : i32
    %c0_i32_0 = arith.constant 0 : i32
    %c0_i32_1 = arith.constant 0 : i32
    return %c0_i32, %c0_i32_0 : i32, i32
  }
  func.func @transform_4(%arg0: i32) -> (i32, i32) {
    %c0_i32 = arith.constant 0 : i32
    %c0_i32_0 = arith.constant 0 : i32
    %c0_i32_1 = arith.constant 0 : i32
    return %c0_i32, %c0_i32_0 : i32, i32
  }
  func.func @transform_5(%arg0: i32) -> (i32, i32, i32) {
    %c0_i32 = arith.constant 0 : i32
    %c0_i32_0 = arith.constant 0 : i32
    %c0_i32_1 = arith.constant 0 : i32
    return %arg0, %c0_i32, %c0_i32_0 : i32, i32, i32
  }
  func.func @transform_6(%arg0: i32) -> (i32, i32, i32) {
    %c0_i32 = arith.constant 0 : i32
    %c0_i32_0 = arith.constant 0 : i32
    %c0_i32_1 = arith.constant 0 : i32
    return %arg0, %c0_i32, %c0_i32_0 : i32, i32, i32
  }
  func.func @transform_7(%arg0: i32) -> (i32, i32, i32) {
    %c0_i32 = arith.constant 0 : i32
    %c0_i32_0 = arith.constant 0 : i32
    %c0_i32_1 = arith.constant 0 : i32
    return %arg0, %c0_i32, %c0_i32_0 : i32, i32, i32
  }
  func.func @transform_8(%arg0: i32) -> (i32, i32, i32) {
    %c0_i32 = arith.constant 0 : i32
    %c0_i32_0 = arith.constant 0 : i32
    %c0_i32_1 = arith.constant 0 : i32
    return %arg0, %c0_i32, %c0_i32_0 : i32, i32, i32
  }
  func.func @transform_9(%arg0: i32) -> (i32, i32, i32) {
    %c0_i32 = arith.constant 0 : i32
    %c0_i32_0 = arith.constant 0 : i32
    %c0_i32_1 = arith.constant 0 : i32
    return %arg0, %c0_i32, %c0_i32_0 : i32, i32, i32
  }
  func.func @transform_10(%arg0: i32) -> (i32, i32, i32) {
    %c0_i32 = arith.constant 0 : i32
    %c0_i32_0 = arith.constant 0 : i32
    %c0_i32_1 = arith.constant 0 : i32
    return %arg0, %c0_i32, %c0_i32_0 : i32, i32, i32
  }
  func.func @transform_11(%arg0: i32) -> (i32, i32, i32) {
    %c0_i32 = arith.constant 0 : i32
    %c0_i32_0 = arith.constant 0 : i32
    %c0_i32_1 = arith.constant 0 : i32
    return %arg0, %c0_i32, %c0_i32_0 : i32, i32, i32
  }
  func.func @transform_12(%arg0: i32) -> (i32, i32, i32) {
    %c0_i32 = arith.constant 0 : i32
    %c0_i32_0 = arith.constant 0 : i32
    %c0_i32_1 = arith.constant 0 : i32
    return %arg0, %c0_i32, %c0_i32_0 : i32, i32, i32
  }
  func.func @transform_13(%arg0: i32) -> (i32, i32, i32, i32) {
    %c0_i32 = arith.constant 0 : i32
    %c0_i32_0 = arith.constant 0 : i32
    %c0_i32_1 = arith.constant 0 : i32
    %c0_i32_2 = arith.constant 0 : i32
    return %arg0, %c0_i32, %c0_i32_0, %c0_i32_1 : i32, i32, i32, i32
  }
  func.func @transform_14(%arg0: i32) -> (i32, i32, i32, i32) {
    %c0_i32 = arith.constant 0 : i32
    %c0_i32_0 = arith.constant 0 : i32
    %c0_i32_1 = arith.constant 0 : i32
    %c0_i32_2 = arith.constant 0 : i32
    return %arg0, %c0_i32, %c0_i32_0, %c0_i32_1 : i32, i32, i32, i32
  }
  func.func @transform_15(%arg0: i32) -> (i32, i32, i32) {
    %c0_i32 = arith.constant 0 : i32
    %c0_i32_0 = arith.constant 0 : i32
    %c0_i32_1 = arith.constant 0 : i32
    return %arg0, %c0_i32, %c0_i32_0 : i32, i32, i32
  }
  func.func @transform_16(%arg0: i32) -> (i32, i32, i32) {
    %c0_i32 = arith.constant 0 : i32
    %c0_i32_0 = arith.constant 0 : i32
    %c0_i32_1 = arith.constant 0 : i32
    return %arg0, %c0_i32, %c0_i32_0 : i32, i32, i32
  }
  func.func @transform_17(%arg0: i32) -> (i32, i32, i32) {
    %c0_i32 = arith.constant 0 : i32
    %c0_i32_0 = arith.constant 0 : i32
    %c0_i32_1 = arith.constant 0 : i32
    return %arg0, %c0_i32, %c0_i32_0 : i32, i32, i32
  }
}

</mosaic_0001>

<llo_original>
// kernel: agent_forward_critic.1
$region0: #{agent_forward_critic.1}
  #allocation0 [shape = 'u32[]', space=smem, size = 0x4, offset = 0x4, fixed_abs, tag = 'smem constant byte address 0x4 - core index']
  #allocation1 [shape = 'u32[144,128]{1,0:T(1,128)}', space=vmem, size = 0x12000, scoped, tag = 'internal scratch']
  %s0 = inlined_call_operand.vmem [shape: bf16[16,20], index: 0, kind: input, shape index: {}]
  %s1 = inlined_call_operand.vmem [shape: bf16[16,16], index: 1, kind: input, shape index: {}]
  %s2 = inlined_call_operand.vmem [shape: bf16[16,16], index: 2, kind: input, shape index: {}]
  %s3 = inlined_call_operand.vmem [shape: bf16[16,16], index: 3, kind: input, shape index: {}]
  %s4 = inlined_call_operand.vmem [shape: bf16[4,16], index: 4, kind: input, shape index: {}]
  %s5 = inlined_call_operand.vmem [shape: bf16[2,20,16], index: 5, kind: input, shape index: {}]
  %s6 = inlined_call_operand.vmem [shape: bf16[2,16,16], index: 6, kind: input, shape index: {}]
  %s7 = inlined_call_operand.vmem [shape: f32[2,1,16], index: 7, kind: input, shape index: {}]
  %s8 = inlined_call_operand.vmem [shape: bf16[2,16,16], index: 8, kind: input, shape index: {}]
  %s9 = inlined_call_operand.vmem [shape: bf16[2,16,16], index: 9, kind: input, shape index: {}]
  %s10 = inlined_call_operand.vmem [shape: f32[2,1,16], index: 10, kind: input, shape index: {}]
  %s11 = inlined_call_operand.vmem [shape: bf16[2,16,256], index: 11, kind: input, shape index: {}]
  %s12 = inlined_call_operand.vmem [shape: f32[2,1,256], index: 12, kind: input, shape index: {}]
  %s13 = inlined_call_operand.vmem [shape: bf16[2,10,256,256], index: 13, kind: input, shape index: {}]
  %s14 = inlined_call_operand.vmem [shape: f32[2,10,1,256], index: 14, kind: input, shape index: {}]
  %s15 = inlined_call_operand.vmem [shape: bf16[2,256,1], index: 15, kind: input, shape index: {}]
  %s16 = inlined_call_operand.vmem [shape: f32[2,1,1], index: 16, kind: input, shape index: {}]
  %s17 = inlined_call_operand.vmem [shape: f32[2,4,1], index: 17, kind: output, shape index: {}]
  %s18 = sld [smem:[#allocation0]]
  $region101: #{agent_forward_critic.1} parent=0
    _
  %s20 = ssub.s32 1, %s18
  %s21 = scalar_select 0, %s20, %s18
  loop: start=0, step=1, limit=4
  $region2: #{agent_forward_critic.1} parent=0 // loop_pre_header
    _
  $region3: #{agent_forward_critic.1} parent=0 // loop_header
    %s23 = sphi 0, %s27
    %p24 = scmp.ge.s32.totalorder %s23, 4
    %s31 = sphi 0, %s31
    %s33 = sphi 0, %s31
    %s34 = sphi 0, %s33
    %s48 = sphi 0, %s34
    %s52 = sphi 0, %s52
    %s54 = sphi 0, %s52
    %s55 = sphi 0, %s54
    %s69 = sphi 0, %s55
    %s73 = sphi 0, %s73
    %s75 = sphi 0, %s73
    %s76 = sphi 0, %s75
    %s90 = sphi 0, %s76
    %s94 = sphi 0, %s94
    %s96 = sphi 0, %s94
    %s97 = sphi 0, %s96
    %s111 = sphi 0, %s97
    %s115 = sphi 0, %s115
    %s117 = sphi 0, %s115
    %s118 = sphi 0, %s117
    %s132 = sphi 0, %s118
    %s138 = sphi 0, %s140
    %s141 = sphi 0, %s138
    %s142 = sphi 0, %s141
    %s158 = sphi 0, %s142
    %s164 = sphi 0, %s166
    %s167 = sphi 0, %s164
    %s168 = sphi 0, %s167
    %s184 = sphi 0, %s168
    %s190 = sphi 0, %s192
    %s193 = sphi 0, %s190
    %s194 = sphi 0, %s193
    %s210 = sphi 0, %s194
    %s216 = sphi 0, %s218
    %s219 = sphi 0, %s216
    %s220 = sphi 0, %s219
    %s236 = sphi 0, %s220
    %s242 = sphi 0, %s244
    %s245 = sphi 0, %s242
    %s246 = sphi 0, %s245
    %s262 = sphi 0, %s246
    %s268 = sphi 0, %s270
    %s271 = sphi 0, %s268
    %s272 = sphi 0, %s271
    %s288 = sphi 0, %s272
    %s294 = sphi 0, %s296
    %s297 = sphi 0, %s294
    %s298 = sphi 0, %s297
    %s314 = sphi 0, %s298
    %s320 = sphi 0, %s322
    %s323 = sphi 0, %s320
    %s324 = sphi 0, %s323
    %s340 = sphi 0, %s324
    %s346 = sphi 0, %s348
    %s349 = sphi 0, %s346
    %s350 = sphi 0, %s349
    %s366 = sphi 0, %s350
    %s372 = sphi 0, %s374
    %s375 = sphi 0, %s372
    %s376 = sphi 0, %s375
    %s392 = sphi 0, %s376
    %s398 = sphi 0, %s400
    %s401 = sphi 0, %s398
    %s402 = sphi 0, %s401
    %s418 = sphi 0, %s402
    %s424 = sphi 0, %s426
    %s427 = sphi 0, %s424
    %s428 = sphi 0, %s427
    %s444 = sphi 0, %s428
    %s450 = sphi 0, %s452
    %s453 = sphi 0, %s450
    %s454 = sphi 0, %s453
    %s470 = sphi 0, %s454
  $region4: #{agent_forward_critic.1} parent=0 // loop_header_branch
    %26 = sbr.rel (%p24) target = $region8
  $region5: #{agent_forward_critic.1} parent=0 // loop_body
    %s28 = ssub.s32 %s23, 1
    %s29 = ssub.s32 %s23, 2
    %s30 = sadd.s32 %s23, 1
    %s32 = sadd.s32 %s31, 1
    %p35 = scmp.eq.s32.totalorder %s23, 1
    %p36 = scmp.ne.s32.totalorder %s31, %s33
    %p37 = scmp.eq.s32.totalorder %s23, 0
    %p38 = por %p36, %p37
    %p39 = scmp.ne.s32.totalorder %s31, %s33
    %p40 = scmp.eq.s32.totalorder %s28, 1
    %p41 = por %p39, %p40
    %p42 = scmp.ne.s32.totalorder %s33, %s34
    %p43 = scmp.eq.s32.totalorder %s28, 0
    %p44 = por %p42, %p43
    %p45 = scmp.ne.s32.totalorder %s33, %s34
    %p46 = scmp.eq.s32.totalorder %s29, 1
    %p47 = por %p45, %p46
    %p49 = scmp.ne.s32.totalorder %s34, %s48
    %p50 = scmp.eq.s32.totalorder %s29, 0
    %p51 = por %p49, %p50
    %s53 = sadd.s32 %s52, 1
    %p56 = scmp.eq.s32.totalorder %s23, 1
    %p57 = scmp.ne.s32.totalorder %s52, %s54
    %p58 = scmp.eq.s32.totalorder %s23, 0
    %p59 = por %p57, %p58
    %p60 = scmp.ne.s32.totalorder %s52, %s54
    %p61 = scmp.eq.s32.totalorder %s28, 1
    %p62 = por %p60, %p61
    %p63 = scmp.ne.s32.totalorder %s54, %s55
    %p64 = scmp.eq.s32.totalorder %s28, 0
    %p65 = por %p63, %p64
    %p66 = scmp.ne.s32.totalorder %s54, %s55
    %p67 = scmp.eq.s32.totalorder %s29, 1
    %p68 = por %p66, %p67
    %p70 = scmp.ne.s32.totalorder %s55, %s69
    %p71 = scmp.eq.s32.totalorder %s29, 0
    %p72 = por %p70, %p71
    %s74 = sadd.s32 %s73, 1
    %p77 = scmp.eq.s32.totalorder %s23, 1
    %p78 = scmp.ne.s32.totalorder %s73, %s75
    %p79 = scmp.eq.s32.totalorder %s23, 0
    %p80 = por %p78, %p79
    %p81 = scmp.ne.s32.totalorder %s73, %s75
    %p82 = scmp.eq.s32.totalorder %s28, 1
    %p83 = por %p81, %p82
    %p84 = scmp.ne.s32.totalorder %s75, %s76
    %p85 = scmp.eq.s32.totalorder %s28, 0
    %p86 = por %p84, %p85
    %p87 = scmp.ne.s32.totalorder %s75, %s76
    %p88 = scmp.eq.s32.totalorder %s29, 1
    %p89 = por %p87, %p88
    %p91 = scmp.ne.s32.totalorder %s76, %s90
    %p92 = scmp.eq.s32.totalorder %s29, 0
    %p93 = por %p91, %p92
    %s95 = sadd.s32 %s94, 1
    %p98 = scmp.eq.s32.totalorder %s23, 1
    %p99 = scmp.ne.s32.totalorder %s94, %s96
    %p100 = scmp.eq.s32.totalorder %s23, 0
    %p101 = por %p99, %p100
    %p102 = scmp.ne.s32.totalorder %s94, %s96
    %p103 = scmp.eq.s32.totalorder %s28, 1
    %p104 = por %p102, %p103
    %p105 = scmp.ne.s32.totalorder %s96, %s97
    %p106 = scmp.eq.s32.totalorder %s28, 0
    %p107 = por %p105, %p106
    %p108 = scmp.ne.s32.totalorder %s96, %s97
    %p109 = scmp.eq.s32.totalorder %s29, 1
    %p110 = por %p108, %p109
    %p112 = scmp.ne.s32.totalorder %s97, %s111
    %p113 = scmp.eq.s32.totalorder %s29, 0
    %p114 = por %p112, %p113
    %s116 = sadd.s32 %s115, 1
    %p119 = scmp.eq.s32.totalorder %s23, 1
    %p120 = scmp.ne.s32.totalorder %s115, %s117
    %p121 = scmp.eq.s32.totalorder %s23, 0
    %p122 = por %p120, %p121
    %p123 = scmp.ne.s32.totalorder %s115, %s117
    %p124 = scmp.eq.s32.totalorder %s28, 1
    %p125 = por %p123, %p124
    %p126 = scmp.ne.s32.totalorder %s117, %s118
    %p127 = scmp.eq.s32.totalorder %s28, 0
    %p128 = por %p126, %p127
    %p129 = scmp.ne.s32.totalorder %s117, %s118
    %p130 = scmp.eq.s32.totalorder %s29, 1
    %p131 = por %p129, %p130
    %p133 = scmp.ne.s32.totalorder %s118, %s132
    %p134 = scmp.eq.s32.totalorder %s29, 0
    %p135 = por %p133, %p134
    %s136 = ssub.s32 %s23, %s30
    %p137 = scmp.eq.s32.totalorder %s136, 0
    %s139 = sadd.s32 %s138, 1
    %s140 = scalar_select %p137, %s138, %s139
    %p143 = pneg %p137
    %p144 = scmp.eq.s32.totalorder %s23, 1
    %p145 = por %p143, %p144
    %p146 = scmp.ne.s32.totalorder %s138, %s141
    %p147 = scmp.eq.s32.totalorder %s23, 0
    %p148 = por %p146, %p147
    %p149 = scmp.ne.s32.totalorder %s138, %s141
    %p150 = scmp.eq.s32.totalorder %s28, 1
    %p151 = por %p149, %p150
    %p152 = scmp.ne.s32.totalorder %s141, %s142
    %p153 = scmp.eq.s32.totalorder %s28, 0
    %p154 = por %p152, %p153
    %p155 = scmp.ne.s32.totalorder %s141, %s142
    %p156 = scmp.eq.s32.totalorder %s29, 1
    %p157 = por %p155, %p156
    %p159 = scmp.ne.s32.totalorder %s142, %s158
    %p160 = scmp.eq.s32.totalorder %s29, 0
    %p161 = por %p159, %p160
    %s162 = ssub.s32 %s23, %s30
    %p163 = scmp.eq.s32.totalorder %s162, 0
    %s165 = sadd.s32 %s164, 1
    %s166 = scalar_select %p163, %s164, %s165
    %p169 = pneg %p163
    %p170 = scmp.eq.s32.totalorder %s23, 1
    %p171 = por %p169, %p170
    %p172 = scmp.ne.s32.totalorder %s164, %s167
    %p173 = scmp.eq.s32.totalorder %s23, 0
    %p174 = por %p172, %p173
    %p175 = scmp.ne.s32.totalorder %s164, %s167
    %p176 = scmp.eq.s32.totalorder %s28, 1
    %p177 = por %p175, %p176
    %p178 = scmp.ne.s32.totalorder %s167, %s168
    %p179 = scmp.eq.s32.totalorder %s28, 0
    %p180 = por %p178, %p179
    %p181 = scmp.ne.s32.totalorder %s167, %s168
    %p182 = scmp.eq.s32.totalorder %s29, 1
    %p183 = por %p181, %p182
    %p185 = scmp.ne.s32.totalorder %s168, %s184
    %p186 = scmp.eq.s32.totalorder %s29, 0
    %p187 = por %p185, %p186
    %s188 = ssub.s32 %s23, %s30
    %p189 = scmp.eq.s32.totalorder %s188, 0
    %s191 = sadd.s32 %s190, 1
    %s192 = scalar_select %p189, %s190, %s191
    %p195 = pneg %p189
    %p196 = scmp.eq.s32.totalorder %s23, 1
    %p197 = por %p195, %p196
    %p198 = scmp.ne.s32.totalorder %s190, %s193
    %p199 = scmp.eq.s32.totalorder %s23, 0
    %p200 = por %p198, %p199
    %p201 = scmp.ne.s32.totalorder %s190, %s193
    %p202 = scmp.eq.s32.totalorder %s28, 1
    %p203 = por %p201, %p202
    %p204 = scmp.ne.s32.totalorder %s193, %s194
    %p205 = scmp.eq.s32.totalorder %s28, 0
    %p206 = por %p204, %p205
    %p207 = scmp.ne.s32.totalorder %s193, %s194
    %p208 = scmp.eq.s32.totalorder %s29, 1
    %p209 = por %p207, %p208
    %p211 = scmp.ne.s32.totalorder %s194, %s210
    %p212 = scmp.eq.s32.totalorder %s29, 0
    %p213 = por %p211, %p212
    %s214 = ssub.s32 %s23, %s30
    %p215 = scmp.eq.s32.totalorder %s214, 0
    %s217 = sadd.s32 %s216, 1
    %s218 = scalar_select %p215, %s216, %s217
    %p221 = pneg %p215
    %p222 = scmp.eq.s32.totalorder %s23, 1
    %p223 = por %p221, %p222
    %p224 = scmp.ne.s32.totalorder %s216, %s219
    %p225 = scmp.eq.s32.totalorder %s23, 0
    %p226 = por %p224, %p225
    %p227 = scmp.ne.s32.totalorder %s216, %s219
    %p228 = scmp.eq.s32.totalorder %s28, 1
    %p229 = por %p227, %p228
    %p230 = scmp.ne.s32.totalorder %s219, %s220
    %p231 = scmp.eq.s32.totalorder %s28, 0
    %p232 = por %p230, %p231
    %p233 = scmp.ne.s32.totalorder %s219, %s220
    %p234 = scmp.eq.s32.totalorder %s29, 1
    %p235 = por %p233, %p234
    %p237 = scmp.ne.s32.totalorder %s220, %s236
    %p238 = scmp.eq.s32.totalorder %s29, 0
    %p239 = por %p237, %p238
    %s240 = ssub.s32 %s23, %s30
    %p241 = scmp.eq.s32.totalorder %s240, 0
    %s243 = sadd.s32 %s242, 1
    %s244 = scalar_select %p241, %s242, %s243
    %p247 = pneg %p241
    %p248 = scmp.eq.s32.totalorder %s23, 1
    %p249 = por %p247, %p248
    %p250 = scmp.ne.s32.totalorder %s242, %s245
    %p251 = scmp.eq.s32.totalorder %s23, 0
    %p252 = por %p250, %p251
    %p253 = scmp.ne.s32.totalorder %s242, %s245
    %p254 = scmp.eq.s32.totalorder %s28, 1
    %p255 = por %p253, %p254
    %p256 = scmp.ne.s32.totalorder %s245, %s246
    %p257 = scmp.eq.s32.totalorder %s28, 0
    %p258 = por %p256, %p257
    %p259 = scmp.ne.s32.totalorder %s245, %s246
    %p260 = scmp.eq.s32.totalorder %s29, 1
    %p261 = por %p259, %p260
    %p263 = scmp.ne.s32.totalorder %s246, %s262
    %p264 = scmp.eq.s32.totalorder %s29, 0
    %p265 = por %p263, %p264
    %s266 = ssub.s32 %s23, %s30
    %p267 = scmp.eq.s32.totalorder %s266, 0
    %s269 = sadd.s32 %s268, 1
    %s270 = scalar_select %p267, %s268, %s269
    %p273 = pneg %p267
    %p274 = scmp.eq.s32.totalorder %s23, 1
    %p275 = por %p273, %p274
    %p276 = scmp.ne.s32.totalorder %s268, %s271
    %p277 = scmp.eq.s32.totalorder %s23, 0
    %p278 = por %p276, %p277
    %p279 = scmp.ne.s32.totalorder %s268, %s271
    %p280 = scmp.eq.s32.totalorder %s28, 1
    %p281 = por %p279, %p280
    %p282 = scmp.ne.s32.totalorder %s271, %s272
    %p283 = scmp.eq.s32.totalorder %s28, 0
    %p284 = por %p282, %p283
    %p285 = scmp.ne.s32.totalorder %s271, %s272
    %p286 = scmp.eq.s32.totalorder %s29, 1
    %p287 = por %p285, %p286
    %p289 = scmp.ne.s32.totalorder %s272, %s288
    %p290 = scmp.eq.s32.totalorder %s29, 0
    %p291 = por %p289, %p290
    %s292 = ssub.s32 %s23, %s30
    %p293 = scmp.eq.s32.totalorder %s292, 0
    %s295 = sadd.s32 %s294, 1
    %s296 = scalar_select %p293, %s294, %s295
    %p299 = pneg %p293
    %p300 = scmp.eq.s32.totalorder %s23, 1
    %p301 = por %p299, %p300
    %p302 = scmp.ne.s32.totalorder %s294, %s297
    %p303 = scmp.eq.s32.totalorder %s23, 0
    %p304 = por %p302, %p303
    %p305 = scmp.ne.s32.totalorder %s294, %s297
    %p306 = scmp.eq.s32.totalorder %s28, 1
    %p307 = por %p305, %p306
    %p308 = scmp.ne.s32.totalorder %s297, %s298
    %p309 = scmp.eq.s32.totalorder %s28, 0
    %p310 = por %p308, %p309
    %p311 = scmp.ne.s32.totalorder %s297, %s298
    %p312 = scmp.eq.s32.totalorder %s29, 1
    %p313 = por %p311, %p312
    %p315 = scmp.ne.s32.totalorder %s298, %s314
    %p316 = scmp.eq.s32.totalorder %s29, 0
    %p317 = por %p315, %p316
    %s318 = ssub.s32 %s23, %s30
    %p319 = scmp.eq.s32.totalorder %s318, 0
    %s321 = sadd.s32 %s320, 1
    %s322 = scalar_select %p319, %s320, %s321
    %p325 = pneg %p319
    %p326 = scmp.eq.s32.totalorder %s23, 1
    %p327 = por %p325, %p326
    %p328 = scmp.ne.s32.totalorder %s320, %s323
    %p329 = scmp.eq.s32.totalorder %s23, 0
    %p330 = por %p328, %p329
    %p331 = scmp.ne.s32.totalorder %s320, %s323
    %p332 = scmp.eq.s32.totalorder %s28, 1
    %p333 = por %p331, %p332
    %p334 = scmp.ne.s32.totalorder %s323, %s324
    %p335 = scmp.eq.s32.totalorder %s28, 0
    %p336 = por %p334, %p335
    %p337 = scmp.ne.s32.totalorder %s323, %s324
    %p338 = scmp.eq.s32.totalorder %s29, 1
    %p339 = por %p337, %p338
    %p341 = scmp.ne.s32.totalorder %s324, %s340
    %p342 = scmp.eq.s32.totalorder %s29, 0
    %p343 = por %p341, %p342
    %s344 = ssub.s32 %s23, %s30
    %p345 = scmp.eq.s32.totalorder %s344, 0
    %s347 = sadd.s32 %s346, 1
    %s348 = scalar_select %p345, %s346, %s347
    %p351 = pneg %p345
    %p352 = scmp.eq.s32.totalorder %s23, 1
    %p353 = por %p351, %p352
    %p354 = scmp.ne.s32.totalorder %s346, %s349
    %p355 = scmp.eq.s32.totalorder %s23, 0
    %p356 = por %p354, %p355
    %p357 = scmp.ne.s32.totalorder %s346, %s349
    %p358 = scmp.eq.s32.totalorder %s28, 1
    %p359 = por %p357, %p358
    %p360 = scmp.ne.s32.totalorder %s349, %s350
    %p361 = scmp.eq.s32.totalorder %s28, 0
    %p362 = por %p360, %p361
    %p363 = scmp.ne.s32.totalorder %s349, %s350
    %p364 = scmp.eq.s32.totalorder %s29, 1
    %p365 = por %p363, %p364
    %p367 = scmp.ne.s32.totalorder %s350, %s366
    %p368 = scmp.eq.s32.totalorder %s29, 0
    %p369 = por %p367, %p368
    %s370 = ssub.s32 %s23, %s30
    %p371 = scmp.eq.s32.totalorder %s370, 0
    %s373 = sadd.s32 %s372, 1
    %s374 = scalar_select %p371, %s372, %s373
    %p377 = pneg %p371
    %p378 = scmp.eq.s32.totalorder %s23, 1
    %p379 = por %p377, %p378
    %p380 = scmp.ne.s32.totalorder %s372, %s375
    %p381 = scmp.eq.s32.totalorder %s23, 0
    %p382 = por %p380, %p381
    %p383 = scmp.ne.s32.totalorder %s372, %s375
    %p384 = scmp.eq.s32.totalorder %s28, 1
    %p385 = por %p383, %p384
    %p386 = scmp.ne.s32.totalorder %s375, %s376
    %p387 = scmp.eq.s32.totalorder %s28, 0
    %p388 = por %p386, %p387
    %p389 = scmp.ne.s32.totalorder %s375, %s376
    %p390 = scmp.eq.s32.totalorder %s29, 1
    %p391 = por %p389, %p390
    %p393 = scmp.ne.s32.totalorder %s376, %s392
    %p394 = scmp.eq.s32.totalorder %s29, 0
    %p395 = por %p393, %p394
    %s396 = ssub.s32 %s23, %s30
    %p397 = scmp.eq.s32.totalorder %s396, 0
    %s399 = sadd.s32 %s398, 1
    %s400 = scalar_select %p397, %s398, %s399
    %p403 = pneg %p397
    %p404 = scmp.eq.s32.totalorder %s23, 1
    %p405 = por %p403, %p404
    %p406 = scmp.ne.s32.totalorder %s398, %s401
    %p407 = scmp.eq.s32.totalorder %s23, 0
    %p408 = por %p406, %p407
    %p409 = scmp.ne.s32.totalorder %s398, %s401
    %p410 = scmp.eq.s32.totalorder %s28, 1
    %p411 = por %p409, %p410
    %p412 = scmp.ne.s32.totalorder %s401, %s402
    %p413 = scmp.eq.s32.totalorder %s28, 0
    %p414 = por %p412, %p413
    %p415 = scmp.ne.s32.totalorder %s401, %s402
    %p416 = scmp.eq.s32.totalorder %s29, 1
    %p417 = por %p415, %p416
    %p419 = scmp.ne.s32.totalorder %s402, %s418
    %p420 = scmp.eq.s32.totalorder %s29, 0
    %p421 = por %p419, %p420
    %s422 = ssub.s32 %s23, %s30
    %p423 = scmp.eq.s32.totalorder %s422, 0
    %s425 = sadd.s32 %s424, 1
    %s426 = scalar_select %p423, %s424, %s425
    %p429 = pneg %p423
    %p430 = scmp.eq.s32.totalorder %s23, 1
    %p431 = por %p429, %p430
    %p432 = scmp.ne.s32.totalorder %s424, %s427
    %p433 = scmp.eq.s32.totalorder %s23, 0
    %p434 = por %p432, %p433
    %p435 = scmp.ne.s32.totalorder %s424, %s427
    %p436 = scmp.eq.s32.totalorder %s28, 1
    %p437 = por %p435, %p436
    %p438 = scmp.ne.s32.totalorder %s427, %s428
    %p439 = scmp.eq.s32.totalorder %s28, 0
    %p440 = por %p438, %p439
    %p441 = scmp.ne.s32.totalorder %s427, %s428
    %p442 = scmp.eq.s32.totalorder %s29, 1
    %p443 = por %p441, %p442
    %p445 = scmp.ne.s32.totalorder %s428, %s444
    %p446 = scmp.eq.s32.totalorder %s29, 0
    %p447 = por %p445, %p446
    %s448 = ssub.s32 %s23, %s30
    %p449 = scmp.eq.s32.totalorder %s448, 0
    %s451 = sadd.s32 %s450, 1
    %s452 = scalar_select %p449, %s450, %s451
    %p455 = pneg %p449
    %p456 = scmp.eq.s32.totalorder %s23, 1
    %p457 = por %p455, %p456
    %p458 = scmp.ne.s32.totalorder %s450, %s453
    %p459 = scmp.eq.s32.totalorder %s23, 0
    %p460 = por %p458, %p459
    %p461 = scmp.ne.s32.totalorder %s450, %s453
    %p462 = scmp.eq.s32.totalorder %s28, 1
    %p463 = por %p461, %p462
    %p464 = scmp.ne.s32.totalorder %s453, %s454
    %p465 = scmp.eq.s32.totalorder %s28, 0
    %p466 = por %p464, %p465
    %p467 = scmp.ne.s32.totalorder %s453, %s454
    %p468 = scmp.eq.s32.totalorder %s29, 1
    %p469 = por %p467, %p468
    %p471 = scmp.ne.s32.totalorder %s454, %s470
    %p472 = scmp.eq.s32.totalorder %s29, 0
    %p473 = por %p471, %p472
    %p474 = scmp.le.s32.totalorder 1, %s23
    %p475 = scmp.lt.s32.totalorder %s23, 3
    %p476 = pnand %p474, %p475
    %p477 = pneg %p476
    // Predicated region
    $region9: #{agent_forward_critic.1} parent=5 // pred_check
      _
    $region10: #{agent_forward_critic.1} parent=5 // pred_check_branch
      %479 = sbr.rel (%p476) target = $region12
    $region11: #{agent_forward_critic.1} parent=5 // pred_region
      %s480 = ssub.s32 %s23, 1
      // Predicated region
      $region13: #{agent_forward_critic.1} parent=11 // pred_check
        %p481 = pneg %p44
      $region14: #{agent_forward_critic.1} parent=11 // pred_check_branch
        %483 = sbr.rel (%p481) target = $region16
      $region15: #{agent_forward_critic.1} parent=11 // pred_region
        _
      $region16: #{agent_forward_critic.1} parent=11 // pred_fallthru
        _
      // Predicated region
      $region17: #{agent_forward_critic.1} parent=11 // pred_check
        %p484 = pneg %p65
      $region18: #{agent_forward_critic.1} parent=11 // pred_check_branch
        %486 = sbr.rel (%p484) target = $region20
      $region19: #{agent_forward_critic.1} parent=11 // pred_region
        _
      $region20: #{agent_forward_critic.1} parent=11 // pred_fallthru
        _
      // Predicated region
      $region21: #{agent_forward_critic.1} parent=11 // pred_check
        %p487 = pneg %p86
      $region22: #{agent_forward_critic.1} parent=11 // pred_check_branch
        %489 = sbr.rel (%p487) target = $region24
      $region23: #{agent_forward_critic.1} parent=11 // pred_region
        _
      $region24: #{agent_forward_critic.1} parent=11 // pred_fallthru
        _
      // Predicated region
      $region25: #{agent_forward_critic.1} parent=11 // pred_check
        %p490 = pneg %p107
      $region26: #{agent_forward_critic.1} parent=11 // pred_check_branch
        %492 = sbr.rel (%p490) target = $region28
      $region27: #{agent_forward_critic.1} parent=11 // pred_region
        _
      $region28: #{agent_forward_critic.1} parent=11 // pred_fallthru
        _
      // Predicated region
      $region29: #{agent_forward_critic.1} parent=11 // pred_check
        %p493 = pneg %p128
      $region30: #{agent_forward_critic.1} parent=11 // pred_check_branch
        %495 = sbr.rel (%p493) target = $region32
      $region31: #{agent_forward_critic.1} parent=11 // pred_region
        _
      $region32: #{agent_forward_critic.1} parent=11 // pred_fallthru
        _
    $region12: #{agent_forward_critic.1} parent=5 // pred_fallthru
      _
    %p496 = scmp.lt.s32.totalorder %s23, 2
    // Predicated region
    $region33: #{agent_forward_critic.1} parent=5 // pred_check
      %p497 = pneg %p496
    $region34: #{agent_forward_critic.1} parent=5 // pred_check_branch
      %499 = sbr.rel (%p497) target = $region36
    $region35: #{agent_forward_critic.1} parent=5 // pred_region
      // Predicated region
      $region37: #{agent_forward_critic.1} parent=35 // pred_check
        %p500 = pneg %p148
      $region38: #{agent_forward_critic.1} parent=35 // pred_check_branch
        %502 = sbr.rel (%p500) target = $region40
      $region39: #{agent_forward_critic.1} parent=35 // pred_region
        %p503 = scmp.lt.s32.totalorder %s23, 1
        %s504 = scalar_select %p503, %s23, 1
        %s505 = smul.addr %s504, 3
        %s506 = smul.addr %s505, 4
        %s507 = scalar_lea.vmem %s5, %s506
      $region40: #{agent_forward_critic.1} parent=35 // pred_fallthru
        _
      // Predicated region
      $region41: #{agent_forward_critic.1} parent=35 // pred_check
        %p508 = pneg %p174
      $region42: #{agent_forward_critic.1} parent=35 // pred_check_branch
        %510 = sbr.rel (%p508) target = $region44
      $region43: #{agent_forward_critic.1} parent=35 // pred_region
        %p511 = scmp.lt.s32.totalorder %s23, 1
        %s512 = scalar_select %p511, %s23, 1
        %s513 = smul.addr %s512, 2
        %s514 = smul.addr %s513, 4
        %s515 = scalar_lea.vmem %s6, %s514
      $region44: #{agent_forward_critic.1} parent=35 // pred_fallthru
        _
      // Predicated region
      $region45: #{agent_forward_critic.1} parent=35 // pred_check
        %p516 = pneg %p200
      $region46: #{agent_forward_critic.1} parent=35 // pred_check_branch
        %518 = sbr.rel (%p516) target = $region48
      $region47: #{agent_forward_critic.1} parent=35 // pred_region
        %p519 = scmp.lt.s32.totalorder %s23, 1
        %s520 = scalar_select %p519, %s23, 1
        %s521 = scalar_lea.vmem %s7, %s520
      $region48: #{agent_forward_critic.1} parent=35 // pred_fallthru
        _
      // Predicated region
      $region49: #{agent_forward_critic.1} parent=35 // pred_check
        %p522 = pneg %p226
      $region50: #{agent_forward_critic.1} parent=35 // pred_check_branch
        %524 = sbr.rel (%p522) target = $region52
      $region51: #{agent_forward_critic.1} parent=35 // pred_region
        %p525 = scmp.lt.s32.totalorder %s23, 1
        %s526 = scalar_select %p525, %s23, 1
        %s527 = smul.addr %s526, 2
        %s528 = smul.addr %s527, 4
        %s529 = scalar_lea.vmem %s8, %s528
      $region52: #{agent_forward_critic.1} parent=35 // pred_fallthru
        _
      // Predicated region
      $region53: #{agent_forward_critic.1} parent=35 // pred_check
        %p530 = pneg %p252
      $region54: #{agent_forward_critic.1} parent=35 // pred_check_branch
        %532 = sbr.rel (%p530) target = $region56
      $region55: #{agent_forward_critic.1} parent=35 // pred_region
        %p533 = scmp.lt.s32.totalorder %s23, 1
        %s534 = scalar_select %p533, %s23, 1
        %s535 = smul.addr %s534, 2
        %s536 = smul.addr %s535, 4
        %s537 = scalar_lea.vmem %s9, %s536
      $region56: #{agent_forward_critic.1} parent=35 // pred_fallthru
        _
      // Predicated region
      $region57: #{agent_forward_critic.1} parent=35 // pred_check
        %p538 = pneg %p278
      $region58: #{agent_forward_critic.1} parent=35 // pred_check_branch
        %540 = sbr.rel (%p538) target = $region60
      $region59: #{agent_forward_critic.1} parent=35 // pred_region
        %p541 = scmp.lt.s32.totalorder %s23, 1
        %s542 = scalar_select %p541, %s23, 1
        %s543 = scalar_lea.vmem %s10, %s542
      $region60: #{agent_forward_critic.1} parent=35 // pred_fallthru
        _
      // Predicated region
      $region61: #{agent_forward_critic.1} parent=35 // pred_check
        %p544 = pneg %p304
      $region62: #{agent_forward_critic.1} parent=35 // pred_check_branch
        %546 = sbr.rel (%p544) target = $region64
      $region63: #{agent_forward_critic.1} parent=35 // pred_region
        %p547 = scmp.lt.s32.totalorder %s23, 1
        %s548 = scalar_select %p547, %s23, 1
        %s549 = smul.addr %s548, 4
        %s550 = smul.addr %s549, 4
        %s551 = scalar_lea.vmem %s11, %s550
      $region64: #{agent_forward_critic.1} parent=35 // pred_fallthru
        _
      // Predicated region
      $region65: #{agent_forward_critic.1} parent=35 // pred_check
        %p552 = pneg %p330
      $region66: #{agent_forward_critic.1} parent=35 // pred_check_branch
        %554 = sbr.rel (%p552) target = $region68
      $region67: #{agent_forward_critic.1} parent=35 // pred_region
        %p555 = scmp.lt.s32.totalorder %s23, 1
        %s556 = scalar_select %p555, %s23, 1
        %s557 = smul.addr %s556, 2
        %s558 = scalar_lea.vmem %s12, %s557
      $region68: #{agent_forward_critic.1} parent=35 // pred_fallthru
        _
      // Predicated region
      $region69: #{agent_forward_critic.1} parent=35 // pred_check
        %p559 = pneg %p356
      $region70: #{agent_forward_critic.1} parent=35 // pred_check_branch
        %561 = sbr.rel (%p559) target = $region72
      $region71: #{agent_forward_critic.1} parent=35 // pred_region
        %p562 = scmp.lt.s32.totalorder %s23, 1
        %s563 = scalar_select %p562, %s23, 1
        %s564 = smul.addr %s563, 640
        %s565 = smul.addr %s564, 4
        %s566 = scalar_lea.vmem %s13, %s565
      $region72: #{agent_forward_critic.1} parent=35 // pred_fallthru
        _
      // Predicated region
      $region73: #{agent_forward_critic.1} parent=35 // pred_check
        %p567 = pneg %p382
      $region74: #{agent_forward_critic.1} parent=35 // pred_check_branch
        %569 = sbr.rel (%p567) target = $region76
      $region75: #{agent_forward_critic.1} parent=35 // pred_region
        %p570 = scmp.lt.s32.totalorder %s23, 1
        %s571 = scalar_select %p570, %s23, 1
        %s572 = smul.addr %s571, 20
        %s573 = scalar_lea.vmem %s14, %s572
      $region76: #{agent_forward_critic.1} parent=35 // pred_fallthru
        _
      // Predicated region
      $region77: #{agent_forward_critic.1} parent=35 // pred_check
        %p574 = pneg %p408
      $region78: #{agent_forward_critic.1} parent=35 // pred_check_branch
        %576 = sbr.rel (%p574) target = $region80
      $region79: #{agent_forward_critic.1} parent=35 // pred_region
        %p577 = scmp.lt.s32.totalorder %s23, 1
        %s578 = scalar_select %p577, %s23, 1
        %s579 = smul.addr %s578, 32
        %s580 = smul.addr %s579, 4
        %s581 = scalar_lea.vmem %s15, %s580
      $region80: #{agent_forward_critic.1} parent=35 // pred_fallthru
        _
      // Predicated region
      $region81: #{agent_forward_critic.1} parent=35 // pred_check
        %p582 = pneg %p434
      $region82: #{agent_forward_critic.1} parent=35 // pred_check_branch
        %584 = sbr.rel (%p582) target = $region84
      $region83: #{agent_forward_critic.1} parent=35 // pred_region
        %p585 = scmp.lt.s32.totalorder %s23, 1
        %s586 = scalar_select %p585, %s23, 1
        %s587 = scalar_lea.vmem %s16, %s586
      $region84: #{agent_forward_critic.1} parent=35 // pred_fallthru
        _
    $region36: #{agent_forward_critic.1} parent=5 // pred_fallthru
      _
    %p588 = scmp.le.s32.totalorder 1, %s23
    %p589 = scmp.lt.s32.totalorder %s23, 3
    %p590 = pnand %p588, %p589
    %p591 = pneg %p590
    // Predicated region
    $region85: #{agent_forward_critic.1} parent=5 // pred_check
      _
    $region86: #{agent_forward_critic.1} parent=5 // pred_check_branch
      %593 = sbr.rel (%p590) target = $region88
    $region87: #{agent_forward_critic.1} parent=5 // pred_region
      %s594 = ssub.s32 %s23, 1
      %p595 = pneg %p44
      %p596 = pneg %p41
      %p597 = pneg %p65
      %p598 = pneg %p62
      %p599 = pneg %p86
      %p600 = pneg %p83
      %p601 = pneg %p107
      %p602 = pneg %p104
      %p603 = pneg %p128
      %p604 = pneg %p125
      %p605 = scmp.lt.s32.totalorder %s28, 1
      %s606 = scalar_select %p605, %s28, 1
      %s607 = smul.addr %s606, 3
      %s608 = smul.addr %s607, 4
      %s609 = scalar_lea.vmem %s5, %s608
      %p610 = pneg %p154
      %p611 = pneg %p151
      %p612 = scmp.lt.s32.totalorder %s28, 1
      %s613 = scalar_select %p612, %s28, 1
      %s614 = smul.addr %s613, 2
      %s615 = smul.addr %s614, 4
      %s616 = scalar_lea.vmem %s6, %s615
      %p617 = pneg %p180
      %p618 = pneg %p177
      %p619 = scmp.lt.s32.totalorder %s28, 1
      %s620 = scalar_select %p619, %s28, 1
      %s621 = scalar_lea.vmem %s7, %s620
      %p622 = pneg %p206
      %p623 = pneg %p203
      %p624 = scmp.lt.s32.totalorder %s28, 1
      %s625 = scalar_select %p624, %s28, 1
      %s626 = smul.addr %s625, 2
      %s627 = smul.addr %s626, 4
      %s628 = scalar_lea.vmem %s8, %s627
      %p629 = pneg %p232
      %p630 = pneg %p229
      %p631 = scmp.lt.s32.totalorder %s28, 1
      %s632 = scalar_select %p631, %s28, 1
      %s633 = smul.addr %s632, 2
      %s634 = smul.addr %s633, 4
      %s635 = scalar_lea.vmem %s9, %s634
      %p636 = pneg %p258
      %p637 = pneg %p255
      %p638 = scmp.lt.s32.totalorder %s28, 1
      %s639 = scalar_select %p638, %s28, 1
      %s640 = scalar_lea.vmem %s10, %s639
      %p641 = pneg %p284
      %p642 = pneg %p281
      %p643 = scmp.lt.s32.totalorder %s28, 1
      %s644 = scalar_select %p643, %s28, 1
      %s645 = smul.addr %s644, 4
      %s646 = smul.addr %s645, 4
      %s647 = scalar_lea.vmem %s11, %s646
      %p648 = pneg %p310
      %p649 = pneg %p307
      %p650 = scmp.lt.s32.totalorder %s28, 1
      %s651 = scalar_select %p650, %s28, 1
      %s652 = smul.addr %s651, 2
      %s653 = scalar_lea.vmem %s12, %s652
      %p654 = pneg %p336
      %p655 = pneg %p333
      %p656 = scmp.lt.s32.totalorder %s28, 1
      %s657 = scalar_select %p656, %s28, 1
      %s658 = smul.addr %s657, 640
      %s659 = smul.addr %s658, 4
      %s660 = scalar_lea.vmem %s13, %s659
      %p661 = pneg %p362
      %p662 = pneg %p359
      %p663 = scmp.lt.s32.totalorder %s28, 1
      %s664 = scalar_select %p663, %s28, 1
      %s665 = smul.addr %s664, 20
      %s666 = scalar_lea.vmem %s14, %s665
      %p667 = pneg %p388
      %p668 = pneg %p385
      %p669 = scmp.lt.s32.totalorder %s28, 1
      %s670 = scalar_select %p669, %s28, 1
      %s671 = smul.addr %s670, 32
      %s672 = smul.addr %s671, 4
      %s673 = scalar_lea.vmem %s15, %s672
      %p674 = pneg %p414
      %p675 = pneg %p411
      %p676 = scmp.lt.s32.totalorder %s28, 1
      %s677 = scalar_select %p676, %s28, 1
      %s678 = scalar_lea.vmem %s16, %s677
      %p679 = pneg %p440
      %p680 = pneg %p437
      %p681 = pneg %p466
      %p682 = pneg %p463
      %p683 = scmp.lt.s32.totalorder %s28, 1
      %s684 = scalar_select %p683, %s28, 1
      %s685 = smul.addr %s684, 4
      %s686 = scalar_lea.vmem %s17, %s685
      %p687 = scmp.lt.s32.totalorder %s28, 1
      %s688 = scalar_select %p687, %s28, 1
      %s689 = smul.addr %s688, 3
      %s690 = smul.addr %s689, 4
      %s691 = scalar_lea.vmem %s5, %s690
      %p692 = scmp.lt.s32.totalorder %s28, 1
      %s693 = scalar_select %p692, %s28, 1
      %s694 = smul.addr %s693, 2
      %s695 = smul.addr %s694, 4
      %s696 = scalar_lea.vmem %s6, %s695
      %p697 = scmp.lt.s32.totalorder %s28, 1
      %s698 = scalar_select %p697, %s28, 1
      %s699 = scalar_lea.vmem %s7, %s698
      %p700 = scmp.lt.s32.totalorder %s28, 1
      %s701 = scalar_select %p700, %s28, 1
      %s702 = smul.addr %s701, 2
      %s703 = smul.addr %s702, 4
      %s704 = scalar_lea.vmem %s8, %s703
      %p705 = scmp.lt.s32.totalorder %s28, 1
      %s706 = scalar_select %p705, %s28, 1
      %s707 = smul.addr %s706, 2
      %s708 = smul.addr %s707, 4
      %s709 = scalar_lea.vmem %s9, %s708
      %p710 = scmp.lt.s32.totalorder %s28, 1
      %s711 = scalar_select %p710, %s28, 1
      %s712 = scalar_lea.vmem %s10, %s711
      %p713 = scmp.lt.s32.totalorder %s28, 1
      %s714 = scalar_select %p713, %s28, 1
      %s715 = smul.addr %s714, 4
      %s716 = smul.addr %s715, 4
      %s717 = scalar_lea.vmem %s11, %s716
      %p718 = scmp.lt.s32.totalorder %s28, 1
      %s719 = scalar_select %p718, %s28, 1
      %s720 = smul.addr %s719, 2
      %s721 = scalar_lea.vmem %s12, %s720
      %p722 = scmp.lt.s32.totalorder %s28, 1
      %s723 = scalar_select %p722, %s28, 1
      %s724 = smul.addr %s723, 640
      %s725 = smul.addr %s724, 4
      %s726 = scalar_lea.vmem %s13, %s725
      %p727 = scmp.lt.s32.totalorder %s28, 1
      %s728 = scalar_select %p727, %s28, 1
      %s729 = smul.addr %s728, 20
      %s730 = scalar_lea.vmem %s14, %s729
      %p731 = scmp.lt.s32.totalorder %s28, 1
      %s732 = scalar_select %p731, %s28, 1
      %s733 = smul.addr %s732, 32
      %s734 = smul.addr %s733, 4
      %s735 = scalar_lea.vmem %s15, %s734
      %p736 = scmp.lt.s32.totalorder %s28, 1
      %s737 = scalar_select %p736, %s28, 1
      %s738 = scalar_lea.vmem %s16, %s737
      %p739 = scmp.lt.s32.totalorder %s28, 1
      %s740 = scalar_select %p739, %s28, 1
      %s741 = smul.addr %s740, 4
      %s742 = scalar_lea.vmem %s17, %s741
      %v744 = vld [vmem:[%s0] sm:$0xf]
      %v745 = vld [vmem:[%s0 + $0x4] sm:$0xf]
      %v746 = vld [vmem:[%s1] sm:$0xf]
      %v747 = vld [vmem:[%s1 + $0x4] sm:$0xf]
      %v748 = vld [vmem:[%s2] sm:$0xf]
      %v749 = vld [vmem:[%s2 + $0x4] sm:$0xf]
      %v752 = vunpack.c.l.b16 %v748
      %v753 = vunpack.c.l.b16 %v749
      %v754 = vpack.c.b16 %v753, %v752
      %v757 = vunpack.c.l.b16 %v746
      %v758 = vunpack.c.l.b16 %v747
      %v759 = vpack.c.b16 %v758, %v757
      %vm761 = vcmask 130048
      %v763 = vsel %vm761, %v754, 0
      %765 = vmatprep.subr.bf16.mxu0 0
      %766 = vmatpush1.bf16.msra.mxu0 %v759
      %767 = vmatprep.subr.bf16.mxu0 0
      %768 = vmatpush1.bf16.msra.mxu0 0
      %769 = vmatprep.subr.bf16.mxu0 0
      %770 = vmatpush1.bf16.msra.mxu0 0
      %771 = vmatprep.subr.bf16.mxu0 0
      %772 = vmatpush1.bf16.msra.mxu0 0
      %773 = vmatprep.subr.bf16.mxu0 0
      %774 = vmatpush1.bf16.msra.mxu0 0
      %775 = vmatprep.subr.bf16.mxu0 0
      %776 = vmatpush1.bf16.msra.mxu0 0
      %777 = vmatprep.subr.bf16.mxu0 0
      %778 = vmatpush1.bf16.msra.mxu0 0
      %779 = vmatprep.subr.bf16.mxu0 0
      %780 = vmatpush1.bf16.msra.mxu0 0
      %781 = vmatprep.subr.bf16.mxu0 0
      %782 = vmatpush1.bf16.msra.mxu0 0
      %783 = vmatprep.subr.bf16.mxu0 0
      %784 = vmatpush1.bf16.msra.mxu0 0
      %785 = vmatprep.subr.bf16.mxu0 0
      %786 = vmatpush1.bf16.msra.mxu0 0
      %787 = vmatprep.subr.bf16.mxu0 0
      %788 = vmatpush1.bf16.msra.mxu0 0
      %789 = vmatprep.subr.bf16.mxu0 0
      %790 = vmatpush1.bf16.msra.mxu0 0
      %791 = vmatprep.subr.bf16.mxu0 0
      %792 = vmatpush1.bf16.msra.mxu0 0
      %793 = vmatprep.subr.bf16.mxu0 0
      %794 = vmatpush1.bf16.msra.mxu0 0
      %795 = vmatprep.subr.bf16.mxu0 0
      %796 = vmatpush1.bf16.msra.mxu0 0
      %797 = vmatprep.mubr.bf16.mxu0 0
      %798 = vmatmul.mubr.bf16.gmra.mrb[0].mxu0 %v763
      %v799 = vpop.f32.mrb[0].mxu0
      %v800 = vadd.f32 0.0, %v799
      %v801 = vpop.f32.mrb[0].mxu0
      %v802 = vpop.f32.mrb[0].mxu0
      %v803 = vadd.f32 0.0, %v802
      %v804 = vpop.f32.mrb[0].mxu0
      %805 = vdwg.mxu0
      %v806 = vld [vmem:[%s691] sm:$0xf]
      %v807 = vld [vmem:[%s691 + $0x4] sm:$0xf]
      %v808 = vld [vmem:[%s691 + $0x8] sm:$0x3]
      %v809 = vpack.c.bf16 %v803, %v800
      %v810 = vld [vmem:[%s696] sm:$0xf]
      %v811 = vld [vmem:[%s696 + $0x4] sm:$0xf]
      %v814 = vunpack.c.l.b16 %v810
      %v815 = vunpack.c.l.b16 %v811
      %v816 = vpack.c.b16 %v815, %v814
      %v819 = vsel %vm761, %v809, 0
      %821 = vmatprep.subr.bf16.mxu0 0
      %822 = vmatpush1.bf16.msra.mxu0 %v816
      %823 = vmatprep.subr.bf16.mxu0 0
      %824 = vmatpush1.bf16.msra.mxu0 0
      %825 = vmatprep.subr.bf16.mxu0 0
      %826 = vmatpush1.bf16.msra.mxu0 0
      %827 = vmatprep.subr.bf16.mxu0 0
      %828 = vmatpush1.bf16.msra.mxu0 0
      %829 = vmatprep.subr.bf16.mxu0 0
      %830 = vmatpush1.bf16.msra.mxu0 0
      %831 = vmatprep.subr.bf16.mxu0 0
      %832 = vmatpush1.bf16.msra.mxu0 0
      %833 = vmatprep.subr.bf16.mxu0 0
      %834 = vmatpush1.bf16.msra.mxu0 0
      %835 = vmatprep.subr.bf16.mxu0 0
      %836 = vmatpush1.bf16.msra.mxu0 0
      %837 = vmatprep.subr.bf16.mxu0 0
      %838 = vmatpush1.bf16.msra.mxu0 0
      %839 = vmatprep.subr.bf16.mxu0 0
      %840 = vmatpush1.bf16.msra.mxu0 0
      %841 = vmatprep.subr.bf16.mxu0 0
      %842 = vmatpush1.bf16.msra.mxu0 0
      %843 = vmatprep.subr.bf16.mxu0 0
      %844 = vmatpush1.bf16.msra.mxu0 0
      %845 = vmatprep.subr.bf16.mxu0 0
      %846 = vmatpush1.bf16.msra.mxu0 0
      %847 = vmatprep.subr.bf16.mxu0 0
      %848 = vmatpush1.bf16.msra.mxu0 0
      %849 = vmatprep.subr.bf16.mxu0 0
      %850 = vmatpush1.bf16.msra.mxu0 0
      %851 = vmatprep.subr.bf16.mxu0 0
      %852 = vmatpush1.bf16.msra.mxu0 0
      %853 = vmatprep.mubr.bf16.mxu0 0
      %854 = vmatmul.mubr.bf16.gmra.mrb[0].mxu0 %v819
      %v855 = vpop.f32.mrb[0].mxu0
      %v856 = vadd.f32 0.0, %v855
      %v857 = vpop.f32.mrb[0].mxu0
      %v858 = vpop.f32.mrb[0].mxu0
      %v859 = vadd.f32 0.0, %v858
      %v860 = vpop.f32.mrb[0].mxu0
      %861 = vdwg.mxu0
      %v864 = vunpack.c.l.b16 %v744
      %v865 = vunpack.c.l.b16 %v745
      %v866 = vpack.c.b16 %v865, %v864
      %v870 = vunpack.c.l.b16 %v806
      %v871 = vunpack.c.l.b16 %v807
      %v872 = vunpack.c.l.b16 %v808
      %v873 = vpack.c.b16 %v871, %v870
      %v874 = vpack.c.b16 %v872, %v872
      %vm876 = vcmask 162816
      %v878 = vsel %vm876, %v866, 0
      %vm880 = vcmask 1041408
      %v882 = vsel %vm880, %v874, 0
      %884 = vmatprep.subr.bf16.mxu0 0
      %885 = vmatpush1.bf16.msra.mxu0 %v873
      %886 = vmatprep.subr.bf16.mxu0 0
      %887 = vmatpush1.bf16.msra.mxu0 %v882
      %888 = vmatprep.subr.bf16.mxu0 0
      %889 = vmatpush1.bf16.msra.mxu0 0
      %890 = vmatprep.subr.bf16.mxu0 0
      %891 = vmatpush1.bf16.msra.mxu0 0
      %892 = vmatprep.subr.bf16.mxu0 0
      %893 = vmatpush1.bf16.msra.mxu0 0
      %894 = vmatprep.subr.bf16.mxu0 0
      %895 = vmatpush1.bf16.msra.mxu0 0
      %896 = vmatprep.subr.bf16.mxu0 0
      %897 = vmatpush1.bf16.msra.mxu0 0
      %898 = vmatprep.subr.bf16.mxu0 0
      %899 = vmatpush1.bf16.msra.mxu0 0
      %900 = vmatprep.subr.bf16.mxu0 0
      %901 = vmatpush1.bf16.msra.mxu0 0
      %902 = vmatprep.subr.bf16.mxu0 0
      %903 = vmatpush1.bf16.msra.mxu0 0
      %904 = vmatprep.subr.bf16.mxu0 0
      %905 = vmatpush1.bf16.msra.mxu0 0
      %906 = vmatprep.subr.bf16.mxu0 0
      %907 = vmatpush1.bf16.msra.mxu0 0
      %908 = vmatprep.subr.bf16.mxu0 0
      %909 = vmatpush1.bf16.msra.mxu0 0
      %910 = vmatprep.subr.bf16.mxu0 0
      %911 = vmatpush1.bf16.msra.mxu0 0
      %912 = vmatprep.subr.bf16.mxu0 0
      %913 = vmatpush1.bf16.msra.mxu0 0
      %914 = vmatprep.subr.bf16.mxu0 0
      %915 = vmatpush1.bf16.msra.mxu0 0
      %916 = vmatprep.mubr.bf16.mxu0 0
      %917 = vmatmul.mubr.bf16.gmra.mrb[0].mxu0 %v878
      %v918 = vpop.f32.mrb[0].mxu0
      %v919 = vadd.f32 %v856, %v918
      %v920 = vpop.f32.mrb[0].mxu0
      %v921 = vpop.f32.mrb[0].mxu0
      %v922 = vadd.f32 %v859, %v921
      %v923 = vpop.f32.mrb[0].mxu0
      %924 = vdwg.mxu0
      %v925 = vld [vmem:[%s699] sm:$0x1]
      %v927 = vlaneseq
      %v928 = vshrl.u32 %v927, 7
      %v929 = vsub.s32 0, %v928
      %v930 = vrot.slane %v925, %v929
      %v932 = vadd.f32 %v919, %v930
      %v933 = vadd.f32 %v922, %v930
      %v934 = vmul.f32 %v932, 0.01
      %v935 = vmul.f32 %v933, 0.01
      %v936 = vmax.f32 %v932, %v934
      %v937 = vmax.f32 %v933, %v935
      %v938 = vpack.c.bf16 %v937, %v936
      %v939 = vld [vmem:[%s3] sm:$0xf]
      %v940 = vld [vmem:[%s3 + $0x4] sm:$0xf]
      %v943 = vunpack.c.l.b16 %v939
      %v944 = vunpack.c.l.b16 %v940
      %v945 = vpack.c.b16 %v944, %v943
      %v947 = vsel %vm761, %v945, 0
      %949 = vmatprep.subr.bf16.mxu0 0
      %950 = vmatpush1.bf16.msra.mxu0 %v938
      %951 = vmatprep.subr.bf16.mxu0 0
      %952 = vmatpush1.bf16.msra.mxu0 0
      %953 = vmatprep.subr.bf16.mxu0 0
      %954 = vmatpush1.bf16.msra.mxu0 0
      %955 = vmatprep.subr.bf16.mxu0 0
      %956 = vmatpush1.bf16.msra.mxu0 0
      %957 = vmatprep.subr.bf16.mxu0 0
      %958 = vmatpush1.bf16.msra.mxu0 0
      %959 = vmatprep.subr.bf16.mxu0 0
      %960 = vmatpush1.bf16.msra.mxu0 0
      %961 = vmatprep.subr.bf16.mxu0 0
      %962 = vmatpush1.bf16.msra.mxu0 0
      %963 = vmatprep.subr.bf16.mxu0 0
      %964 = vmatpush1.bf16.msra.mxu0 0
      %965 = vmatprep.subr.bf16.mxu0 0
      %966 = vmatpush1.bf16.msra.mxu0 0
      %967 = vmatprep.subr.bf16.mxu0 0
      %968 = vmatpush1.bf16.msra.mxu0 0
      %969 = vmatprep.subr.bf16.mxu0 0
      %970 = vmatpush1.bf16.msra.mxu0 0
      %971 = vmatprep.subr.bf16.mxu0 0
      %972 = vmatpush1.bf16.msra.mxu0 0
      %973 = vmatprep.subr.bf16.mxu0 0
      %974 = vmatpush1.bf16.msra.mxu0 0
      %975 = vmatprep.subr.bf16.mxu0 0
      %976 = vmatpush1.bf16.msra.mxu0 0
      %977 = vmatprep.subr.bf16.mxu0 0
      %978 = vmatpush1.bf16.msra.mxu0 0
      %979 = vmatprep.subr.bf16.mxu0 0
      %980 = vmatpush1.bf16.msra.mxu0 0
      %981 = vmatprep.mubr.bf16.mxu0 0
      %982 = vmatmul.mubr.bf16.gmra.mrb[0].mxu0 %v947
      %v983 = vpop.f32.mrb[0].mxu0
      %v984 = vadd.f32 0.0, %v983
      %v985 = vpop.f32.mrb[0].mxu0
      %v986 = vpop.f32.mrb[0].mxu0
      %v987 = vadd.f32 0.0, %v986
      %v988 = vpop.f32.mrb[0].mxu0
      %989 = vdwg.mxu0
      %v990 = vld [vmem:[%s704] sm:$0xf]
      %v991 = vld [vmem:[%s704 + $0x4] sm:$0xf]
      %v992 = vpack.c.bf16 %v987, %v984
      %v993 = vld [vmem:[%s709] sm:$0xf]
      %v994 = vld [vmem:[%s709 + $0x4] sm:$0xf]
      %v997 = vunpack.c.l.b16 %v993
      %v998 = vunpack.c.l.b16 %v994
      %v999 = vpack.c.b16 %v998, %v997
      %v1002 = vsel %vm761, %v992, 0
      %1004 = vmatprep.subr.bf16.mxu0 0
      %1005 = vmatpush1.bf16.msra.mxu0 %v999
      %1006 = vmatprep.subr.bf16.mxu0 0
      %1007 = vmatpush1.bf16.msra.mxu0 0
      %1008 = vmatprep.subr.bf16.mxu0 0
      %1009 = vmatpush1.bf16.msra.mxu0 0
      %1010 = vmatprep.subr.bf16.mxu0 0
      %1011 = vmatpush1.bf16.msra.mxu0 0
      %1012 = vmatprep.subr.bf16.mxu0 0
      %1013 = vmatpush1.bf16.msra.mxu0 0
      %1014 = vmatprep.subr.bf16.mxu0 0
      %1015 = vmatpush1.bf16.msra.mxu0 0
      %1016 = vmatprep.subr.bf16.mxu0 0
      %1017 = vmatpush1.bf16.msra.mxu0 0
      %1018 = vmatprep.subr.bf16.mxu0 0
      %1019 = vmatpush1.bf16.msra.mxu0 0
      %1020 = vmatprep.subr.bf16.mxu0 0
      %1021 = vmatpush1.bf16.msra.mxu0 0
      %1022 = vmatprep.subr.bf16.mxu0 0
      %1023 = vmatpush1.bf16.msra.mxu0 0
      %1024 = vmatprep.subr.bf16.mxu0 0
      %1025 = vmatpush1.bf16.msra.mxu0 0
      %1026 = vmatprep.subr.bf16.mxu0 0
      %1027 = vmatpush1.bf16.msra.mxu0 0
      %1028 = vmatprep.subr.bf16.mxu0 0
      %1029 = vmatpush1.bf16.msra.mxu0 0
      %1030 = vmatprep.subr.bf16.mxu0 0
      %1031 = vmatpush1.bf16.msra.mxu0 0
      %1032 = vmatprep.subr.bf16.mxu0 0
      %1033 = vmatpush1.bf16.msra.mxu0 0
      %1034 = vmatprep.subr.bf16.mxu0 0
      %1035 = vmatpush1.bf16.msra.mxu0 0
      %1036 = vmatprep.mubr.bf16.mxu0 0
      %1037 = vmatmul.mubr.bf16.gmra.mrb[0].mxu0 %v1002
      %v1038 = vpop.f32.mrb[0].mxu0
      %v1039 = vadd.f32 0.0, %v1038
      %v1040 = vpop.f32.mrb[0].mxu0
      %v1041 = vpop.f32.mrb[0].mxu0
      %v1042 = vadd.f32 0.0, %v1041
      %v1043 = vpop.f32.mrb[0].mxu0
      %1044 = vdwg.mxu0
      %v1047 = vunpack.c.l.b16 %v990
      %v1048 = vunpack.c.l.b16 %v991
      %v1049 = vpack.c.b16 %v1048, %v1047
      %v1052 = vsel %vm761, %v938, 0
      %1054 = vmatprep.subr.bf16.mxu0 0
      %1055 = vmatpush1.bf16.msra.mxu0 %v1049
      %1056 = vmatprep.subr.bf16.mxu0 0
      %1057 = vmatpush1.bf16.msra.mxu0 0
      %1058 = vmatprep.subr.bf16.mxu0 0
      %1059 = vmatpush1.bf16.msra.mxu0 0
      %1060 = vmatprep.subr.bf16.mxu0 0
      %1061 = vmatpush1.bf16.msra.mxu0 0
      %1062 = vmatprep.subr.bf16.mxu0 0
      %1063 = vmatpush1.bf16.msra.mxu0 0
      %1064 = vmatprep.subr.bf16.mxu0 0
      %1065 = vmatpush1.bf16.msra.mxu0 0
      %1066 = vmatprep.subr.bf16.mxu0 0
      %1067 = vmatpush1.bf16.msra.mxu0 0
      %1068 = vmatprep.subr.bf16.mxu0 0
      %1069 = vmatpush1.bf16.msra.mxu0 0
      %1070 = vmatprep.subr.bf16.mxu0 0
      %1071 = vmatpush1.bf16.msra.mxu0 0
      %1072 = vmatprep.subr.bf16.mxu0 0
      %1073 = vmatpush1.bf16.msra.mxu0 0
      %1074 = vmatprep.subr.bf16.mxu0 0
      %1075 = vmatpush1.bf16.msra.mxu0 0
      %1076 = vmatprep.subr.bf16.mxu0 0
      %1077 = vmatpush1.bf16.msra.mxu0 0
      %1078 = vmatprep.subr.bf16.mxu0 0
      %1079 = vmatpush1.bf16.msra.mxu0 0
      %1080 = vmatprep.subr.bf16.mxu0 0
      %1081 = vmatpush1.bf16.msra.mxu0 0
      %1082 = vmatprep.subr.bf16.mxu0 0
      %1083 = vmatpush1.bf16.msra.mxu0 0
      %1084 = vmatprep.subr.bf16.mxu0 0
      %1085 = vmatpush1.bf16.msra.mxu0 0
      %1086 = vmatprep.mubr.bf16.mxu0 0
      %1087 = vmatmul.mubr.bf16.gmra.mrb[0].mxu0 %v1052
      %v1088 = vpop.f32.mrb[0].mxu0
      %v1089 = vadd.f32 %v1039, %v1088
      %v1090 = vpop.f32.mrb[0].mxu0
      %v1091 = vpop.f32.mrb[0].mxu0
      %v1092 = vadd.f32 %v1042, %v1091
      %v1093 = vpop.f32.mrb[0].mxu0
      %1094 = vdwg.mxu0
      %v1095 = vld [vmem:[%s712] sm:$0x1]
      %v1097 = vlaneseq
      %v1098 = vshrl.u32 %v1097, 7
      %v1099 = vsub.s32 0, %v1098
      %v1100 = vrot.slane %v1095, %v1099
      %v1102 = vadd.f32 %v1089, %v1100
      %v1103 = vadd.f32 %v1092, %v1100
      %v1104 = vmul.f32 %v1102, 0.01
      %v1105 = vmul.f32 %v1103, 0.01
      %v1106 = vmax.f32 %v1102, %v1104
      %v1107 = vmax.f32 %v1103, %v1105
      %v1108 = vld [vmem:[%s4] sm:$0x3]
      %v1109 = vpack.c.bf16 %v1107, %v1106
      %v1111 = vsel %vm761, %v1108, 0
      %1113 = vmatprep.subr.bf16.mxu0 0
      %1114 = vmatpush1.bf16.msra.mxu0 %v1109
      %1115 = vmatprep.subr.bf16.mxu0 0
      %1116 = vmatpush1.bf16.msra.mxu0 0
      %1117 = vmatprep.subr.bf16.mxu0 0
      %1118 = vmatpush1.bf16.msra.mxu0 0
      %1119 = vmatprep.subr.bf16.mxu0 0
      %1120 = vmatpush1.bf16.msra.mxu0 0
      %1121 = vmatprep.subr.bf16.mxu0 0
      %1122 = vmatpush1.bf16.msra.mxu0 0
      %1123 = vmatprep.subr.bf16.mxu0 0
      %1124 = vmatpush1.bf16.msra.mxu0 0
      %1125 = vmatprep.subr.bf16.mxu0 0
      %1126 = vmatpush1.bf16.msra.mxu0 0
      %1127 = vmatprep.subr.bf16.mxu0 0
      %1128 = vmatpush1.bf16.msra.mxu0 0
      %1129 = vmatprep.subr.bf16.mxu0 0
      %1130 = vmatpush1.bf16.msra.mxu0 0
      %1131 = vmatprep.subr.bf16.mxu0 0
      %1132 = vmatpush1.bf16.msra.mxu0 0
      %1133 = vmatprep.subr.bf16.mxu0 0
      %1134 = vmatpush1.bf16.msra.mxu0 0
      %1135 = vmatprep.subr.bf16.mxu0 0
      %1136 = vmatpush1.bf16.msra.mxu0 0
      %1137 = vmatprep.subr.bf16.mxu0 0
      %1138 = vmatpush1.bf16.msra.mxu0 0
      %1139 = vmatprep.subr.bf16.mxu0 0
      %1140 = vmatpush1.bf16.msra.mxu0 0
      %1141 = vmatprep.subr.bf16.mxu0 0
      %1142 = vmatpush1.bf16.msra.mxu0 0
      %1143 = vmatprep.subr.bf16.mxu0 0
      %1144 = vmatpush1.bf16.msra.mxu0 0
      %1145 = vmatprep.mubr.bf16.mxu0 0
      %1146 = vmatmul.mubr.bf16.gmra.mrb[0].mxu0 %v1111
      %v1147 = vpop.f32.mrb[0].mxu0
      %v1148 = vadd.f32 0.0, %v1147
      %v1149 = vpop.f32.mrb[0].mxu0
      %v1150 = vpop.f32.mrb[0].mxu0
      %v1151 = vpop.f32.mrb[0].mxu0
      %1152 = vdwg.mxu0
      %v1153 = vmul.f32 %v1148, 0.01
      %v1154 = vmax.f32 %v1148, %v1153
      %v1155 = vpack.c.bf16 %v1154, %v1154
      %v1156 = vld [vmem:[%s717] sm:$0xff]
      %v1157 = vld [vmem:[%s717 + $0x8] sm:$0xff]
      %v1158 = vld [vmem:[%s721] sm:$0x3]
      %v1160 = vlaneseq
      %v1161 = vshrl.u32 %v1160, 7
      %v1162 = vsub.s32 0, %v1161
      %v1163 = vrot.slane %v1158, %v1162
      %v1164 = vlaneseq
      %v1165 = vshrl.u32 %v1164, 7
      %v1166 = vsub.s32 1, %v1165
      %v1167 = vrot.slane %v1158, %v1166
      %v1172 = vunpack.c.l.b16 %v1156
      %v1173 = vunpack.c.h.b16 %v1156
      %v1174 = vunpack.c.l.b16 %v1157
      %v1175 = vunpack.c.h.b16 %v1157
      %v1176 = vpack.c.b16 %v1174, %v1172
      %v1177 = vpack.c.b16 %v1175, %v1173
      %v1181 = vsel %vm761, %v1155, 0
      %1183 = vmatprep.subr.bf16.mxu0 %v1177
      %1184 = vmatpush1.bf16.msra.mxu0 %v1176
      %1185 = vmatprep.subr.bf16.mxu0 0
      %1186 = vmatpush1.bf16.msra.mxu0 0
      %1187 = vmatprep.subr.bf16.mxu0 0
      %1188 = vmatpush1.bf16.msra.mxu0 0
      %1189 = vmatprep.subr.bf16.mxu0 0
      %1190 = vmatpush1.bf16.msra.mxu0 0
      %1191 = vmatprep.subr.bf16.mxu0 0
      %1192 = vmatpush1.bf16.msra.mxu0 0
      %1193 = vmatprep.subr.bf16.mxu0 0
      %1194 = vmatpush1.bf16.msra.mxu0 0
      %1195 = vmatprep.subr.bf16.mxu0 0
      %1196 = vmatpush1.bf16.msra.mxu0 0
      %1197 = vmatprep.subr.bf16.mxu0 0
      %1198 = vmatpush1.bf16.msra.mxu0 0
      %1199 = vmatprep.subr.bf16.mxu0 0
      %1200 = vmatpush1.bf16.msra.mxu0 0
      %1201 = vmatprep.subr.bf16.mxu0 0
      %1202 = vmatpush1.bf16.msra.mxu0 0
      %1203 = vmatprep.subr.bf16.mxu0 0
      %1204 = vmatpush1.bf16.msra.mxu0 0
      %1205 = vmatprep.subr.bf16.mxu0 0
      %1206 = vmatpush1.bf16.msra.mxu0 0
      %1207 = vmatprep.subr.bf16.mxu0 0
      %1208 = vmatpush1.bf16.msra.mxu0 0
      %1209 = vmatprep.subr.bf16.mxu0 0
      %1210 = vmatpush1.bf16.msra.mxu0 0
      %1211 = vmatprep.subr.bf16.mxu0 0
      %1212 = vmatpush1.bf16.msra.mxu0 0
      %1213 = vmatprep.subr.bf16.mxu0 0
      %1214 = vmatpush1.bf16.msra.mxu0 0
      %1215 = vmatprep.mubr.bf16.mxu0 0
      %1216 = vmatmul.mubr.bf16.gmra.mrb[0].mxu0 %v1181
      %v1217 = vpop.f32.mrb[0].mxu0
      %v1218 = vadd.f32 %v1163, %v1217
      %v1219 = vpop.f32.mrb[0].mxu0
      %v1220 = vadd.f32 %v1167, %v1219
      %v1221 = vpop.f32.mrb[0].mxu0
      %v1222 = vpop.f32.mrb[0].mxu0
      %1223 = vdwg.mxu0
      %v1224 = vmul.f32 %v1218, 0.01
      %v1225 = vmul.f32 %v1220, 0.01
      %v1226 = vmax.f32 %v1218, %v1224
      %v1227 = vmax.f32 %v1220, %v1225
      %v1228 = vpack.c.bf16 %v1226, %v1226
      %v1229 = vpack.c.bf16 %v1227, %v1227
      %v1230 = vld [vmem:[%s726] sm:$0xff]
      %v1231 = vld [vmem:[%s726 + $0x8] sm:$0xff]
      %v1232 = vld [vmem:[%s726 + $0x10] sm:$0xff]
      %v1233 = vld [vmem:[%s726 + $0x18] sm:$0xff]
      %v1234 = vld [vmem:[%s726 + $0x20] sm:$0xff]
      %v1235 = vld [vmem:[%s726 + $0x28] sm:$0xff]
      %v1236 = vld [vmem:[%s726 + $0x30] sm:$0xff]
      %v1237 = vld [vmem:[%s726 + $0x38] sm:$0xff]
      %v1238 = vld [vmem:[%s726 + $0x40] sm:$0xff]
      %v1239 = vld [vmem:[%s726 + $0x48] sm:$0xff]
      %v1240 = vld [vmem:[%s726 + $0x50] sm:$0xff]
      %v1241 = vld [vmem:[%s726 + $0x58] sm:$0xff]
      %v1242 = vld [vmem:[%s726 + $0x60] sm:$0xff]
      %v1243 = vld [vmem:[%s726 + $0x68] sm:$0xff]
      %v1244 = vld [vmem:[%s726 + $0x70] sm:$0xff]
      %v1245 = vld [vmem:[%s726 + $0x78] sm:$0xff]
      %v1246 = vld [vmem:[%s726 + $0x80] sm:$0xff]
      %v1247 = vld [vmem:[%s726 + $0x88] sm:$0xff]
      %v1248 = vld [vmem:[%s726 + $0x90] sm:$0xff]
      %v1249 = vld [vmem:[%s726 + $0x98] sm:$0xff]
      %v1250 = vld [vmem:[%s726 + $0xa0] sm:$0xff]
      %v1251 = vld [vmem:[%s726 + $0xa8] sm:$0xff]
      %v1252 = vld [vmem:[%s726 + $0xb0] sm:$0xff]
      %v1253 = vld [vmem:[%s726 + $0xb8] sm:$0xff]
      %v1254 = vld [vmem:[%s726 + $0xc0] sm:$0xff]
      %v1255 = vld [vmem:[%s726 + $0xc8] sm:$0xff]
      %v1256 = vld [vmem:[%s726 + $0xd0] sm:$0xff]
      %v1257 = vld [vmem:[%s726 + $0xd8] sm:$0xff]
      %v1258 = vld [vmem:[%s726 + $0xe0] sm:$0xff]
      %v1259 = vld [vmem:[%s726 + $0xe8] sm:$0xff]
      %v1260 = vld [vmem:[%s726 + $0xf0] sm:$0xff]
      %v1261 = vld [vmem:[%s726 + $0xf8] sm:$0xff]
      %v1262 = vld [vmem:[%s730] sm:$0x3]
      %v1264 = vlaneseq
      %v1265 = vshrl.u32 %v1264, 7
      %v1266 = vsub.s32 0, %v1265
      %v1267 = vrot.slane %v1262, %v1266
      %v1268 = vlaneseq
      %v1269 = vshrl.u32 %v1268, 7
      %v1270 = vsub.s32 1, %v1269
      %v1271 = vrot.slane %v1262, %v1270
      %v1306 = vunpack.c.l.b16 %v1230
      %v1307 = vunpack.c.h.b16 %v1230
      %v1308 = vunpack.c.l.b16 %v1231
      %v1309 = vunpack.c.h.b16 %v1231
      %v1310 = vunpack.c.l.b16 %v1232
      %v1311 = vunpack.c.h.b16 %v1232
      %v1312 = vunpack.c.l.b16 %v1233
      %v1313 = vunpack.c.h.b16 %v1233
      %v1314 = vunpack.c.l.b16 %v1234
      %v1315 = vunpack.c.h.b16 %v1234
      %v1316 = vunpack.c.l.b16 %v1235
      %v1317 = vunpack.c.h.b16 %v1235
      %v1318 = vunpack.c.l.b16 %v1236
      %v1319 = vunpack.c.h.b16 %v1236
      %v1320 = vunpack.c.l.b16 %v1237
      %v1321 = vunpack.c.h.b16 %v1237
      %v1322 = vunpack.c.l.b16 %v1238
      %v1323 = vunpack.c.h.b16 %v1238
      %v1324 = vunpack.c.l.b16 %v1239
      %v1325 = vunpack.c.h.b16 %v1239
      %v1326 = vunpack.c.l.b16 %v1240
      %v1327 = vunpack.c.h.b16 %v1240
      %v1328 = vunpack.c.l.b16 %v1241
      %v1329 = vunpack.c.h.b16 %v1241
      %v1330 = vunpack.c.l.b16 %v1242
      %v1331 = vunpack.c.h.b16 %v1242
      %v1332 = vunpack.c.l.b16 %v1243
      %v1333 = vunpack.c.h.b16 %v1243
      %v1334 = vunpack.c.l.b16 %v1244
      %v1335 = vunpack.c.h.b16 %v1244
      %v1336 = vunpack.c.l.b16 %v1245
      %v1337 = vunpack.c.h.b16 %v1245
      %v1338 = vunpack.c.l.b16 %v1246
      %v1339 = vunpack.c.h.b16 %v1246
      %v1340 = vunpack.c.l.b16 %v1247
      %v1341 = vunpack.c.h.b16 %v1247
      %v1342 = vunpack.c.l.b16 %v1248
      %v1343 = vunpack.c.h.b16 %v1248
      %v1344 = vunpack.c.l.b16 %v1249
      %v1345 = vunpack.c.h.b16 %v1249
      %v1346 = vunpack.c.l.b16 %v1250
      %v1347 = vunpack.c.h.b16 %v1250
      %v1348 = vunpack.c.l.b16 %v1251
      %v1349 = vunpack.c.h.b16 %v1251
      %v1350 = vunpack.c.l.b16 %v1252
      %v1351 = vunpack.c.h.b16 %v1252
      %v1352 = vunpack.c.l.b16 %v1253
      %v1353 = vunpack.c.h.b16 %v1253
      %v1354 = vunpack.c.l.b16 %v1254
      %v1355 = vunpack.c.h.b16 %v1254
      %v1356 = vunpack.c.l.b16 %v1255
      %v1357 = vunpack.c.h.b16 %v1255
      %v1358 = vunpack.c.l.b16 %v1256
      %v1359 = vunpack.c.h.b16 %v1256
      %v1360 = vunpack.c.l.b16 %v1257
      %v1361 = vunpack.c.h.b16 %v1257
      %v1362 = vunpack.c.l.b16 %v1258
      %v1363 = vunpack.c.h.b16 %v1258
      %v1364 = vunpack.c.l.b16 %v1259
      %v1365 = vunpack.c.h.b16 %v1259
      %v1366 = vunpack.c.l.b16 %v1260
      %v1367 = vunpack.c.h.b16 %v1260
      %v1368 = vunpack.c.l.b16 %v1261
      %v1369 = vunpack.c.h.b16 %v1261
      %v1370 = vpack.c.b16 %v1308, %v1306
      %v1371 = vpack.c.b16 %v1309, %v1307
      %v1372 = vpack.c.b16 %v1312, %v1310
      %v1373 = vpack.c.b16 %v1313, %v1311
      %v1374 = vpack.c.b16 %v1316, %v1314
      %v1375 = vpack.c.b16 %v1317, %v1315
      %v1376 = vpack.c.b16 %v1320, %v1318
      %v1377 = vpack.c.b16 %v1321, %v1319
      %v1378 = vpack.c.b16 %v1324, %v1322
      %v1379 = vpack.c.b16 %v1325, %v1323
      %v1380 = vpack.c.b16 %v1328, %v1326
      %v1381 = vpack.c.b16 %v1329, %v1327
      %v1382 = vpack.c.b16 %v1332, %v1330
      %v1383 = vpack.c.b16 %v1333, %v1331
      %v1384 = vpack.c.b16 %v1336, %v1334
      %v1385 = vpack.c.b16 %v1337, %v1335
      %v1386 = vpack.c.b16 %v1340, %v1338
      %v1387 = vpack.c.b16 %v1341, %v1339
      %v1388 = vpack.c.b16 %v1344, %v1342
      %v1389 = vpack.c.b16 %v1345, %v1343
      %v1390 = vpack.c.b16 %v1348, %v1346
      %v1391 = vpack.c.b16 %v1349, %v1347
      %v1392 = vpack.c.b16 %v1352, %v1350
      %v1393 = vpack.c.b16 %v1353, %v1351
      %v1394 = vpack.c.b16 %v1356, %v1354
      %v1395 = vpack.c.b16 %v1357, %v1355
      %v1396 = vpack.c.b16 %v1360, %v1358
      %v1397 = vpack.c.b16 %v1361, %v1359
      %v1398 = vpack.c.b16 %v1364, %v1362
      %v1399 = vpack.c.b16 %v1365, %v1363
      %v1400 = vpack.c.b16 %v1368, %v1366
      %v1401 = vpack.c.b16 %v1369, %v1367
      %1434 = vmatprep.subr.bf16.mxu0 %v1371
      %1435 = vmatpush1.bf16.msra.mxu0 %v1370
      %1436 = vmatprep.subr.bf16.mxu0 %v1373
      %1437 = vmatpush1.bf16.msra.mxu0 %v1372
      %1438 = vmatprep.subr.bf16.mxu0 %v1375
      %1439 = vmatpush1.bf16.msra.mxu0 %v1374
      %1440 = vmatprep.subr.bf16.mxu0 %v1377
      %1441 = vmatpush1.bf16.msra.mxu0 %v1376
      %1442 = vmatprep.subr.bf16.mxu0 %v1379
      %1443 = vmatpush1.bf16.msra.mxu0 %v1378
      %1444 = vmatprep.subr.bf16.mxu0 %v1381
      %1445 = vmatpush1.bf16.msra.mxu0 %v1380
      %1446 = vmatprep.subr.bf16.mxu0 %v1383
      %1447 = vmatpush1.bf16.msra.mxu0 %v1382
      %1448 = vmatprep.subr.bf16.mxu0 %v1385
      %1449 = vmatpush1.bf16.msra.mxu0 %v1384
      %1450 = vmatprep.subr.bf16.mxu0 %v1387
      %1451 = vmatpush1.bf16.msra.mxu0 %v1386
      %1452 = vmatprep.subr.bf16.mxu0 %v1389
      %1453 = vmatpush1.bf16.msra.mxu0 %v1388
      %1454 = vmatprep.subr.bf16.mxu0 %v1391
      %1455 = vmatpush1.bf16.msra.mxu0 %v1390
      %1456 = vmatprep.subr.bf16.mxu0 %v1393
      %1457 = vmatpush1.bf16.msra.mxu0 %v1392
      %1458 = vmatprep.subr.bf16.mxu0 %v1395
      %1459 = vmatpush1.bf16.msra.mxu0 %v1394
      %1460 = vmatprep.subr.bf16.mxu0 %v1397
      %1461 = vmatpush1.bf16.msra.mxu0 %v1396
      %1462 = vmatprep.subr.bf16.mxu0 %v1399
      %1463 = vmatpush1.bf16.msra.mxu0 %v1398
      %1464 = vmatprep.subr.bf16.mxu0 %v1401
      %1465 = vmatpush1.bf16.msra.mxu0 %v1400
      %1466 = vmatprep.mubr.bf16.mxu0 %v1229
      %1467 = vmatmul.mubr.bf16.gmra.mrb[0].mxu0 %v1228
      %v1468 = vpop.f32.mrb[0].mxu0
      %v1469 = vadd.f32 %v1267, %v1468
      %v1470 = vpop.f32.mrb[0].mxu0
      %v1471 = vadd.f32 %v1271, %v1470
      %v1472 = vpop.f32.mrb[0].mxu0
      %v1473 = vpop.f32.mrb[0].mxu0
      %1474 = vdwg.mxu0
      %v1475 = vmul.f32 %v1469, 0.01
      %v1476 = vmul.f32 %v1471, 0.01
      %v1477 = vmax.f32 %v1469, %v1475
      %v1478 = vmax.f32 %v1471, %v1476
      %v1479 = vpack.c.bf16 %v1477, %v1477
      %v1480 = vpack.c.bf16 %v1478, %v1478
      %s1481 = scalar_lea.vmem %s726, 256
      %v1482 = vld [vmem:[%s1481] sm:$0xff]
      %v1483 = vld [vmem:[%s1481 + $0x8] sm:$0xff]
      %v1484 = vld [vmem:[%s1481 + $0x10] sm:$0xff]
      %v1485 = vld [vmem:[%s1481 + $0x18] sm:$0xff]
      %v1486 = vld [vmem:[%s1481 + $0x20] sm:$0xff]
      %v1487 = vld [vmem:[%s1481 + $0x28] sm:$0xff]
      %v1488 = vld [vmem:[%s1481 + $0x30] sm:$0xff]
      %v1489 = vld [vmem:[%s1481 + $0x38] sm:$0xff]
      %v1490 = vld [vmem:[%s1481 + $0x40] sm:$0xff]
      %v1491 = vld [vmem:[%s1481 + $0x48] sm:$0xff]
      %v1492 = vld [vmem:[%s1481 + $0x50] sm:$0xff]
      %v1493 = vld [vmem:[%s1481 + $0x58] sm:$0xff]
      %v1494 = vld [vmem:[%s1481 + $0x60] sm:$0xff]
      %v1495 = vld [vmem:[%s1481 + $0x68] sm:$0xff]
      %v1496 = vld [vmem:[%s1481 + $0x70] sm:$0xff]
      %v1497 = vld [vmem:[%s1481 + $0x78] sm:$0xff]
      %v1498 = vld [vmem:[%s1481 + $0x80] sm:$0xff]
      %v1499 = vld [vmem:[%s1481 + $0x88] sm:$0xff]
      %v1500 = vld [vmem:[%s1481 + $0x90] sm:$0xff]
      %v1501 = vld [vmem:[%s1481 + $0x98] sm:$0xff]
      %v1502 = vld [vmem:[%s1481 + $0xa0] sm:$0xff]
      %v1503 = vld [vmem:[%s1481 + $0xa8] sm:$0xff]
      %v1504 = vld [vmem:[%s1481 + $0xb0] sm:$0xff]
      %v1505 = vld [vmem:[%s1481 + $0xb8] sm:$0xff]
      %v1506 = vld [vmem:[%s1481 + $0xc0] sm:$0xff]
      %v1507 = vld [vmem:[%s1481 + $0xc8] sm:$0xff]
      %v1508 = vld [vmem:[%s1481 + $0xd0] sm:$0xff]
      %v1509 = vld [vmem:[%s1481 + $0xd8] sm:$0xff]
      %v1510 = vld [vmem:[%s1481 + $0xe0] sm:$0xff]
      %v1511 = vld [vmem:[%s1481 + $0xe8] sm:$0xff]
      %v1512 = vld [vmem:[%s1481 + $0xf0] sm:$0xff]
      %v1513 = vld [vmem:[%s1481 + $0xf8] sm:$0xff]
      %s1514 = scalar_lea.vmem %s730, 2
      %v1515 = vld [vmem:[%s1514] sm:$0x3]
      %v1517 = vlaneseq
      %v1518 = vshrl.u32 %v1517, 7
      %v1519 = vsub.s32 0, %v1518
      %v1520 = vrot.slane %v1515, %v1519
      %v1521 = vlaneseq
      %v1522 = vshrl.u32 %v1521, 7
      %v1523 = vsub.s32 1, %v1522
      %v1524 = vrot.slane %v1515, %v1523
      %v1559 = vunpack.c.l.b16 %v1482
      %v1560 = vunpack.c.h.b16 %v1482
      %v1561 = vunpack.c.l.b16 %v1483
      %v1562 = vunpack.c.h.b16 %v1483
      %v1563 = vunpack.c.l.b16 %v1484
      %v1564 = vunpack.c.h.b16 %v1484
      %v1565 = vunpack.c.l.b16 %v1485
      %v1566 = vunpack.c.h.b16 %v1485
      %v1567 = vunpack.c.l.b16 %v1486
      %v1568 = vunpack.c.h.b16 %v1486
      %v1569 = vunpack.c.l.b16 %v1487
      %v1570 = vunpack.c.h.b16 %v1487
      %v1571 = vunpack.c.l.b16 %v1488
      %v1572 = vunpack.c.h.b16 %v1488
      %v1573 = vunpack.c.l.b16 %v1489
      %v1574 = vunpack.c.h.b16 %v1489
      %v1575 = vunpack.c.l.b16 %v1490
      %v1576 = vunpack.c.h.b16 %v1490
      %v1577 = vunpack.c.l.b16 %v1491
      %v1578 = vunpack.c.h.b16 %v1491
      %v1579 = vunpack.c.l.b16 %v1492
      %v1580 = vunpack.c.h.b16 %v1492
      %v1581 = vunpack.c.l.b16 %v1493
      %v1582 = vunpack.c.h.b16 %v1493
      %v1583 = vunpack.c.l.b16 %v1494
      %v1584 = vunpack.c.h.b16 %v1494
      %v1585 = vunpack.c.l.b16 %v1495
      %v1586 = vunpack.c.h.b16 %v1495
      %v1587 = vunpack.c.l.b16 %v1496
      %v1588 = vunpack.c.h.b16 %v1496
      %v1589 = vunpack.c.l.b16 %v1497
      %v1590 = vunpack.c.h.b16 %v1497
      %v1591 = vunpack.c.l.b16 %v1498
      %v1592 = vunpack.c.h.b16 %v1498
      %v1593 = vunpack.c.l.b16 %v1499
      %v1594 = vunpack.c.h.b16 %v1499
      %v1595 = vunpack.c.l.b16 %v1500
      %v1596 = vunpack.c.h.b16 %v1500
      %v1597 = vunpack.c.l.b16 %v1501
      %v1598 = vunpack.c.h.b16 %v1501
      %v1599 = vunpack.c.l.b16 %v1502
      %v1600 = vunpack.c.h.b16 %v1502
      %v1601 = vunpack.c.l.b16 %v1503
      %v1602 = vunpack.c.h.b16 %v1503
      %v1603 = vunpack.c.l.b16 %v1504
      %v1604 = vunpack.c.h.b16 %v1504
      %v1605 = vunpack.c.l.b16 %v1505
      %v1606 = vunpack.c.h.b16 %v1505
      %v1607 = vunpack.c.l.b16 %v1506
      %v1608 = vunpack.c.h.b16 %v1506
      %v1609 = vunpack.c.l.b16 %v1507
      %v1610 = vunpack.c.h.b16 %v1507
      %v1611 = vunpack.c.l.b16 %v1508
      %v1612 = vunpack.c.h.b16 %v1508
      %v1613 = vunpack.c.l.b16 %v1509
      %v1614 = vunpack.c.h.b16 %v1509
      %v1615 = vunpack.c.l.b16 %v1510
      %v1616 = vunpack.c.h.b16 %v1510
      %v1617 = vunpack.c.l.b16 %v1511
      %v1618 = vunpack.c.h.b16 %v1511
      %v1619 = vunpack.c.l.b16 %v1512
      %v1620 = vunpack.c.h.b16 %v1512
      %v1621 = vunpack.c.l.b16 %v1513
      %v1622 = vunpack.c.h.b16 %v1513
      %v1623 = vpack.c.b16 %v1561, %v1559
      %v1624 = vpack.c.b16 %v1562, %v1560
      %v1625 = vpack.c.b16 %v1565, %v1563
      %v1626 = vpack.c.b16 %v1566, %v1564
      %v1627 = vpack.c.b16 %v1569, %v1567
      %v1628 = vpack.c.b16 %v1570, %v1568
      %v1629 = vpack.c.b16 %v1573, %v1571
      %v1630 = vpack.c.b16 %v1574, %v1572
      %v1631 = vpack.c.b16 %v1577, %v1575
      %v1632 = vpack.c.b16 %v1578, %v1576
      %v1633 = vpack.c.b16 %v1581, %v1579
      %v1634 = vpack.c.b16 %v1582, %v1580
      %v1635 = vpack.c.b16 %v1585, %v1583
      %v1636 = vpack.c.b16 %v1586, %v1584
      %v1637 = vpack.c.b16 %v1589, %v1587
      %v1638 = vpack.c.b16 %v1590, %v1588
      %v1639 = vpack.c.b16 %v1593, %v1591
      %v1640 = vpack.c.b16 %v1594, %v1592
      %v1641 = vpack.c.b16 %v1597, %v1595
      %v1642 = vpack.c.b16 %v1598, %v1596
      %v1643 = vpack.c.b16 %v1601, %v1599
      %v1644 = vpack.c.b16 %v1602, %v1600
      %v1645 = vpack.c.b16 %v1605, %v1603
      %v1646 = vpack.c.b16 %v1606, %v1604
      %v1647 = vpack.c.b16 %v1609, %v1607
      %v1648 = vpack.c.b16 %v1610, %v1608
      %v1649 = vpack.c.b16 %v1613, %v1611
      %v1650 = vpack.c.b16 %v1614, %v1612
      %v1651 = vpack.c.b16 %v1617, %v1615
      %v1652 = vpack.c.b16 %v1618, %v1616
      %v1653 = vpack.c.b16 %v1621, %v1619
      %v1654 = vpack.c.b16 %v1622, %v1620
      %1687 = vmatprep.subr.bf16.mxu0 %v1624
      %1688 = vmatpush1.bf16.msra.mxu0 %v1623
      %1689 = vmatprep.subr.bf16.mxu0 %v1626
      %1690 = vmatpush1.bf16.msra.mxu0 %v1625
      %1691 = vmatprep.subr.bf16.mxu0 %v1628
      %1692 = vmatpush1.bf16.msra.mxu0 %v1627
      %1693 = vmatprep.subr.bf16.mxu0 %v1630
      %1694 = vmatpush1.bf16.msra.mxu0 %v1629
      %1695 = vmatprep.subr.bf16.mxu0 %v1632
      %1696 = vmatpush1.bf16.msra.mxu0 %v1631
      %1697 = vmatprep.subr.bf16.mxu0 %v1634
      %1698 = vmatpush1.bf16.msra.mxu0 %v1633
      %1699 = vmatprep.subr.bf16.mxu0 %v1636
      %1700 = vmatpush1.bf16.msra.mxu0 %v1635
      %1701 = vmatprep.subr.bf16.mxu0 %v1638
      %1702 = vmatpush1.bf16.msra.mxu0 %v1637
      %1703 = vmatprep.subr.bf16.mxu0 %v1640
      %1704 = vmatpush1.bf16.msra.mxu0 %v1639
      %1705 = vmatprep.subr.bf16.mxu0 %v1642
      %1706 = vmatpush1.bf16.msra.mxu0 %v1641
      %1707 = vmatprep.subr.bf16.mxu0 %v1644
      %1708 = vmatpush1.bf16.msra.mxu0 %v1643
      %1709 = vmatprep.subr.bf16.mxu0 %v1646
      %1710 = vmatpush1.bf16.msra.mxu0 %v1645
      %1711 = vmatprep.subr.bf16.mxu0 %v1648
      %1712 = vmatpush1.bf16.msra.mxu0 %v1647
      %1713 = vmatprep.subr.bf16.mxu0 %v1650
      %1714 = vmatpush1.bf16.msra.mxu0 %v1649
      %1715 = vmatprep.subr.bf16.mxu0 %v1652
      %1716 = vmatpush1.bf16.msra.mxu0 %v1651
      %1717 = vmatprep.subr.bf16.mxu0 %v1654
      %1718 = vmatpush1.bf16.msra.mxu0 %v1653
      %1719 = vmatprep.mubr.bf16.mxu0 %v1480
      %1720 = vmatmul.mubr.bf16.gmra.mrb[0].mxu0 %v1479
      %v1721 = vpop.f32.mrb[0].mxu0
      %v1722 = vadd.f32 %v1520, %v1721
      %v1723 = vpop.f32.mrb[0].mxu0
      %v1724 = vadd.f32 %v1524, %v1723
      %v1725 = vpop.f32.mrb[0].mxu0
      %v1726 = vpop.f32.mrb[0].mxu0
      %1727 = vdwg.mxu0
      %v1728 = vmul.f32 %v1722, 0.01
      %v1729 = vmul.f32 %v1724, 0.01
      %v1730 = vmax.f32 %v1722, %v1728
      %v1731 = vmax.f32 %v1724, %v1729
      %v1732 = vpack.c.bf16 %v1730, %v1730
      %v1733 = vpack.c.bf16 %v1731, %v1731
      %s1734 = scalar_lea.vmem %s726, 512
      %v1735 = vld [vmem:[%s1734] sm:$0xff]
      %v1736 = vld [vmem:[%s1734 + $0x8] sm:$0xff]
      %v1737 = vld [vmem:[%s1734 + $0x10] sm:$0xff]
      %v1738 = vld [vmem:[%s1734 + $0x18] sm:$0xff]
      %v1739 = vld [vmem:[%s1734 + $0x20] sm:$0xff]
      %v1740 = vld [vmem:[%s1734 + $0x28] sm:$0xff]
      %v1741 = vld [vmem:[%s1734 + $0x30] sm:$0xff]
      %v1742 = vld [vmem:[%s1734 + $0x38] sm:$0xff]
      %v1743 = vld [vmem:[%s1734 + $0x40] sm:$0xff]
      %v1744 = vld [vmem:[%s1734 + $0x48] sm:$0xff]
      %v1745 = vld [vmem:[%s1734 + $0x50] sm:$0xff]
      %v1746 = vld [vmem:[%s1734 + $0x58] sm:$0xff]
      %v1747 = vld [vmem:[%s1734 + $0x60] sm:$0xff]
      %v1748 = vld [vmem:[%s1734 + $0x68] sm:$0xff]
      %v1749 = vld [vmem:[%s1734 + $0x70] sm:$0xff]
      %v1750 = vld [vmem:[%s1734 + $0x78] sm:$0xff]
      %v1751 = vld [vmem:[%s1734 + $0x80] sm:$0xff]
      %v1752 = vld [vmem:[%s1734 + $0x88] sm:$0xff]
      %v1753 = vld [vmem:[%s1734 + $0x90] sm:$0xff]
      %v1754 = vld [vmem:[%s1734 + $0x98] sm:$0xff]
      %v1755 = vld [vmem:[%s1734 + $0xa0] sm:$0xff]
      %v1756 = vld [vmem:[%s1734 + $0xa8] sm:$0xff]
      %v1757 = vld [vmem:[%s1734 + $0xb0] sm:$0xff]
      %v1758 = vld [vmem:[%s1734 + $0xb8] sm:$0xff]
      %v1759 = vld [vmem:[%s1734 + $0xc0] sm:$0xff]
      %v1760 = vld [vmem:[%s1734 + $0xc8] sm:$0xff]
      %v1761 = vld [vmem:[%s1734 + $0xd0] sm:$0xff]
      %v1762 = vld [vmem:[%s1734 + $0xd8] sm:$0xff]
      %v1763 = vld [vmem:[%s1734 + $0xe0] sm:$0xff]
      %v1764 = vld [vmem:[%s1734 + $0xe8] sm:$0xff]
      %v1765 = vld [vmem:[%s1734 + $0xf0] sm:$0xff]
      %v1766 = vld [vmem:[%s1734 + $0xf8] sm:$0xff]
      %s1767 = scalar_lea.vmem %s730, 4
      %v1768 = vld [vmem:[%s1767] sm:$0x3]
      %v1770 = vlaneseq
      %v1771 = vshrl.u32 %v1770, 7
      %v1772 = vsub.s32 0, %v1771
      %v1773 = vrot.slane %v1768, %v1772
      %v1774 = vlaneseq
      %v1775 = vshrl.u32 %v1774, 7
      %v1776 = vsub.s32 1, %v1775
      %v1777 = vrot.slane %v1768, %v1776
      %v1812 = vunpack.c.l.b16 %v1735
      %v1813 = vunpack.c.h.b16 %v1735
      %v1814 = vunpack.c.l.b16 %v1736
      %v1815 = vunpack.c.h.b16 %v1736
      %v1816 = vunpack.c.l.b16 %v1737
      %v1817 = vunpack.c.h.b16 %v1737
      %v1818 = vunpack.c.l.b16 %v1738
      %v1819 = vunpack.c.h.b16 %v1738
      %v1820 = vunpack.c.l.b16 %v1739
      %v1821 = vunpack.c.h.b16 %v1739
      %v1822 = vunpack.c.l.b16 %v1740
      %v1823 = vunpack.c.h.b16 %v1740
      %v1824 = vunpack.c.l.b16 %v1741
      %v1825 = vunpack.c.h.b16 %v1741
      %v1826 = vunpack.c.l.b16 %v1742
      %v1827 = vunpack.c.h.b16 %v1742
      %v1828 = vunpack.c.l.b16 %v1743
      %v1829 = vunpack.c.h.b16 %v1743
      %v1830 = vunpack.c.l.b16 %v1744
      %v1831 = vunpack.c.h.b16 %v1744
      %v1832 = vunpack.c.l.b16 %v1745
      %v1833 = vunpack.c.h.b16 %v1745
      %v1834 = vunpack.c.l.b16 %v1746
      %v1835 = vunpack.c.h.b16 %v1746
      %v1836 = vunpack.c.l.b16 %v1747
      %v1837 = vunpack.c.h.b16 %v1747
      %v1838 = vunpack.c.l.b16 %v1748
      %v1839 = vunpack.c.h.b16 %v1748
      %v1840 = vunpack.c.l.b16 %v1749
      %v1841 = vunpack.c.h.b16 %v1749
      %v1842 = vunpack.c.l.b16 %v1750
      %v1843 = vunpack.c.h.b16 %v1750
      %v1844 = vunpack.c.l.b16 %v1751
      %v1845 = vunpack.c.h.b16 %v1751
      %v1846 = vunpack.c.l.b16 %v1752
      %v1847 = vunpack.c.h.b16 %v1752
      %v1848 = vunpack.c.l.b16 %v1753
      %v1849 = vunpack.c.h.b16 %v1753
      %v1850 = vunpack.c.l.b16 %v1754
      %v1851 = vunpack.c.h.b16 %v1754
      %v1852 = vunpack.c.l.b16 %v1755
      %v1853 = vunpack.c.h.b16 %v1755
      %v1854 = vunpack.c.l.b16 %v1756
      %v1855 = vunpack.c.h.b16 %v1756
      %v1856 = vunpack.c.l.b16 %v1757
      %v1857 = vunpack.c.h.b16 %v1757
      %v1858 = vunpack.c.l.b16 %v1758
      %v1859 = vunpack.c.h.b16 %v1758
      %v1860 = vunpack.c.l.b16 %v1759
      %v1861 = vunpack.c.h.b16 %v1759
      %v1862 = vunpack.c.l.b16 %v1760
      %v1863 = vunpack.c.h.b16 %v1760
      %v1864 = vunpack.c.l.b16 %v1761
      %v1865 = vunpack.c.h.b16 %v1761
      %v1866 = vunpack.c.l.b16 %v1762
      %v1867 = vunpack.c.h.b16 %v1762
      %v1868 = vunpack.c.l.b16 %v1763
      %v1869 = vunpack.c.h.b16 %v1763
      %v1870 = vunpack.c.l.b16 %v1764
      %v1871 = vunpack.c.h.b16 %v1764
      %v1872 = vunpack.c.l.b16 %v1765
      %v1873 = vunpack.c.h.b16 %v1765
      %v1874 = vunpack.c.l.b16 %v1766
      %v1875 = vunpack.c.h.b16 %v1766
      %v1876 = vpack.c.b16 %v1814, %v1812
      %v1877 = vpack.c.b16 %v1815, %v1813
      %v1878 = vpack.c.b16 %v1818, %v1816
      %v1879 = vpack.c.b16 %v1819, %v1817
      %v1880 = vpack.c.b16 %v1822, %v1820
      %v1881 = vpack.c.b16 %v1823, %v1821
      %v1882 = vpack.c.b16 %v1826, %v1824
      %v1883 = vpack.c.b16 %v1827, %v1825
      %v1884 = vpack.c.b16 %v1830, %v1828
      %v1885 = vpack.c.b16 %v1831, %v1829
      %v1886 = vpack.c.b16 %v1834, %v1832
      %v1887 = vpack.c.b16 %v1835, %v1833
      %v1888 = vpack.c.b16 %v1838, %v1836
      %v1889 = vpack.c.b16 %v1839, %v1837
      %v1890 = vpack.c.b16 %v1842, %v1840
      %v1891 = vpack.c.b16 %v1843, %v1841
      %v1892 = vpack.c.b16 %v1846, %v1844
      %v1893 = vpack.c.b16 %v1847, %v1845
      %v1894 = vpack.c.b16 %v1850, %v1848
      %v1895 = vpack.c.b16 %v1851, %v1849
      %v1896 = vpack.c.b16 %v1854, %v1852
      %v1897 = vpack.c.b16 %v1855, %v1853
      %v1898 = vpack.c.b16 %v1858, %v1856
      %v1899 = vpack.c.b16 %v1859, %v1857
      %v1900 = vpack.c.b16 %v1862, %v1860
      %v1901 = vpack.c.b16 %v1863, %v1861
      %v1902 = vpack.c.b16 %v1866, %v1864
      %v1903 = vpack.c.b16 %v1867, %v1865
      %v1904 = vpack.c.b16 %v1870, %v1868
      %v1905 = vpack.c.b16 %v1871, %v1869
      %v1906 = vpack.c.b16 %v1874, %v1872
      %v1907 = vpack.c.b16 %v1875, %v1873
      %1940 = vmatprep.subr.bf16.mxu0 %v1877
      %1941 = vmatpush1.bf16.msra.mxu0 %v1876
      %1942 = vmatprep.subr.bf16.mxu0 %v1879
      %1943 = vmatpush1.bf16.msra.mxu0 %v1878
      %1944 = vmatprep.subr.bf16.mxu0 %v1881
      %1945 = vmatpush1.bf16.msra.mxu0 %v1880
      %1946 = vmatprep.subr.bf16.mxu0 %v1883
      %1947 = vmatpush1.bf16.msra.mxu0 %v1882
      %1948 = vmatprep.subr.bf16.mxu0 %v1885
      %1949 = vmatpush1.bf16.msra.mxu0 %v1884
      %1950 = vmatprep.subr.bf16.mxu0 %v1887
      %1951 = vmatpush1.bf16.msra.mxu0 %v1886
      %1952 = vmatprep.subr.bf16.mxu0 %v1889
      %1953 = vmatpush1.bf16.msra.mxu0 %v1888
      %1954 = vmatprep.subr.bf16.mxu0 %v1891
      %1955 = vmatpush1.bf16.msra.mxu0 %v1890
      %1956 = vmatprep.subr.bf16.mxu0 %v1893
      %1957 = vmatpush1.bf16.msra.mxu0 %v1892
      %1958 = vmatprep.subr.bf16.mxu0 %v1895
      %1959 = vmatpush1.bf16.msra.mxu0 %v1894
      %1960 = vmatprep.subr.bf16.mxu0 %v1897
      %1961 = vmatpush1.bf16.msra.mxu0 %v1896
      %1962 = vmatprep.subr.bf16.mxu0 %v1899
      %1963 = vmatpush1.bf16.msra.mxu0 %v1898
      %1964 = vmatprep.subr.bf16.mxu0 %v1901
      %1965 = vmatpush1.bf16.msra.mxu0 %v1900
      %1966 = vmatprep.subr.bf16.mxu0 %v1903
      %1967 = vmatpush1.bf16.msra.mxu0 %v1902
      %1968 = vmatprep.subr.bf16.mxu0 %v1905
      %1969 = vmatpush1.bf16.msra.mxu0 %v1904
      %1970 = vmatprep.subr.bf16.mxu0 %v1907
      %1971 = vmatpush1.bf16.msra.mxu0 %v1906
      %1972 = vmatprep.mubr.bf16.mxu0 %v1733
      %1973 = vmatmul.mubr.bf16.gmra.mrb[0].mxu0 %v1732
      %v1974 = vpop.f32.mrb[0].mxu0
      %v1975 = vadd.f32 %v1773, %v1974
      %v1976 = vpop.f32.mrb[0].mxu0
      %v1977 = vadd.f32 %v1777, %v1976
      %v1978 = vpop.f32.mrb[0].mxu0
      %v1979 = vpop.f32.mrb[0].mxu0
      %1980 = vdwg.mxu0
      %v1981 = vmul.f32 %v1975, 0.01
      %v1982 = vmul.f32 %v1977, 0.01
      %v1983 = vmax.f32 %v1975, %v1981
      %v1984 = vmax.f32 %v1977, %v1982
      %v1985 = vpack.c.bf16 %v1983, %v1983
      %v1986 = vpack.c.bf16 %v1984, %v1984
      %s1987 = scalar_lea.vmem %s726, 768
      %v1988 = vld [vmem:[%s1987] sm:$0xff]
      %v1989 = vld [vmem:[%s1987 + $0x8] sm:$0xff]
      %v1990 = vld [vmem:[%s1987 + $0x10] sm:$0xff]
      %v1991 = vld [vmem:[%s1987 + $0x18] sm:$0xff]
      %v1992 = vld [vmem:[%s1987 + $0x20] sm:$0xff]
      %v1993 = vld [vmem:[%s1987 + $0x28] sm:$0xff]
      %v1994 = vld [vmem:[%s1987 + $0x30] sm:$0xff]
      %v1995 = vld [vmem:[%s1987 + $0x38] sm:$0xff]
      %v1996 = vld [vmem:[%s1987 + $0x40] sm:$0xff]
      %v1997 = vld [vmem:[%s1987 + $0x48] sm:$0xff]
      %v1998 = vld [vmem:[%s1987 + $0x50] sm:$0xff]
      %v1999 = vld [vmem:[%s1987 + $0x58] sm:$0xff]
      %v2000 = vld [vmem:[%s1987 + $0x60] sm:$0xff]
      %v2001 = vld [vmem:[%s1987 + $0x68] sm:$0xff]
      %v2002 = vld [vmem:[%s1987 + $0x70] sm:$0xff]
      %v2003 = vld [vmem:[%s1987 + $0x78] sm:$0xff]
      %v2004 = vld [vmem:[%s1987 + $0x80] sm:$0xff]
      %v2005 = vld [vmem:[%s1987 + $0x88] sm:$0xff]
      %v2006 = vld [vmem:[%s1987 + $0x90] sm:$0xff]
      %v2007 = vld [vmem:[%s1987 + $0x98] sm:$0xff]
      %v2008 = vld [vmem:[%s1987 + $0xa0] sm:$0xff]
      %v2009 = vld [vmem:[%s1987 + $0xa8] sm:$0xff]
      %v2010 = vld [vmem:[%s1987 + $0xb0] sm:$0xff]
      %v2011 = vld [vmem:[%s1987 + $0xb8] sm:$0xff]
      %v2012 = vld [vmem:[%s1987 + $0xc0] sm:$0xff]
      %v2013 = vld [vmem:[%s1987 + $0xc8] sm:$0xff]
      %v2014 = vld [vmem:[%s1987 + $0xd0] sm:$0xff]
      %v2015 = vld [vmem:[%s1987 + $0xd8] sm:$0xff]
      %v2016 = vld [vmem:[%s1987 + $0xe0] sm:$0xff]
      %v2017 = vld [vmem:[%s1987 + $0xe8] sm:$0xff]
      %v2018 = vld [vmem:[%s1987 + $0xf0] sm:$0xff]
      %v2019 = vld [vmem:[%s1987 + $0xf8] sm:$0xff]
      %s2020 = scalar_lea.vmem %s730, 6
      %v2021 = vld [vmem:[%s2020] sm:$0x3]
      %v2023 = vlaneseq
      %v2024 = vshrl.u32 %v2023, 7
      %v2025 = vsub.s32 0, %v2024
      %v2026 = vrot.slane %v2021, %v2025
      %v2027 = vlaneseq
      %v2028 = vshrl.u32 %v2027, 7
      %v2029 = vsub.s32 1, %v2028
      %v2030 = vrot.slane %v2021, %v2029
      %v2065 = vunpack.c.l.b16 %v1988
      %v2066 = vunpack.c.h.b16 %v1988
      %v2067 = vunpack.c.l.b16 %v1989
      %v2068 = vunpack.c.h.b16 %v1989
      %v2069 = vunpack.c.l.b16 %v1990
      %v2070 = vunpack.c.h.b16 %v1990
      %v2071 = vunpack.c.l.b16 %v1991
      %v2072 = vunpack.c.h.b16 %v1991
      %v2073 = vunpack.c.l.b16 %v1992
      %v2074 = vunpack.c.h.b16 %v1992
      %v2075 = vunpack.c.l.b16 %v1993
      %v2076 = vunpack.c.h.b16 %v1993
      %v2077 = vunpack.c.l.b16 %v1994
      %v2078 = vunpack.c.h.b16 %v1994
      %v2079 = vunpack.c.l.b16 %v1995
      %v2080 = vunpack.c.h.b16 %v1995
      %v2081 = vunpack.c.l.b16 %v1996
      %v2082 = vunpack.c.h.b16 %v1996
      %v2083 = vunpack.c.l.b16 %v1997
      %v2084 = vunpack.c.h.b16 %v1997
      %v2085 = vunpack.c.l.b16 %v1998
      %v2086 = vunpack.c.h.b16 %v1998
      %v2087 = vunpack.c.l.b16 %v1999
      %v2088 = vunpack.c.h.b16 %v1999
      %v2089 = vunpack.c.l.b16 %v2000
      %v2090 = vunpack.c.h.b16 %v2000
      %v2091 = vunpack.c.l.b16 %v2001
      %v2092 = vunpack.c.h.b16 %v2001
      %v2093 = vunpack.c.l.b16 %v2002
      %v2094 = vunpack.c.h.b16 %v2002
      %v2095 = vunpack.c.l.b16 %v2003
      %v2096 = vunpack.c.h.b16 %v2003
      %v2097 = vunpack.c.l.b16 %v2004
      %v2098 = vunpack.c.h.b16 %v2004
      %v2099 = vunpack.c.l.b16 %v2005
      %v2100 = vunpack.c.h.b16 %v2005
      %v2101 = vunpack.c.l.b16 %v2006
      %v2102 = vunpack.c.h.b16 %v2006
      %v2103 = vunpack.c.l.b16 %v2007
      %v2104 = vunpack.c.h.b16 %v2007
      %v2105 = vunpack.c.l.b16 %v2008
      %v2106 = vunpack.c.h.b16 %v2008
      %v2107 = vunpack.c.l.b16 %v2009
      %v2108 = vunpack.c.h.b16 %v2009
      %v2109 = vunpack.c.l.b16 %v2010
      %v2110 = vunpack.c.h.b16 %v2010
      %v2111 = vunpack.c.l.b16 %v2011
      %v2112 = vunpack.c.h.b16 %v2011
      %v2113 = vunpack.c.l.b16 %v2012
      %v2114 = vunpack.c.h.b16 %v2012
      %v2115 = vunpack.c.l.b16 %v2013
      %v2116 = vunpack.c.h.b16 %v2013
      %v2117 = vunpack.c.l.b16 %v2014
      %v2118 = vunpack.c.h.b16 %v2014
      %v2119 = vunpack.c.l.b16 %v2015
      %v2120 = vunpack.c.h.b16 %v2015
      %v2121 = vunpack.c.l.b16 %v2016
      %v2122 = vunpack.c.h.b16 %v2016
      %v2123 = vunpack.c.l.b16 %v2017
      %v2124 = vunpack.c.h.b16 %v2017
      %v2125 = vunpack.c.l.b16 %v2018
      %v2126 = vunpack.c.h.b16 %v2018
      %v2127 = vunpack.c.l.b16 %v2019
      %v2128 = vunpack.c.h.b16 %v2019
      %v2129 = vpack.c.b16 %v2067, %v2065
      %v2130 = vpack.c.b16 %v2068, %v2066
      %v2131 = vpack.c.b16 %v2071, %v2069
      %v2132 = vpack.c.b16 %v2072, %v2070
      %v2133 = vpack.c.b16 %v2075, %v2073
      %v2134 = vpack.c.b16 %v2076, %v2074
      %v2135 = vpack.c.b16 %v2079, %v2077
      %v2136 = vpack.c.b16 %v2080, %v2078
      %v2137 = vpack.c.b16 %v2083, %v2081
      %v2138 = vpack.c.b16 %v2084, %v2082
      %v2139 = vpack.c.b16 %v2087, %v2085
      %v2140 = vpack.c.b16 %v2088, %v2086
      %v2141 = vpack.c.b16 %v2091, %v2089
      %v2142 = vpack.c.b16 %v2092, %v2090
      %v2143 = vpack.c.b16 %v2095, %v2093
      %v2144 = vpack.c.b16 %v2096, %v2094
      %v2145 = vpack.c.b16 %v2099, %v2097
      %v2146 = vpack.c.b16 %v2100, %v2098
      %v2147 = vpack.c.b16 %v2103, %v2101
      %v2148 = vpack.c.b16 %v2104, %v2102
      %v2149 = vpack.c.b16 %v2107, %v2105
      %v2150 = vpack.c.b16 %v2108, %v2106
      %v2151 = vpack.c.b16 %v2111, %v2109
      %v2152 = vpack.c.b16 %v2112, %v2110
      %v2153 = vpack.c.b16 %v2115, %v2113
      %v2154 = vpack.c.b16 %v2116, %v2114
      %v2155 = vpack.c.b16 %v2119, %v2117
      %v2156 = vpack.c.b16 %v2120, %v2118
      %v2157 = vpack.c.b16 %v2123, %v2121
      %v2158 = vpack.c.b16 %v2124, %v2122
      %v2159 = vpack.c.b16 %v2127, %v2125
      %v2160 = vpack.c.b16 %v2128, %v2126
      %2193 = vmatprep.subr.bf16.mxu0 %v2130
      %2194 = vmatpush1.bf16.msra.mxu0 %v2129
      %2195 = vmatprep.subr.bf16.mxu0 %v2132
      %2196 = vmatpush1.bf16.msra.mxu0 %v2131
      %2197 = vmatprep.subr.bf16.mxu0 %v2134
      %2198 = vmatpush1.bf16.msra.mxu0 %v2133
      %2199 = vmatprep.subr.bf16.mxu0 %v2136
      %2200 = vmatpush1.bf16.msra.mxu0 %v2135
      %2201 = vmatprep.subr.bf16.mxu0 %v2138
      %2202 = vmatpush1.bf16.msra.mxu0 %v2137
      %2203 = vmatprep.subr.bf16.mxu0 %v2140
      %2204 = vmatpush1.bf16.msra.mxu0 %v2139
      %2205 = vmatprep.subr.bf16.mxu0 %v2142
      %2206 = vmatpush1.bf16.msra.mxu0 %v2141
      %2207 = vmatprep.subr.bf16.mxu0 %v2144
      %2208 = vmatpush1.bf16.msra.mxu0 %v2143
      %2209 = vmatprep.subr.bf16.mxu0 %v2146
      %2210 = vmatpush1.bf16.msra.mxu0 %v2145
      %2211 = vmatprep.subr.bf16.mxu0 %v2148
      %2212 = vmatpush1.bf16.msra.mxu0 %v2147
      %2213 = vmatprep.subr.bf16.mxu0 %v2150
      %2214 = vmatpush1.bf16.msra.mxu0 %v2149
      %2215 = vmatprep.subr.bf16.mxu0 %v2152
      %2216 = vmatpush1.bf16.msra.mxu0 %v2151
      %2217 = vmatprep.subr.bf16.mxu0 %v2154
      %2218 = vmatpush1.bf16.msra.mxu0 %v2153
      %2219 = vmatprep.subr.bf16.mxu0 %v2156
      %2220 = vmatpush1.bf16.msra.mxu0 %v2155
      %2221 = vmatprep.subr.bf16.mxu0 %v2158
      %2222 = vmatpush1.bf16.msra.mxu0 %v2157
      %2223 = vmatprep.subr.bf16.mxu0 %v2160
      %2224 = vmatpush1.bf16.msra.mxu0 %v2159
      %2225 = vmatprep.mubr.bf16.mxu0 %v1986
      %2226 = vmatmul.mubr.bf16.gmra.mrb[0].mxu0 %v1985
      %v2227 = vpop.f32.mrb[0].mxu0
      %v2228 = vadd.f32 %v2026, %v2227
      %v2229 = vpop.f32.mrb[0].mxu0
      %v2230 = vadd.f32 %v2030, %v2229
      %v2231 = vpop.f32.mrb[0].mxu0
      %v2232 = vpop.f32.mrb[0].mxu0
      %2233 = vdwg.mxu0
      %v2234 = vmul.f32 %v2228, 0.01
      %v2235 = vmul.f32 %v2230, 0.01
      %v2236 = vmax.f32 %v2228, %v2234
      %v2237 = vmax.f32 %v2230, %v2235
      %v2238 = vpack.c.bf16 %v2236, %v2236
      %v2239 = vpack.c.bf16 %v2237, %v2237
      %s2240 = scalar_lea.vmem %s726, 1024
      %v2241 = vld [vmem:[%s2240] sm:$0xff]
      %v2242 = vld [vmem:[%s2240 + $0x8] sm:$0xff]
      %v2243 = vld [vmem:[%s2240 + $0x10] sm:$0xff]
      %v2244 = vld [vmem:[%s2240 + $0x18] sm:$0xff]
      %v2245 = vld [vmem:[%s2240 + $0x20] sm:$0xff]
      %v2246 = vld [vmem:[%s2240 + $0x28] sm:$0xff]
      %v2247 = vld [vmem:[%s2240 + $0x30] sm:$0xff]
      %v2248 = vld [vmem:[%s2240 + $0x38] sm:$0xff]
      %v2249 = vld [vmem:[%s2240 + $0x40] sm:$0xff]
      %v2250 = vld [vmem:[%s2240 + $0x48] sm:$0xff]
      %v2251 = vld [vmem:[%s2240 + $0x50] sm:$0xff]
      %v2252 = vld [vmem:[%s2240 + $0x58] sm:$0xff]
      %v2253 = vld [vmem:[%s2240 + $0x60] sm:$0xff]
      %v2254 = vld [vmem:[%s2240 + $0x68] sm:$0xff]
      %v2255 = vld [vmem:[%s2240 + $0x70] sm:$0xff]
      %v2256 = vld [vmem:[%s2240 + $0x78] sm:$0xff]
      %v2257 = vld [vmem:[%s2240 + $0x80] sm:$0xff]
      %v2258 = vld [vmem:[%s2240 + $0x88] sm:$0xff]
      %v2259 = vld [vmem:[%s2240 + $0x90] sm:$0xff]
      %v2260 = vld [vmem:[%s2240 + $0x98] sm:$0xff]
      %v2261 = vld [vmem:[%s2240 + $0xa0] sm:$0xff]
      %v2262 = vld [vmem:[%s2240 + $0xa8] sm:$0xff]
      %v2263 = vld [vmem:[%s2240 + $0xb0] sm:$0xff]
      %v2264 = vld [vmem:[%s2240 + $0xb8] sm:$0xff]
      %v2265 = vld [vmem:[%s2240 + $0xc0] sm:$0xff]
      %v2266 = vld [vmem:[%s2240 + $0xc8] sm:$0xff]
      %v2267 = vld [vmem:[%s2240 + $0xd0] sm:$0xff]
      %v2268 = vld [vmem:[%s2240 + $0xd8] sm:$0xff]
      %v2269 = vld [vmem:[%s2240 + $0xe0] sm:$0xff]
      %v2270 = vld [vmem:[%s2240 + $0xe8] sm:$0xff]
      %v2271 = vld [vmem:[%s2240 + $0xf0] sm:$0xff]
      %v2272 = vld [vmem:[%s2240 + $0xf8] sm:$0xff]
      %s2273 = scalar_lea.vmem %s730, 8
      %v2274 = vld [vmem:[%s2273] sm:$0x3]
      %v2276 = vlaneseq
      %v2277 = vshrl.u32 %v2276, 7
      %v2278 = vsub.s32 0, %v2277
      %v2279 = vrot.slane %v2274, %v2278
      %v2280 = vlaneseq
      %v2281 = vshrl.u32 %v2280, 7
      %v2282 = vsub.s32 1, %v2281
      %v2283 = vrot.slane %v2274, %v2282
      %v2318 = vunpack.c.l.b16 %v2241
      %v2319 = vunpack.c.h.b16 %v2241
      %v2320 = vunpack.c.l.b16 %v2242
      %v2321 = vunpack.c.h.b16 %v2242
      %v2322 = vunpack.c.l.b16 %v2243
      %v2323 = vunpack.c.h.b16 %v2243
      %v2324 = vunpack.c.l.b16 %v2244
      %v2325 = vunpack.c.h.b16 %v2244
      %v2326 = vunpack.c.l.b16 %v2245
      %v2327 = vunpack.c.h.b16 %v2245
      %v2328 = vunpack.c.l.b16 %v2246
      %v2329 = vunpack.c.h.b16 %v2246
      %v2330 = vunpack.c.l.b16 %v2247
      %v2331 = vunpack.c.h.b16 %v2247
      %v2332 = vunpack.c.l.b16 %v2248
      %v2333 = vunpack.c.h.b16 %v2248
      %v2334 = vunpack.c.l.b16 %v2249
      %v2335 = vunpack.c.h.b16 %v2249
      %v2336 = vunpack.c.l.b16 %v2250
      %v2337 = vunpack.c.h.b16 %v2250
      %v2338 = vunpack.c.l.b16 %v2251
      %v2339 = vunpack.c.h.b16 %v2251
      %v2340 = vunpack.c.l.b16 %v2252
      %v2341 = vunpack.c.h.b16 %v2252
      %v2342 = vunpack.c.l.b16 %v2253
      %v2343 = vunpack.c.h.b16 %v2253
      %v2344 = vunpack.c.l.b16 %v2254
      %v2345 = vunpack.c.h.b16 %v2254
      %v2346 = vunpack.c.l.b16 %v2255
      %v2347 = vunpack.c.h.b16 %v2255
      %v2348 = vunpack.c.l.b16 %v2256
      %v2349 = vunpack.c.h.b16 %v2256
      %v2350 = vunpack.c.l.b16 %v2257
      %v2351 = vunpack.c.h.b16 %v2257
      %v2352 = vunpack.c.l.b16 %v2258
      %v2353 = vunpack.c.h.b16 %v2258
      %v2354 = vunpack.c.l.b16 %v2259
      %v2355 = vunpack.c.h.b16 %v2259
      %v2356 = vunpack.c.l.b16 %v2260
      %v2357 = vunpack.c.h.b16 %v2260
      %v2358 = vunpack.c.l.b16 %v2261
      %v2359 = vunpack.c.h.b16 %v2261
      %v2360 = vunpack.c.l.b16 %v2262
      %v2361 = vunpack.c.h.b16 %v2262
      %v2362 = vunpack.c.l.b16 %v2263
      %v2363 = vunpack.c.h.b16 %v2263
      %v2364 = vunpack.c.l.b16 %v2264
      %v2365 = vunpack.c.h.b16 %v2264
      %v2366 = vunpack.c.l.b16 %v2265
      %v2367 = vunpack.c.h.b16 %v2265
      %v2368 = vunpack.c.l.b16 %v2266
      %v2369 = vunpack.c.h.b16 %v2266
      %v2370 = vunpack.c.l.b16 %v2267
      %v2371 = vunpack.c.h.b16 %v2267
      %v2372 = vunpack.c.l.b16 %v2268
      %v2373 = vunpack.c.h.b16 %v2268
      %v2374 = vunpack.c.l.b16 %v2269
      %v2375 = vunpack.c.h.b16 %v2269
      %v2376 = vunpack.c.l.b16 %v2270
      %v2377 = vunpack.c.h.b16 %v2270
      %v2378 = vunpack.c.l.b16 %v2271
      %v2379 = vunpack.c.h.b16 %v2271
      %v2380 = vunpack.c.l.b16 %v2272
      %v2381 = vunpack.c.h.b16 %v2272
      %v2382 = vpack.c.b16 %v2320, %v2318
      %v2383 = vpack.c.b16 %v2321, %v2319
      %v2384 = vpack.c.b16 %v2324, %v2322
      %v2385 = vpack.c.b16 %v2325, %v2323
      %v2386 = vpack.c.b16 %v2328, %v2326
      %v2387 = vpack.c.b16 %v2329, %v2327
      %v2388 = vpack.c.b16 %v2332, %v2330
      %v2389 = vpack.c.b16 %v2333, %v2331
      %v2390 = vpack.c.b16 %v2336, %v2334
      %v2391 = vpack.c.b16 %v2337, %v2335
      %v2392 = vpack.c.b16 %v2340, %v2338
      %v2393 = vpack.c.b16 %v2341, %v2339
      %v2394 = vpack.c.b16 %v2344, %v2342
      %v2395 = vpack.c.b16 %v2345, %v2343
      %v2396 = vpack.c.b16 %v2348, %v2346
      %v2397 = vpack.c.b16 %v2349, %v2347
      %v2398 = vpack.c.b16 %v2352, %v2350
      %v2399 = vpack.c.b16 %v2353, %v2351
      %v2400 = vpack.c.b16 %v2356, %v2354
      %v2401 = vpack.c.b16 %v2357, %v2355
      %v2402 = vpack.c.b16 %v2360, %v2358
      %v2403 = vpack.c.b16 %v2361, %v2359
      %v2404 = vpack.c.b16 %v2364, %v2362
      %v2405 = vpack.c.b16 %v2365, %v2363
      %v2406 = vpack.c.b16 %v2368, %v2366
      %v2407 = vpack.c.b16 %v2369, %v2367
      %v2408 = vpack.c.b16 %v2372, %v2370
      %v2409 = vpack.c.b16 %v2373, %v2371
      %v2410 = vpack.c.b16 %v2376, %v2374
      %v2411 = vpack.c.b16 %v2377, %v2375
      %v2412 = vpack.c.b16 %v2380, %v2378
      %v2413 = vpack.c.b16 %v2381, %v2379
      %2446 = vmatprep.subr.bf16.mxu0 %v2383
      %2447 = vmatpush1.bf16.msra.mxu0 %v2382
      %2448 = vmatprep.subr.bf16.mxu0 %v2385
      %2449 = vmatpush1.bf16.msra.mxu0 %v2384
      %2450 = vmatprep.subr.bf16.mxu0 %v2387
      %2451 = vmatpush1.bf16.msra.mxu0 %v2386
      %2452 = vmatprep.subr.bf16.mxu0 %v2389
      %2453 = vmatpush1.bf16.msra.mxu0 %v2388
      %2454 = vmatprep.subr.bf16.mxu0 %v2391
      %2455 = vmatpush1.bf16.msra.mxu0 %v2390
      %2456 = vmatprep.subr.bf16.mxu0 %v2393
      %2457 = vmatpush1.bf16.msra.mxu0 %v2392
      %2458 = vmatprep.subr.bf16.mxu0 %v2395
      %2459 = vmatpush1.bf16.msra.mxu0 %v2394
      %2460 = vmatprep.subr.bf16.mxu0 %v2397
      %2461 = vmatpush1.bf16.msra.mxu0 %v2396
      %2462 = vmatprep.subr.bf16.mxu0 %v2399
      %2463 = vmatpush1.bf16.msra.mxu0 %v2398
      %2464 = vmatprep.subr.bf16.mxu0 %v2401
      %2465 = vmatpush1.bf16.msra.mxu0 %v2400
      %2466 = vmatprep.subr.bf16.mxu0 %v2403
      %2467 = vmatpush1.bf16.msra.mxu0 %v2402
      %2468 = vmatprep.subr.bf16.mxu0 %v2405
      %2469 = vmatpush1.bf16.msra.mxu0 %v2404
      %2470 = vmatprep.subr.bf16.mxu0 %v2407
      %2471 = vmatpush1.bf16.msra.mxu0 %v2406
      %2472 = vmatprep.subr.bf16.mxu0 %v2409
      %2473 = vmatpush1.bf16.msra.mxu0 %v2408
      %2474 = vmatprep.subr.bf16.mxu0 %v2411
      %2475 = vmatpush1.bf16.msra.mxu0 %v2410
      %2476 = vmatprep.subr.bf16.mxu0 %v2413
      %2477 = vmatpush1.bf16.msra.mxu0 %v2412
      %2478 = vmatprep.mubr.bf16.mxu0 %v2239
      %2479 = vmatmul.mubr.bf16.gmra.mrb[0].mxu0 %v2238
      %v2480 = vpop.f32.mrb[0].mxu0
      %v2481 = vadd.f32 %v2279, %v2480
      %v2482 = vpop.f32.mrb[0].mxu0
      %v2483 = vadd.f32 %v2283, %v2482
      %v2484 = vpop.f32.mrb[0].mxu0
      %v2485 = vpop.f32.mrb[0].mxu0
      %2486 = vdwg.mxu0
      %v2487 = vmul.f32 %v2481, 0.01
      %v2488 = vmul.f32 %v2483, 0.01
      %v2489 = vmax.f32 %v2481, %v2487
      %v2490 = vmax.f32 %v2483, %v2488
      %v2491 = vpack.c.bf16 %v2489, %v2489
      %v2492 = vpack.c.bf16 %v2490, %v2490
      %s2493 = scalar_lea.vmem %s726, 1280
      %v2494 = vld [vmem:[%s2493] sm:$0xff]
      %v2495 = vld [vmem:[%s2493 + $0x8] sm:$0xff]
      %v2496 = vld [vmem:[%s2493 + $0x10] sm:$0xff]
      %v2497 = vld [vmem:[%s2493 + $0x18] sm:$0xff]
      %v2498 = vld [vmem:[%s2493 + $0x20] sm:$0xff]
      %v2499 = vld [vmem:[%s2493 + $0x28] sm:$0xff]
      %v2500 = vld [vmem:[%s2493 + $0x30] sm:$0xff]
      %v2501 = vld [vmem:[%s2493 + $0x38] sm:$0xff]
      %v2502 = vld [vmem:[%s2493 + $0x40] sm:$0xff]
      %v2503 = vld [vmem:[%s2493 + $0x48] sm:$0xff]
      %v2504 = vld [vmem:[%s2493 + $0x50] sm:$0xff]
      %v2505 = vld [vmem:[%s2493 + $0x58] sm:$0xff]
      %v2506 = vld [vmem:[%s2493 + $0x60] sm:$0xff]
      %v2507 = vld [vmem:[%s2493 + $0x68] sm:$0xff]
      %v2508 = vld [vmem:[%s2493 + $0x70] sm:$0xff]
      %v2509 = vld [vmem:[%s2493 + $0x78] sm:$0xff]
      %v2510 = vld [vmem:[%s2493 + $0x80] sm:$0xff]
      %v2511 = vld [vmem:[%s2493 + $0x88] sm:$0xff]
      %v2512 = vld [vmem:[%s2493 + $0x90] sm:$0xff]
      %v2513 = vld [vmem:[%s2493 + $0x98] sm:$0xff]
      %v2514 = vld [vmem:[%s2493 + $0xa0] sm:$0xff]
      %v2515 = vld [vmem:[%s2493 + $0xa8] sm:$0xff]
      %v2516 = vld [vmem:[%s2493 + $0xb0] sm:$0xff]
      %v2517 = vld [vmem:[%s2493 + $0xb8] sm:$0xff]
      %v2518 = vld [vmem:[%s2493 + $0xc0] sm:$0xff]
      %v2519 = vld [vmem:[%s2493 + $0xc8] sm:$0xff]
      %v2520 = vld [vmem:[%s2493 + $0xd0] sm:$0xff]
      %v2521 = vld [vmem:[%s2493 + $0xd8] sm:$0xff]
      %v2522 = vld [vmem:[%s2493 + $0xe0] sm:$0xff]
      %v2523 = vld [vmem:[%s2493 + $0xe8] sm:$0xff]
      %v2524 = vld [vmem:[%s2493 + $0xf0] sm:$0xff]
      %v2525 = vld [vmem:[%s2493 + $0xf8] sm:$0xff]
      %s2526 = scalar_lea.vmem %s730, 10
      %v2527 = vld [vmem:[%s2526] sm:$0x3]
      %v2529 = vlaneseq
      %v2530 = vshrl.u32 %v2529, 7
      %v2531 = vsub.s32 0, %v2530
      %v2532 = vrot.slane %v2527, %v2531
      %v2533 = vlaneseq
      %v2534 = vshrl.u32 %v2533, 7
      %v2535 = vsub.s32 1, %v2534
      %v2536 = vrot.slane %v2527, %v2535
      %v2571 = vunpack.c.l.b16 %v2494
      %v2572 = vunpack.c.h.b16 %v2494
      %v2573 = vunpack.c.l.b16 %v2495
      %v2574 = vunpack.c.h.b16 %v2495
      %v2575 = vunpack.c.l.b16 %v2496
      %v2576 = vunpack.c.h.b16 %v2496
      %v2577 = vunpack.c.l.b16 %v2497
      %v2578 = vunpack.c.h.b16 %v2497
      %v2579 = vunpack.c.l.b16 %v2498
      %v2580 = vunpack.c.h.b16 %v2498
      %v2581 = vunpack.c.l.b16 %v2499
      %v2582 = vunpack.c.h.b16 %v2499
      %v2583 = vunpack.c.l.b16 %v2500
      %v2584 = vunpack.c.h.b16 %v2500
      %v2585 = vunpack.c.l.b16 %v2501
      %v2586 = vunpack.c.h.b16 %v2501
      %v2587 = vunpack.c.l.b16 %v2502
      %v2588 = vunpack.c.h.b16 %v2502
      %v2589 = vunpack.c.l.b16 %v2503
      %v2590 = vunpack.c.h.b16 %v2503
      %v2591 = vunpack.c.l.b16 %v2504
      %v2592 = vunpack.c.h.b16 %v2504
      %v2593 = vunpack.c.l.b16 %v2505
      %v2594 = vunpack.c.h.b16 %v2505
      %v2595 = vunpack.c.l.b16 %v2506
      %v2596 = vunpack.c.h.b16 %v2506
      %v2597 = vunpack.c.l.b16 %v2507
      %v2598 = vunpack.c.h.b16 %v2507
      %v2599 = vunpack.c.l.b16 %v2508
      %v2600 = vunpack.c.h.b16 %v2508
      %v2601 = vunpack.c.l.b16 %v2509
      %v2602 = vunpack.c.h.b16 %v2509
      %v2603 = vunpack.c.l.b16 %v2510
      %v2604 = vunpack.c.h.b16 %v2510
      %v2605 = vunpack.c.l.b16 %v2511
      %v2606 = vunpack.c.h.b16 %v2511
      %v2607 = vunpack.c.l.b16 %v2512
      %v2608 = vunpack.c.h.b16 %v2512
      %v2609 = vunpack.c.l.b16 %v2513
      %v2610 = vunpack.c.h.b16 %v2513
      %v2611 = vunpack.c.l.b16 %v2514
      %v2612 = vunpack.c.h.b16 %v2514
      %v2613 = vunpack.c.l.b16 %v2515
      %v2614 = vunpack.c.h.b16 %v2515
      %v2615 = vunpack.c.l.b16 %v2516
      %v2616 = vunpack.c.h.b16 %v2516
      %v2617 = vunpack.c.l.b16 %v2517
      %v2618 = vunpack.c.h.b16 %v2517
      %v2619 = vunpack.c.l.b16 %v2518
      %v2620 = vunpack.c.h.b16 %v2518
      %v2621 = vunpack.c.l.b16 %v2519
      %v2622 = vunpack.c.h.b16 %v2519
      %v2623 = vunpack.c.l.b16 %v2520
      %v2624 = vunpack.c.h.b16 %v2520
      %v2625 = vunpack.c.l.b16 %v2521
      %v2626 = vunpack.c.h.b16 %v2521
      %v2627 = vunpack.c.l.b16 %v2522
      %v2628 = vunpack.c.h.b16 %v2522
      %v2629 = vunpack.c.l.b16 %v2523
      %v2630 = vunpack.c.h.b16 %v2523
      %v2631 = vunpack.c.l.b16 %v2524
      %v2632 = vunpack.c.h.b16 %v2524
      %v2633 = vunpack.c.l.b16 %v2525
      %v2634 = vunpack.c.h.b16 %v2525
      %v2635 = vpack.c.b16 %v2573, %v2571
      %v2636 = vpack.c.b16 %v2574, %v2572
      %v2637 = vpack.c.b16 %v2577, %v2575
      %v2638 = vpack.c.b16 %v2578, %v2576
      %v2639 = vpack.c.b16 %v2581, %v2579
      %v2640 = vpack.c.b16 %v2582, %v2580
      %v2641 = vpack.c.b16 %v2585, %v2583
      %v2642 = vpack.c.b16 %v2586, %v2584
      %v2643 = vpack.c.b16 %v2589, %v2587
      %v2644 = vpack.c.b16 %v2590, %v2588
      %v2645 = vpack.c.b16 %v2593, %v2591
      %v2646 = vpack.c.b16 %v2594, %v2592
      %v2647 = vpack.c.b16 %v2597, %v2595
      %v2648 = vpack.c.b16 %v2598, %v2596
      %v2649 = vpack.c.b16 %v2601, %v2599
      %v2650 = vpack.c.b16 %v2602, %v2600
      %v2651 = vpack.c.b16 %v2605, %v2603
      %v2652 = vpack.c.b16 %v2606, %v2604
      %v2653 = vpack.c.b16 %v2609, %v2607
      %v2654 = vpack.c.b16 %v2610, %v2608
      %v2655 = vpack.c.b16 %v2613, %v2611
      %v2656 = vpack.c.b16 %v2614, %v2612
      %v2657 = vpack.c.b16 %v2617, %v2615
      %v2658 = vpack.c.b16 %v2618, %v2616
      %v2659 = vpack.c.b16 %v2621, %v2619
      %v2660 = vpack.c.b16 %v2622, %v2620
      %v2661 = vpack.c.b16 %v2625, %v2623
      %v2662 = vpack.c.b16 %v2626, %v2624
      %v2663 = vpack.c.b16 %v2629, %v2627
      %v2664 = vpack.c.b16 %v2630, %v2628
      %v2665 = vpack.c.b16 %v2633, %v2631
      %v2666 = vpack.c.b16 %v2634, %v2632
      %2699 = vmatprep.subr.bf16.mxu0 %v2636
      %2700 = vmatpush1.bf16.msra.mxu0 %v2635
      %2701 = vmatprep.subr.bf16.mxu0 %v2638
      %2702 = vmatpush1.bf16.msra.mxu0 %v2637
      %2703 = vmatprep.subr.bf16.mxu0 %v2640
      %2704 = vmatpush1.bf16.msra.mxu0 %v2639
      %2705 = vmatprep.subr.bf16.mxu0 %v2642
      %2706 = vmatpush1.bf16.msra.mxu0 %v2641
      %2707 = vmatprep.subr.bf16.mxu0 %v2644
      %2708 = vmatpush1.bf16.msra.mxu0 %v2643
      %2709 = vmatprep.subr.bf16.mxu0 %v2646
      %2710 = vmatpush1.bf16.msra.mxu0 %v2645
      %2711 = vmatprep.subr.bf16.mxu0 %v2648
      %2712 = vmatpush1.bf16.msra.mxu0 %v2647
      %2713 = vmatprep.subr.bf16.mxu0 %v2650
      %2714 = vmatpush1.bf16.msra.mxu0 %v2649
      %2715 = vmatprep.subr.bf16.mxu0 %v2652
      %2716 = vmatpush1.bf16.msra.mxu0 %v2651
      %2717 = vmatprep.subr.bf16.mxu0 %v2654
      %2718 = vmatpush1.bf16.msra.mxu0 %v2653
      %2719 = vmatprep.subr.bf16.mxu0 %v2656
      %2720 = vmatpush1.bf16.msra.mxu0 %v2655
      %2721 = vmatprep.subr.bf16.mxu0 %v2658
      %2722 = vmatpush1.bf16.msra.mxu0 %v2657
      %2723 = vmatprep.subr.bf16.mxu0 %v2660
      %2724 = vmatpush1.bf16.msra.mxu0 %v2659
      %2725 = vmatprep.subr.bf16.mxu0 %v2662
      %2726 = vmatpush1.bf16.msra.mxu0 %v2661
      %2727 = vmatprep.subr.bf16.mxu0 %v2664
      %2728 = vmatpush1.bf16.msra.mxu0 %v2663
      %2729 = vmatprep.subr.bf16.mxu0 %v2666
      %2730 = vmatpush1.bf16.msra.mxu0 %v2665
      %2731 = vmatprep.mubr.bf16.mxu0 %v2492
      %2732 = vmatmul.mubr.bf16.gmra.mrb[0].mxu0 %v2491
      %v2733 = vpop.f32.mrb[0].mxu0
      %v2734 = vadd.f32 %v2532, %v2733
      %v2735 = vpop.f32.mrb[0].mxu0
      %v2736 = vadd.f32 %v2536, %v2735
      %v2737 = vpop.f32.mrb[0].mxu0
      %v2738 = vpop.f32.mrb[0].mxu0
      %2739 = vdwg.mxu0
      %v2740 = vmul.f32 %v2734, 0.01
      %v2741 = vmul.f32 %v2736, 0.01
      %v2742 = vmax.f32 %v2734, %v2740
      %v2743 = vmax.f32 %v2736, %v2741
      %v2744 = vpack.c.bf16 %v2742, %v2742
      %v2745 = vpack.c.bf16 %v2743, %v2743
      %s2746 = scalar_lea.vmem %s726, 1536
      %v2747 = vld [vmem:[%s2746] sm:$0xff]
      %v2748 = vld [vmem:[%s2746 + $0x8] sm:$0xff]
      %v2749 = vld [vmem:[%s2746 + $0x10] sm:$0xff]
      %v2750 = vld [vmem:[%s2746 + $0x18] sm:$0xff]
      %v2751 = vld [vmem:[%s2746 + $0x20] sm:$0xff]
      %v2752 = vld [vmem:[%s2746 + $0x28] sm:$0xff]
      %v2753 = vld [vmem:[%s2746 + $0x30] sm:$0xff]
      %v2754 = vld [vmem:[%s2746 + $0x38] sm:$0xff]
      %v2755 = vld [vmem:[%s2746 + $0x40] sm:$0xff]
      %v2756 = vld [vmem:[%s2746 + $0x48] sm:$0xff]
      %v2757 = vld [vmem:[%s2746 + $0x50] sm:$0xff]
      %v2758 = vld [vmem:[%s2746 + $0x58] sm:$0xff]
      %v2759 = vld [vmem:[%s2746 + $0x60] sm:$0xff]
      %v2760 = vld [vmem:[%s2746 + $0x68] sm:$0xff]
      %v2761 = vld [vmem:[%s2746 + $0x70] sm:$0xff]
      %v2762 = vld [vmem:[%s2746 + $0x78] sm:$0xff]
      %v2763 = vld [vmem:[%s2746 + $0x80] sm:$0xff]
      %v2764 = vld [vmem:[%s2746 + $0x88] sm:$0xff]
      %v2765 = vld [vmem:[%s2746 + $0x90] sm:$0xff]
      %v2766 = vld [vmem:[%s2746 + $0x98] sm:$0xff]
      %v2767 = vld [vmem:[%s2746 + $0xa0] sm:$0xff]
      %v2768 = vld [vmem:[%s2746 + $0xa8] sm:$0xff]
      %v2769 = vld [vmem:[%s2746 + $0xb0] sm:$0xff]
      %v2770 = vld [vmem:[%s2746 + $0xb8] sm:$0xff]
      %v2771 = vld [vmem:[%s2746 + $0xc0] sm:$0xff]
      %v2772 = vld [vmem:[%s2746 + $0xc8] sm:$0xff]
      %v2773 = vld [vmem:[%s2746 + $0xd0] sm:$0xff]
      %v2774 = vld [vmem:[%s2746 + $0xd8] sm:$0xff]
      %v2775 = vld [vmem:[%s2746 + $0xe0] sm:$0xff]
      %v2776 = vld [vmem:[%s2746 + $0xe8] sm:$0xff]
      %v2777 = vld [vmem:[%s2746 + $0xf0] sm:$0xff]
      %v2778 = vld [vmem:[%s2746 + $0xf8] sm:$0xff]
      %s2779 = scalar_lea.vmem %s730, 12
      %v2780 = vld [vmem:[%s2779] sm:$0x3]
      %v2782 = vlaneseq
      %v2783 = vshrl.u32 %v2782, 7
      %v2784 = vsub.s32 0, %v2783
      %v2785 = vrot.slane %v2780, %v2784
      %v2786 = vlaneseq
      %v2787 = vshrl.u32 %v2786, 7
      %v2788 = vsub.s32 1, %v2787
      %v2789 = vrot.slane %v2780, %v2788
      %v2824 = vunpack.c.l.b16 %v2747
      %v2825 = vunpack.c.h.b16 %v2747
      %v2826 = vunpack.c.l.b16 %v2748
      %v2827 = vunpack.c.h.b16 %v2748
      %v2828 = vunpack.c.l.b16 %v2749
      %v2829 = vunpack.c.h.b16 %v2749
      %v2830 = vunpack.c.l.b16 %v2750
      %v2831 = vunpack.c.h.b16 %v2750
      %v2832 = vunpack.c.l.b16 %v2751
      %v2833 = vunpack.c.h.b16 %v2751
      %v2834 = vunpack.c.l.b16 %v2752
      %v2835 = vunpack.c.h.b16 %v2752
      %v2836 = vunpack.c.l.b16 %v2753
      %v2837 = vunpack.c.h.b16 %v2753
      %v2838 = vunpack.c.l.b16 %v2754
      %v2839 = vunpack.c.h.b16 %v2754
      %v2840 = vunpack.c.l.b16 %v2755
      %v2841 = vunpack.c.h.b16 %v2755
      %v2842 = vunpack.c.l.b16 %v2756
      %v2843 = vunpack.c.h.b16 %v2756
      %v2844 = vunpack.c.l.b16 %v2757
      %v2845 = vunpack.c.h.b16 %v2757
      %v2846 = vunpack.c.l.b16 %v2758
      %v2847 = vunpack.c.h.b16 %v2758
      %v2848 = vunpack.c.l.b16 %v2759
      %v2849 = vunpack.c.h.b16 %v2759
      %v2850 = vunpack.c.l.b16 %v2760
      %v2851 = vunpack.c.h.b16 %v2760
      %v2852 = vunpack.c.l.b16 %v2761
      %v2853 = vunpack.c.h.b16 %v2761
      %v2854 = vunpack.c.l.b16 %v2762
      %v2855 = vunpack.c.h.b16 %v2762
      %v2856 = vunpack.c.l.b16 %v2763
      %v2857 = vunpack.c.h.b16 %v2763
      %v2858 = vunpack.c.l.b16 %v2764
      %v2859 = vunpack.c.h.b16 %v2764
      %v2860 = vunpack.c.l.b16 %v2765
      %v2861 = vunpack.c.h.b16 %v2765
      %v2862 = vunpack.c.l.b16 %v2766
      %v2863 = vunpack.c.h.b16 %v2766
      %v2864 = vunpack.c.l.b16 %v2767
      %v2865 = vunpack.c.h.b16 %v2767
      %v2866 = vunpack.c.l.b16 %v2768
      %v2867 = vunpack.c.h.b16 %v2768
      %v2868 = vunpack.c.l.b16 %v2769
      %v2869 = vunpack.c.h.b16 %v2769
      %v2870 = vunpack.c.l.b16 %v2770
      %v2871 = vunpack.c.h.b16 %v2770
      %v2872 = vunpack.c.l.b16 %v2771
      %v2873 = vunpack.c.h.b16 %v2771
      %v2874 = vunpack.c.l.b16 %v2772
      %v2875 = vunpack.c.h.b16 %v2772
      %v2876 = vunpack.c.l.b16 %v2773
      %v2877 = vunpack.c.h.b16 %v2773
      %v2878 = vunpack.c.l.b16 %v2774
      %v2879 = vunpack.c.h.b16 %v2774
      %v2880 = vunpack.c.l.b16 %v2775
      %v2881 = vunpack.c.h.b16 %v2775
      %v2882 = vunpack.c.l.b16 %v2776
      %v2883 = vunpack.c.h.b16 %v2776
      %v2884 = vunpack.c.l.b16 %v2777
      %v2885 = vunpack.c.h.b16 %v2777
      %v2886 = vunpack.c.l.b16 %v2778
      %v2887 = vunpack.c.h.b16 %v2778
      %v2888 = vpack.c.b16 %v2826, %v2824
      %v2889 = vpack.c.b16 %v2827, %v2825
      %v2890 = vpack.c.b16 %v2830, %v2828
      %v2891 = vpack.c.b16 %v2831, %v2829
      %v2892 = vpack.c.b16 %v2834, %v2832
      %v2893 = vpack.c.b16 %v2835, %v2833
      %v2894 = vpack.c.b16 %v2838, %v2836
      %v2895 = vpack.c.b16 %v2839, %v2837
      %v2896 = vpack.c.b16 %v2842, %v2840
      %v2897 = vpack.c.b16 %v2843, %v2841
      %v2898 = vpack.c.b16 %v2846, %v2844
      %v2899 = vpack.c.b16 %v2847, %v2845
      %v2900 = vpack.c.b16 %v2850, %v2848
      %v2901 = vpack.c.b16 %v2851, %v2849
      %v2902 = vpack.c.b16 %v2854, %v2852
      %v2903 = vpack.c.b16 %v2855, %v2853
      %v2904 = vpack.c.b16 %v2858, %v2856
      %v2905 = vpack.c.b16 %v2859, %v2857
      %v2906 = vpack.c.b16 %v2862, %v2860
      %v2907 = vpack.c.b16 %v2863, %v2861
      %v2908 = vpack.c.b16 %v2866, %v2864
      %v2909 = vpack.c.b16 %v2867, %v2865
      %v2910 = vpack.c.b16 %v2870, %v2868
      %v2911 = vpack.c.b16 %v2871, %v2869
      %v2912 = vpack.c.b16 %v2874, %v2872
      %v2913 = vpack.c.b16 %v2875, %v2873
      %v2914 = vpack.c.b16 %v2878, %v2876
      %v2915 = vpack.c.b16 %v2879, %v2877
      %v2916 = vpack.c.b16 %v2882, %v2880
      %v2917 = vpack.c.b16 %v2883, %v2881
      %v2918 = vpack.c.b16 %v2886, %v2884
      %v2919 = vpack.c.b16 %v2887, %v2885
      %2952 = vmatprep.subr.bf16.mxu0 %v2889
      %2953 = vmatpush1.bf16.msra.mxu0 %v2888
      %2954 = vmatprep.subr.bf16.mxu0 %v2891
      %2955 = vmatpush1.bf16.msra.mxu0 %v2890
      %2956 = vmatprep.subr.bf16.mxu0 %v2893
      %2957 = vmatpush1.bf16.msra.mxu0 %v2892
      %2958 = vmatprep.subr.bf16.mxu0 %v2895
      %2959 = vmatpush1.bf16.msra.mxu0 %v2894
      %2960 = vmatprep.subr.bf16.mxu0 %v2897
      %2961 = vmatpush1.bf16.msra.mxu0 %v2896
      %2962 = vmatprep.subr.bf16.mxu0 %v2899
      %2963 = vmatpush1.bf16.msra.mxu0 %v2898
      %2964 = vmatprep.subr.bf16.mxu0 %v2901
      %2965 = vmatpush1.bf16.msra.mxu0 %v2900
      %2966 = vmatprep.subr.bf16.mxu0 %v2903
      %2967 = vmatpush1.bf16.msra.mxu0 %v2902
      %2968 = vmatprep.subr.bf16.mxu0 %v2905
      %2969 = vmatpush1.bf16.msra.mxu0 %v2904
      %2970 = vmatprep.subr.bf16.mxu0 %v2907
      %2971 = vmatpush1.bf16.msra.mxu0 %v2906
      %2972 = vmatprep.subr.bf16.mxu0 %v2909
      %2973 = vmatpush1.bf16.msra.mxu0 %v2908
      %2974 = vmatprep.subr.bf16.mxu0 %v2911
      %2975 = vmatpush1.bf16.msra.mxu0 %v2910
      %2976 = vmatprep.subr.bf16.mxu0 %v2913
      %2977 = vmatpush1.bf16.msra.mxu0 %v2912
      %2978 = vmatprep.subr.bf16.mxu0 %v2915
      %2979 = vmatpush1.bf16.msra.mxu0 %v2914
      %2980 = vmatprep.subr.bf16.mxu0 %v2917
      %2981 = vmatpush1.bf16.msra.mxu0 %v2916
      %2982 = vmatprep.subr.bf16.mxu0 %v2919
      %2983 = vmatpush1.bf16.msra.mxu0 %v2918
      %2984 = vmatprep.mubr.bf16.mxu0 %v2745
      %2985 = vmatmul.mubr.bf16.gmra.mrb[0].mxu0 %v2744
      %v2986 = vpop.f32.mrb[0].mxu0
      %v2987 = vadd.f32 %v2785, %v2986
      %v2988 = vpop.f32.mrb[0].mxu0
      %v2989 = vadd.f32 %v2789, %v2988
      %v2990 = vpop.f32.mrb[0].mxu0
      %v2991 = vpop.f32.mrb[0].mxu0
      %2992 = vdwg.mxu0
      %v2993 = vmul.f32 %v2987, 0.01
      %v2994 = vmul.f32 %v2989, 0.01
      %v2995 = vmax.f32 %v2987, %v2993
      %v2996 = vmax.f32 %v2989, %v2994
      %v2997 = vpack.c.bf16 %v2995, %v2995
      %v2998 = vpack.c.bf16 %v2996, %v2996
      %s2999 = scalar_lea.vmem %s726, 1792
      %v3000 = vld [vmem:[%s2999] sm:$0xff]
      %v3001 = vld [vmem:[%s2999 + $0x8] sm:$0xff]
      %v3002 = vld [vmem:[%s2999 + $0x10] sm:$0xff]
      %v3003 = vld [vmem:[%s2999 + $0x18] sm:$0xff]
      %v3004 = vld [vmem:[%s2999 + $0x20] sm:$0xff]
      %v3005 = vld [vmem:[%s2999 + $0x28] sm:$0xff]
      %v3006 = vld [vmem:[%s2999 + $0x30] sm:$0xff]
      %v3007 = vld [vmem:[%s2999 + $0x38] sm:$0xff]
      %v3008 = vld [vmem:[%s2999 + $0x40] sm:$0xff]
      %v3009 = vld [vmem:[%s2999 + $0x48] sm:$0xff]
      %v3010 = vld [vmem:[%s2999 + $0x50] sm:$0xff]
      %v3011 = vld [vmem:[%s2999 + $0x58] sm:$0xff]
      %v3012 = vld [vmem:[%s2999 + $0x60] sm:$0xff]
      %v3013 = vld [vmem:[%s2999 + $0x68] sm:$0xff]
      %v3014 = vld [vmem:[%s2999 + $0x70] sm:$0xff]
      %v3015 = vld [vmem:[%s2999 + $0x78] sm:$0xff]
      %v3016 = vld [vmem:[%s2999 + $0x80] sm:$0xff]
      %v3017 = vld [vmem:[%s2999 + $0x88] sm:$0xff]
      %v3018 = vld [vmem:[%s2999 + $0x90] sm:$0xff]
      %v3019 = vld [vmem:[%s2999 + $0x98] sm:$0xff]
      %v3020 = vld [vmem:[%s2999 + $0xa0] sm:$0xff]
      %v3021 = vld [vmem:[%s2999 + $0xa8] sm:$0xff]
      %v3022 = vld [vmem:[%s2999 + $0xb0] sm:$0xff]
      %v3023 = vld [vmem:[%s2999 + $0xb8] sm:$0xff]
      %v3024 = vld [vmem:[%s2999 + $0xc0] sm:$0xff]
      %v3025 = vld [vmem:[%s2999 + $0xc8] sm:$0xff]
      %v3026 = vld [vmem:[%s2999 + $0xd0] sm:$0xff]
      %v3027 = vld [vmem:[%s2999 + $0xd8] sm:$0xff]
      %v3028 = vld [vmem:[%s2999 + $0xe0] sm:$0xff]
      %v3029 = vld [vmem:[%s2999 + $0xe8] sm:$0xff]
      %v3030 = vld [vmem:[%s2999 + $0xf0] sm:$0xff]
      %v3031 = vld [vmem:[%s2999 + $0xf8] sm:$0xff]
      %s3032 = scalar_lea.vmem %s730, 14
      %v3033 = vld [vmem:[%s3032] sm:$0x3]
      %v3035 = vlaneseq
      %v3036 = vshrl.u32 %v3035, 7
      %v3037 = vsub.s32 0, %v3036
      %v3038 = vrot.slane %v3033, %v3037
      %v3039 = vlaneseq
      %v3040 = vshrl.u32 %v3039, 7
      %v3041 = vsub.s32 1, %v3040
      %v3042 = vrot.slane %v3033, %v3041
      %v3077 = vunpack.c.l.b16 %v3000
      %v3078 = vunpack.c.h.b16 %v3000
      %v3079 = vunpack.c.l.b16 %v3001
      %v3080 = vunpack.c.h.b16 %v3001
      %v3081 = vunpack.c.l.b16 %v3002
      %v3082 = vunpack.c.h.b16 %v3002
      %v3083 = vunpack.c.l.b16 %v3003
      %v3084 = vunpack.c.h.b16 %v3003
      %v3085 = vunpack.c.l.b16 %v3004
      %v3086 = vunpack.c.h.b16 %v3004
      %v3087 = vunpack.c.l.b16 %v3005
      %v3088 = vunpack.c.h.b16 %v3005
      %v3089 = vunpack.c.l.b16 %v3006
      %v3090 = vunpack.c.h.b16 %v3006
      %v3091 = vunpack.c.l.b16 %v3007
      %v3092 = vunpack.c.h.b16 %v3007
      %v3093 = vunpack.c.l.b16 %v3008
      %v3094 = vunpack.c.h.b16 %v3008
      %v3095 = vunpack.c.l.b16 %v3009
      %v3096 = vunpack.c.h.b16 %v3009
      %v3097 = vunpack.c.l.b16 %v3010
      %v3098 = vunpack.c.h.b16 %v3010
      %v3099 = vunpack.c.l.b16 %v3011
      %v3100 = vunpack.c.h.b16 %v3011
      %v3101 = vunpack.c.l.b16 %v3012
      %v3102 = vunpack.c.h.b16 %v3012
      %v3103 = vunpack.c.l.b16 %v3013
      %v3104 = vunpack.c.h.b16 %v3013
      %v3105 = vunpack.c.l.b16 %v3014
      %v3106 = vunpack.c.h.b16 %v3014
      %v3107 = vunpack.c.l.b16 %v3015
      %v3108 = vunpack.c.h.b16 %v3015
      %v3109 = vunpack.c.l.b16 %v3016
      %v3110 = vunpack.c.h.b16 %v3016
      %v3111 = vunpack.c.l.b16 %v3017
      %v3112 = vunpack.c.h.b16 %v3017
      %v3113 = vunpack.c.l.b16 %v3018
      %v3114 = vunpack.c.h.b16 %v3018
      %v3115 = vunpack.c.l.b16 %v3019
      %v3116 = vunpack.c.h.b16 %v3019
      %v3117 = vunpack.c.l.b16 %v3020
      %v3118 = vunpack.c.h.b16 %v3020
      %v3119 = vunpack.c.l.b16 %v3021
      %v3120 = vunpack.c.h.b16 %v3021
      %v3121 = vunpack.c.l.b16 %v3022
      %v3122 = vunpack.c.h.b16 %v3022
      %v3123 = vunpack.c.l.b16 %v3023
      %v3124 = vunpack.c.h.b16 %v3023
      %v3125 = vunpack.c.l.b16 %v3024
      %v3126 = vunpack.c.h.b16 %v3024
      %v3127 = vunpack.c.l.b16 %v3025
      %v3128 = vunpack.c.h.b16 %v3025
      %v3129 = vunpack.c.l.b16 %v3026
      %v3130 = vunpack.c.h.b16 %v3026
      %v3131 = vunpack.c.l.b16 %v3027
      %v3132 = vunpack.c.h.b16 %v3027
      %v3133 = vunpack.c.l.b16 %v3028
      %v3134 = vunpack.c.h.b16 %v3028
      %v3135 = vunpack.c.l.b16 %v3029
      %v3136 = vunpack.c.h.b16 %v3029
      %v3137 = vunpack.c.l.b16 %v3030
      %v3138 = vunpack.c.h.b16 %v3030
      %v3139 = vunpack.c.l.b16 %v3031
      %v3140 = vunpack.c.h.b16 %v3031
      %v3141 = vpack.c.b16 %v3079, %v3077
      %v3142 = vpack.c.b16 %v3080, %v3078
      %v3143 = vpack.c.b16 %v3083, %v3081
      %v3144 = vpack.c.b16 %v3084, %v3082
      %v3145 = vpack.c.b16 %v3087, %v3085
      %v3146 = vpack.c.b16 %v3088, %v3086
      %v3147 = vpack.c.b16 %v3091, %v3089
      %v3148 = vpack.c.b16 %v3092, %v3090
      %v3149 = vpack.c.b16 %v3095, %v3093
      %v3150 = vpack.c.b16 %v3096, %v3094
      %v3151 = vpack.c.b16 %v3099, %v3097
      %v3152 = vpack.c.b16 %v3100, %v3098
      %v3153 = vpack.c.b16 %v3103, %v3101
      %v3154 = vpack.c.b16 %v3104, %v3102
      %v3155 = vpack.c.b16 %v3107, %v3105
      %v3156 = vpack.c.b16 %v3108, %v3106
      %v3157 = vpack.c.b16 %v3111, %v3109
      %v3158 = vpack.c.b16 %v3112, %v3110
      %v3159 = vpack.c.b16 %v3115, %v3113
      %v3160 = vpack.c.b16 %v3116, %v3114
      %v3161 = vpack.c.b16 %v3119, %v3117
      %v3162 = vpack.c.b16 %v3120, %v3118
      %v3163 = vpack.c.b16 %v3123, %v3121
      %v3164 = vpack.c.b16 %v3124, %v3122
      %v3165 = vpack.c.b16 %v3127, %v3125
      %v3166 = vpack.c.b16 %v3128, %v3126
      %v3167 = vpack.c.b16 %v3131, %v3129
      %v3168 = vpack.c.b16 %v3132, %v3130
      %v3169 = vpack.c.b16 %v3135, %v3133
      %v3170 = vpack.c.b16 %v3136, %v3134
      %v3171 = vpack.c.b16 %v3139, %v3137
      %v3172 = vpack.c.b16 %v3140, %v3138
      %3205 = vmatprep.subr.bf16.mxu0 %v3142
      %3206 = vmatpush1.bf16.msra.mxu0 %v3141
      %3207 = vmatprep.subr.bf16.mxu0 %v3144
      %3208 = vmatpush1.bf16.msra.mxu0 %v3143
      %3209 = vmatprep.subr.bf16.mxu0 %v3146
      %3210 = vmatpush1.bf16.msra.mxu0 %v3145
      %3211 = vmatprep.subr.bf16.mxu0 %v3148
      %3212 = vmatpush1.bf16.msra.mxu0 %v3147
      %3213 = vmatprep.subr.bf16.mxu0 %v3150
      %3214 = vmatpush1.bf16.msra.mxu0 %v3149
      %3215 = vmatprep.subr.bf16.mxu0 %v3152
      %3216 = vmatpush1.bf16.msra.mxu0 %v3151
      %3217 = vmatprep.subr.bf16.mxu0 %v3154
      %3218 = vmatpush1.bf16.msra.mxu0 %v3153
      %3219 = vmatprep.subr.bf16.mxu0 %v3156
      %3220 = vmatpush1.bf16.msra.mxu0 %v3155
      %3221 = vmatprep.subr.bf16.mxu0 %v3158
      %3222 = vmatpush1.bf16.msra.mxu0 %v3157
      %3223 = vmatprep.subr.bf16.mxu0 %v3160
      %3224 = vmatpush1.bf16.msra.mxu0 %v3159
      %3225 = vmatprep.subr.bf16.mxu0 %v3162
      %3226 = vmatpush1.bf16.msra.mxu0 %v3161
      %3227 = vmatprep.subr.bf16.mxu0 %v3164
      %3228 = vmatpush1.bf16.msra.mxu0 %v3163
      %3229 = vmatprep.subr.bf16.mxu0 %v3166
      %3230 = vmatpush1.bf16.msra.mxu0 %v3165
      %3231 = vmatprep.subr.bf16.mxu0 %v3168
      %3232 = vmatpush1.bf16.msra.mxu0 %v3167
      %3233 = vmatprep.subr.bf16.mxu0 %v3170
      %3234 = vmatpush1.bf16.msra.mxu0 %v3169
      %3235 = vmatprep.subr.bf16.mxu0 %v3172
      %3236 = vmatpush1.bf16.msra.mxu0 %v3171
      %3237 = vmatprep.mubr.bf16.mxu0 %v2998
      %3238 = vmatmul.mubr.bf16.gmra.mrb[0].mxu0 %v2997
      %v3239 = vpop.f32.mrb[0].mxu0
      %v3240 = vadd.f32 %v3038, %v3239
      %v3241 = vpop.f32.mrb[0].mxu0
      %v3242 = vadd.f32 %v3042, %v3241
      %v3243 = vpop.f32.mrb[0].mxu0
      %v3244 = vpop.f32.mrb[0].mxu0
      %3245 = vdwg.mxu0
      %v3246 = vmul.f32 %v3240, 0.01
      %v3247 = vmul.f32 %v3242, 0.01
      %v3248 = vmax.f32 %v3240, %v3246
      %v3249 = vmax.f32 %v3242, %v3247
      %v3250 = vpack.c.bf16 %v3248, %v3248
      %v3251 = vpack.c.bf16 %v3249, %v3249
      %s3252 = scalar_lea.vmem %s726, 2048
      %v3253 = vld [vmem:[%s3252] sm:$0xff]
      %v3254 = vld [vmem:[%s3252 + $0x8] sm:$0xff]
      %v3255 = vld [vmem:[%s3252 + $0x10] sm:$0xff]
      %v3256 = vld [vmem:[%s3252 + $0x18] sm:$0xff]
      %v3257 = vld [vmem:[%s3252 + $0x20] sm:$0xff]
      %v3258 = vld [vmem:[%s3252 + $0x28] sm:$0xff]
      %v3259 = vld [vmem:[%s3252 + $0x30] sm:$0xff]
      %v3260 = vld [vmem:[%s3252 + $0x38] sm:$0xff]
      %v3261 = vld [vmem:[%s3252 + $0x40] sm:$0xff]
      %v3262 = vld [vmem:[%s3252 + $0x48] sm:$0xff]
      %v3263 = vld [vmem:[%s3252 + $0x50] sm:$0xff]
      %v3264 = vld [vmem:[%s3252 + $0x58] sm:$0xff]
      %v3265 = vld [vmem:[%s3252 + $0x60] sm:$0xff]
      %v3266 = vld [vmem:[%s3252 + $0x68] sm:$0xff]
      %v3267 = vld [vmem:[%s3252 + $0x70] sm:$0xff]
      %v3268 = vld [vmem:[%s3252 + $0x78] sm:$0xff]
      %v3269 = vld [vmem:[%s3252 + $0x80] sm:$0xff]
      %v3270 = vld [vmem:[%s3252 + $0x88] sm:$0xff]
      %v3271 = vld [vmem:[%s3252 + $0x90] sm:$0xff]
      %v3272 = vld [vmem:[%s3252 + $0x98] sm:$0xff]
      %v3273 = vld [vmem:[%s3252 + $0xa0] sm:$0xff]
      %v3274 = vld [vmem:[%s3252 + $0xa8] sm:$0xff]
      %v3275 = vld [vmem:[%s3252 + $0xb0] sm:$0xff]
      %v3276 = vld [vmem:[%s3252 + $0xb8] sm:$0xff]
      %v3277 = vld [vmem:[%s3252 + $0xc0] sm:$0xff]
      %v3278 = vld [vmem:[%s3252 + $0xc8] sm:$0xff]
      %v3279 = vld [vmem:[%s3252 + $0xd0] sm:$0xff]
      %v3280 = vld [vmem:[%s3252 + $0xd8] sm:$0xff]
      %v3281 = vld [vmem:[%s3252 + $0xe0] sm:$0xff]
      %v3282 = vld [vmem:[%s3252 + $0xe8] sm:$0xff]
      %v3283 = vld [vmem:[%s3252 + $0xf0] sm:$0xff]
      %v3284 = vld [vmem:[%s3252 + $0xf8] sm:$0xff]
      %s3285 = scalar_lea.vmem %s730, 16
      %v3286 = vld [vmem:[%s3285] sm:$0x3]
      %v3288 = vlaneseq
      %v3289 = vshrl.u32 %v3288, 7
      %v3290 = vsub.s32 0, %v3289
      %v3291 = vrot.slane %v3286, %v3290
      %v3292 = vlaneseq
      %v3293 = vshrl.u32 %v3292, 7
      %v3294 = vsub.s32 1, %v3293
      %v3295 = vrot.slane %v3286, %v3294
      %v3330 = vunpack.c.l.b16 %v3253
      %v3331 = vunpack.c.h.b16 %v3253
      %v3332 = vunpack.c.l.b16 %v3254
      %v3333 = vunpack.c.h.b16 %v3254
      %v3334 = vunpack.c.l.b16 %v3255
      %v3335 = vunpack.c.h.b16 %v3255
      %v3336 = vunpack.c.l.b16 %v3256
      %v3337 = vunpack.c.h.b16 %v3256
      %v3338 = vunpack.c.l.b16 %v3257
      %v3339 = vunpack.c.h.b16 %v3257
      %v3340 = vunpack.c.l.b16 %v3258
      %v3341 = vunpack.c.h.b16 %v3258
      %v3342 = vunpack.c.l.b16 %v3259
      %v3343 = vunpack.c.h.b16 %v3259
      %v3344 = vunpack.c.l.b16 %v3260
      %v3345 = vunpack.c.h.b16 %v3260
      %v3346 = vunpack.c.l.b16 %v3261
      %v3347 = vunpack.c.h.b16 %v3261
      %v3348 = vunpack.c.l.b16 %v3262
      %v3349 = vunpack.c.h.b16 %v3262
      %v3350 = vunpack.c.l.b16 %v3263
      %v3351 = vunpack.c.h.b16 %v3263
      %v3352 = vunpack.c.l.b16 %v3264
      %v3353 = vunpack.c.h.b16 %v3264
      %v3354 = vunpack.c.l.b16 %v3265
      %v3355 = vunpack.c.h.b16 %v3265
      %v3356 = vunpack.c.l.b16 %v3266
      %v3357 = vunpack.c.h.b16 %v3266
      %v3358 = vunpack.c.l.b16 %v3267
      %v3359 = vunpack.c.h.b16 %v3267
      %v3360 = vunpack.c.l.b16 %v3268
      %v3361 = vunpack.c.h.b16 %v3268
      %v3362 = vunpack.c.l.b16 %v3269
      %v3363 = vunpack.c.h.b16 %v3269
      %v3364 = vunpack.c.l.b16 %v3270
      %v3365 = vunpack.c.h.b16 %v3270
      %v3366 = vunpack.c.l.b16 %v3271
      %v3367 = vunpack.c.h.b16 %v3271
      %v3368 = vunpack.c.l.b16 %v3272
      %v3369 = vunpack.c.h.b16 %v3272
      %v3370 = vunpack.c.l.b16 %v3273
      %v3371 = vunpack.c.h.b16 %v3273
      %v3372 = vunpack.c.l.b16 %v3274
      %v3373 = vunpack.c.h.b16 %v3274
      %v3374 = vunpack.c.l.b16 %v3275
      %v3375 = vunpack.c.h.b16 %v3275
      %v3376 = vunpack.c.l.b16 %v3276
      %v3377 = vunpack.c.h.b16 %v3276
      %v3378 = vunpack.c.l.b16 %v3277
      %v3379 = vunpack.c.h.b16 %v3277
      %v3380 = vunpack.c.l.b16 %v3278
      %v3381 = vunpack.c.h.b16 %v3278
      %v3382 = vunpack.c.l.b16 %v3279
      %v3383 = vunpack.c.h.b16 %v3279
      %v3384 = vunpack.c.l.b16 %v3280
      %v3385 = vunpack.c.h.b16 %v3280
      %v3386 = vunpack.c.l.b16 %v3281
      %v3387 = vunpack.c.h.b16 %v3281
      %v3388 = vunpack.c.l.b16 %v3282
      %v3389 = vunpack.c.h.b16 %v3282
      %v3390 = vunpack.c.l.b16 %v3283
      %v3391 = vunpack.c.h.b16 %v3283
      %v3392 = vunpack.c.l.b16 %v3284
      %v3393 = vunpack.c.h.b16 %v3284
      %v3394 = vpack.c.b16 %v3332, %v3330
      %v3395 = vpack.c.b16 %v3333, %v3331
      %v3396 = vpack.c.b16 %v3336, %v3334
      %v3397 = vpack.c.b16 %v3337, %v3335
      %v3398 = vpack.c.b16 %v3340, %v3338
      %v3399 = vpack.c.b16 %v3341, %v3339
      %v3400 = vpack.c.b16 %v3344, %v3342
      %v3401 = vpack.c.b16 %v3345, %v3343
      %v3402 = vpack.c.b16 %v3348, %v3346
      %v3403 = vpack.c.b16 %v3349, %v3347
      %v3404 = vpack.c.b16 %v3352, %v3350
      %v3405 = vpack.c.b16 %v3353, %v3351
      %v3406 = vpack.c.b16 %v3356, %v3354
      %v3407 = vpack.c.b16 %v3357, %v3355
      %v3408 = vpack.c.b16 %v3360, %v3358
      %v3409 = vpack.c.b16 %v3361, %v3359
      %v3410 = vpack.c.b16 %v3364, %v3362
      %v3411 = vpack.c.b16 %v3365, %v3363
      %v3412 = vpack.c.b16 %v3368, %v3366
      %v3413 = vpack.c.b16 %v3369, %v3367
      %v3414 = vpack.c.b16 %v3372, %v3370
      %v3415 = vpack.c.b16 %v3373, %v3371
      %v3416 = vpack.c.b16 %v3376, %v3374
      %v3417 = vpack.c.b16 %v3377, %v3375
      %v3418 = vpack.c.b16 %v3380, %v3378
      %v3419 = vpack.c.b16 %v3381, %v3379
      %v3420 = vpack.c.b16 %v3384, %v3382
      %v3421 = vpack.c.b16 %v3385, %v3383
      %v3422 = vpack.c.b16 %v3388, %v3386
      %v3423 = vpack.c.b16 %v3389, %v3387
      %v3424 = vpack.c.b16 %v3392, %v3390
      %v3425 = vpack.c.b16 %v3393, %v3391
      %3458 = vmatprep.subr.bf16.mxu0 %v3395
      %3459 = vmatpush1.bf16.msra.mxu0 %v3394
      %3460 = vmatprep.subr.bf16.mxu0 %v3397
      %3461 = vmatpush1.bf16.msra.mxu0 %v3396
      %3462 = vmatprep.subr.bf16.mxu0 %v3399
      %3463 = vmatpush1.bf16.msra.mxu0 %v3398
      %3464 = vmatprep.subr.bf16.mxu0 %v3401
      %3465 = vmatpush1.bf16.msra.mxu0 %v3400
      %3466 = vmatprep.subr.bf16.mxu0 %v3403
      %3467 = vmatpush1.bf16.msra.mxu0 %v3402
      %3468 = vmatprep.subr.bf16.mxu0 %v3405
      %3469 = vmatpush1.bf16.msra.mxu0 %v3404
      %3470 = vmatprep.subr.bf16.mxu0 %v3407
      %3471 = vmatpush1.bf16.msra.mxu0 %v3406
      %3472 = vmatprep.subr.bf16.mxu0 %v3409
      %3473 = vmatpush1.bf16.msra.mxu0 %v3408
      %3474 = vmatprep.subr.bf16.mxu0 %v3411
      %3475 = vmatpush1.bf16.msra.mxu0 %v3410
      %3476 = vmatprep.subr.bf16.mxu0 %v3413
      %3477 = vmatpush1.bf16.msra.mxu0 %v3412
      %3478 = vmatprep.subr.bf16.mxu0 %v3415
      %3479 = vmatpush1.bf16.msra.mxu0 %v3414
      %3480 = vmatprep.subr.bf16.mxu0 %v3417
      %3481 = vmatpush1.bf16.msra.mxu0 %v3416
      %3482 = vmatprep.subr.bf16.mxu0 %v3419
      %3483 = vmatpush1.bf16.msra.mxu0 %v3418
      %3484 = vmatprep.subr.bf16.mxu0 %v3421
      %3485 = vmatpush1.bf16.msra.mxu0 %v3420
      %3486 = vmatprep.subr.bf16.mxu0 %v3423
      %3487 = vmatpush1.bf16.msra.mxu0 %v3422
      %3488 = vmatprep.subr.bf16.mxu0 %v3425
      %3489 = vmatpush1.bf16.msra.mxu0 %v3424
      %3490 = vmatprep.mubr.bf16.mxu0 %v3251
      %3491 = vmatmul.mubr.bf16.gmra.mrb[0].mxu0 %v3250
      %v3492 = vpop.f32.mrb[0].mxu0
      %v3493 = vadd.f32 %v3291, %v3492
      %v3494 = vpop.f32.mrb[0].mxu0
      %v3495 = vadd.f32 %v3295, %v3494
      %v3496 = vpop.f32.mrb[0].mxu0
      %v3497 = vpop.f32.mrb[0].mxu0
      %3498 = vdwg.mxu0
      %v3499 = vmul.f32 %v3493, 0.01
      %v3500 = vmul.f32 %v3495, 0.01
      %v3501 = vmax.f32 %v3493, %v3499
      %v3502 = vmax.f32 %v3495, %v3500
      %v3503 = vpack.c.bf16 %v3501, %v3501
      %v3504 = vpack.c.bf16 %v3502, %v3502
      %s3505 = scalar_lea.vmem %s726, 2304
      %v3506 = vld [vmem:[%s3505] sm:$0xff]
      %v3507 = vld [vmem:[%s3505 + $0x8] sm:$0xff]
      %v3508 = vld [vmem:[%s3505 + $0x10] sm:$0xff]
      %v3509 = vld [vmem:[%s3505 + $0x18] sm:$0xff]
      %v3510 = vld [vmem:[%s3505 + $0x20] sm:$0xff]
      %v3511 = vld [vmem:[%s3505 + $0x28] sm:$0xff]
      %v3512 = vld [vmem:[%s3505 + $0x30] sm:$0xff]
      %v3513 = vld [vmem:[%s3505 + $0x38] sm:$0xff]
      %v3514 = vld [vmem:[%s3505 + $0x40] sm:$0xff]
      %v3515 = vld [vmem:[%s3505 + $0x48] sm:$0xff]
      %v3516 = vld [vmem:[%s3505 + $0x50] sm:$0xff]
      %v3517 = vld [vmem:[%s3505 + $0x58] sm:$0xff]
      %v3518 = vld [vmem:[%s3505 + $0x60] sm:$0xff]
      %v3519 = vld [vmem:[%s3505 + $0x68] sm:$0xff]
      %v3520 = vld [vmem:[%s3505 + $0x70] sm:$0xff]
      %v3521 = vld [vmem:[%s3505 + $0x78] sm:$0xff]
      %v3522 = vld [vmem:[%s3505 + $0x80] sm:$0xff]
      %v3523 = vld [vmem:[%s3505 + $0x88] sm:$0xff]
      %v3524 = vld [vmem:[%s3505 + $0x90] sm:$0xff]
      %v3525 = vld [vmem:[%s3505 + $0x98] sm:$0xff]
      %v3526 = vld [vmem:[%s3505 + $0xa0] sm:$0xff]
      %v3527 = vld [vmem:[%s3505 + $0xa8] sm:$0xff]
      %v3528 = vld [vmem:[%s3505 + $0xb0] sm:$0xff]
      %v3529 = vld [vmem:[%s3505 + $0xb8] sm:$0xff]
      %v3530 = vld [vmem:[%s3505 + $0xc0] sm:$0xff]
      %v3531 = vld [vmem:[%s3505 + $0xc8] sm:$0xff]
      %v3532 = vld [vmem:[%s3505 + $0xd0] sm:$0xff]
      %v3533 = vld [vmem:[%s3505 + $0xd8] sm:$0xff]
      %v3534 = vld [vmem:[%s3505 + $0xe0] sm:$0xff]
      %v3535 = vld [vmem:[%s3505 + $0xe8] sm:$0xff]
      %v3536 = vld [vmem:[%s3505 + $0xf0] sm:$0xff]
      %v3537 = vld [vmem:[%s3505 + $0xf8] sm:$0xff]
      %s3538 = scalar_lea.vmem %s730, 18
      %v3539 = vld [vmem:[%s3538] sm:$0x3]
      %v3541 = vlaneseq
      %v3542 = vshrl.u32 %v3541, 7
      %v3543 = vsub.s32 0, %v3542
      %v3544 = vrot.slane %v3539, %v3543
      %v3545 = vlaneseq
      %v3546 = vshrl.u32 %v3545, 7
      %v3547 = vsub.s32 1, %v3546
      %v3548 = vrot.slane %v3539, %v3547
      %v3583 = vunpack.c.l.b16 %v3506
      %v3584 = vunpack.c.h.b16 %v3506
      %v3585 = vunpack.c.l.b16 %v3507
      %v3586 = vunpack.c.h.b16 %v3507
      %v3587 = vunpack.c.l.b16 %v3508
      %v3588 = vunpack.c.h.b16 %v3508
      %v3589 = vunpack.c.l.b16 %v3509
      %v3590 = vunpack.c.h.b16 %v3509
      %v3591 = vunpack.c.l.b16 %v3510
      %v3592 = vunpack.c.h.b16 %v3510
      %v3593 = vunpack.c.l.b16 %v3511
      %v3594 = vunpack.c.h.b16 %v3511
      %v3595 = vunpack.c.l.b16 %v3512
      %v3596 = vunpack.c.h.b16 %v3512
      %v3597 = vunpack.c.l.b16 %v3513
      %v3598 = vunpack.c.h.b16 %v3513
      %v3599 = vunpack.c.l.b16 %v3514
      %v3600 = vunpack.c.h.b16 %v3514
      %v3601 = vunpack.c.l.b16 %v3515
      %v3602 = vunpack.c.h.b16 %v3515
      %v3603 = vunpack.c.l.b16 %v3516
      %v3604 = vunpack.c.h.b16 %v3516
      %v3605 = vunpack.c.l.b16 %v3517
      %v3606 = vunpack.c.h.b16 %v3517
      %v3607 = vunpack.c.l.b16 %v3518
      %v3608 = vunpack.c.h.b16 %v3518
      %v3609 = vunpack.c.l.b16 %v3519
      %v3610 = vunpack.c.h.b16 %v3519
      %v3611 = vunpack.c.l.b16 %v3520
      %v3612 = vunpack.c.h.b16 %v3520
      %v3613 = vunpack.c.l.b16 %v3521
      %v3614 = vunpack.c.h.b16 %v3521
      %v3615 = vunpack.c.l.b16 %v3522
      %v3616 = vunpack.c.h.b16 %v3522
      %v3617 = vunpack.c.l.b16 %v3523
      %v3618 = vunpack.c.h.b16 %v3523
      %v3619 = vunpack.c.l.b16 %v3524
      %v3620 = vunpack.c.h.b16 %v3524
      %v3621 = vunpack.c.l.b16 %v3525
      %v3622 = vunpack.c.h.b16 %v3525
      %v3623 = vunpack.c.l.b16 %v3526
      %v3624 = vunpack.c.h.b16 %v3526
      %v3625 = vunpack.c.l.b16 %v3527
      %v3626 = vunpack.c.h.b16 %v3527
      %v3627 = vunpack.c.l.b16 %v3528
      %v3628 = vunpack.c.h.b16 %v3528
      %v3629 = vunpack.c.l.b16 %v3529
      %v3630 = vunpack.c.h.b16 %v3529
      %v3631 = vunpack.c.l.b16 %v3530
      %v3632 = vunpack.c.h.b16 %v3530
      %v3633 = vunpack.c.l.b16 %v3531
      %v3634 = vunpack.c.h.b16 %v3531
      %v3635 = vunpack.c.l.b16 %v3532
      %v3636 = vunpack.c.h.b16 %v3532
      %v3637 = vunpack.c.l.b16 %v3533
      %v3638 = vunpack.c.h.b16 %v3533
      %v3639 = vunpack.c.l.b16 %v3534
      %v3640 = vunpack.c.h.b16 %v3534
      %v3641 = vunpack.c.l.b16 %v3535
      %v3642 = vunpack.c.h.b16 %v3535
      %v3643 = vunpack.c.l.b16 %v3536
      %v3644 = vunpack.c.h.b16 %v3536
      %v3645 = vunpack.c.l.b16 %v3537
      %v3646 = vunpack.c.h.b16 %v3537
      %v3647 = vpack.c.b16 %v3585, %v3583
      %v3648 = vpack.c.b16 %v3586, %v3584
      %v3649 = vpack.c.b16 %v3589, %v3587
      %v3650 = vpack.c.b16 %v3590, %v3588
      %v3651 = vpack.c.b16 %v3593, %v3591
      %v3652 = vpack.c.b16 %v3594, %v3592
      %v3653 = vpack.c.b16 %v3597, %v3595
      %v3654 = vpack.c.b16 %v3598, %v3596
      %v3655 = vpack.c.b16 %v3601, %v3599
      %v3656 = vpack.c.b16 %v3602, %v3600
      %v3657 = vpack.c.b16 %v3605, %v3603
      %v3658 = vpack.c.b16 %v3606, %v3604
      %v3659 = vpack.c.b16 %v3609, %v3607
      %v3660 = vpack.c.b16 %v3610, %v3608
      %v3661 = vpack.c.b16 %v3613, %v3611
      %v3662 = vpack.c.b16 %v3614, %v3612
      %v3663 = vpack.c.b16 %v3617, %v3615
      %v3664 = vpack.c.b16 %v3618, %v3616
      %v3665 = vpack.c.b16 %v3621, %v3619
      %v3666 = vpack.c.b16 %v3622, %v3620
      %v3667 = vpack.c.b16 %v3625, %v3623
      %v3668 = vpack.c.b16 %v3626, %v3624
      %v3669 = vpack.c.b16 %v3629, %v3627
      %v3670 = vpack.c.b16 %v3630, %v3628
      %v3671 = vpack.c.b16 %v3633, %v3631
      %v3672 = vpack.c.b16 %v3634, %v3632
      %v3673 = vpack.c.b16 %v3637, %v3635
      %v3674 = vpack.c.b16 %v3638, %v3636
      %v3675 = vpack.c.b16 %v3641, %v3639
      %v3676 = vpack.c.b16 %v3642, %v3640
      %v3677 = vpack.c.b16 %v3645, %v3643
      %v3678 = vpack.c.b16 %v3646, %v3644
      %3711 = vmatprep.subr.bf16.mxu0 %v3648
      %3712 = vmatpush1.bf16.msra.mxu0 %v3647
      %3713 = vmatprep.subr.bf16.mxu0 %v3650
      %3714 = vmatpush1.bf16.msra.mxu0 %v3649
      %3715 = vmatprep.subr.bf16.mxu0 %v3652
      %3716 = vmatpush1.bf16.msra.mxu0 %v3651
      %3717 = vmatprep.subr.bf16.mxu0 %v3654
      %3718 = vmatpush1.bf16.msra.mxu0 %v3653
      %3719 = vmatprep.subr.bf16.mxu0 %v3656
      %3720 = vmatpush1.bf16.msra.mxu0 %v3655
      %3721 = vmatprep.subr.bf16.mxu0 %v3658
      %3722 = vmatpush1.bf16.msra.mxu0 %v3657
      %3723 = vmatprep.subr.bf16.mxu0 %v3660
      %3724 = vmatpush1.bf16.msra.mxu0 %v3659
      %3725 = vmatprep.subr.bf16.mxu0 %v3662
      %3726 = vmatpush1.bf16.msra.mxu0 %v3661
      %3727 = vmatprep.subr.bf16.mxu0 %v3664
      %3728 = vmatpush1.bf16.msra.mxu0 %v3663
      %3729 = vmatprep.subr.bf16.mxu0 %v3666
      %3730 = vmatpush1.bf16.msra.mxu0 %v3665
      %3731 = vmatprep.subr.bf16.mxu0 %v3668
      %3732 = vmatpush1.bf16.msra.mxu0 %v3667
      %3733 = vmatprep.subr.bf16.mxu0 %v3670
      %3734 = vmatpush1.bf16.msra.mxu0 %v3669
      %3735 = vmatprep.subr.bf16.mxu0 %v3672
      %3736 = vmatpush1.bf16.msra.mxu0 %v3671
      %3737 = vmatprep.subr.bf16.mxu0 %v3674
      %3738 = vmatpush1.bf16.msra.mxu0 %v3673
      %3739 = vmatprep.subr.bf16.mxu0 %v3676
      %3740 = vmatpush1.bf16.msra.mxu0 %v3675
      %3741 = vmatprep.subr.bf16.mxu0 %v3678
      %3742 = vmatpush1.bf16.msra.mxu0 %v3677
      %3743 = vmatprep.mubr.bf16.mxu0 %v3504
      %3744 = vmatmul.mubr.bf16.gmra.mrb[0].mxu0 %v3503
      %v3745 = vpop.f32.mrb[0].mxu0
      %v3746 = vadd.f32 %v3544, %v3745
      %v3747 = vpop.f32.mrb[0].mxu0
      %v3748 = vadd.f32 %v3548, %v3747
      %v3749 = vpop.f32.mrb[0].mxu0
      %v3750 = vpop.f32.mrb[0].mxu0
      %3751 = vdwg.mxu0
      %v3752 = vmul.f32 %v3746, 0.01
      %v3753 = vmul.f32 %v3748, 0.01
      %v3754 = vmax.f32 %v3746, %v3752
      %v3755 = vmax.f32 %v3748, %v3753
      %v3756 = vpack.c.bf16 %v3754, %v3754
      %v3757 = vpack.c.bf16 %v3755, %v3755
      %v3758 = vld [vmem:[%s735] sm:$0xf]
      %v3759 = vld [vmem:[%s735 + $0x4] sm:$0xf]
      %v3760 = vld [vmem:[%s735 + $0x8] sm:$0xf]
      %v3761 = vld [vmem:[%s735 + $0xc] sm:$0xf]
      %v3762 = vld [vmem:[%s735 + $0x10] sm:$0xf]
      %v3763 = vld [vmem:[%s735 + $0x14] sm:$0xf]
      %v3764 = vld [vmem:[%s735 + $0x18] sm:$0xf]
      %v3765 = vld [vmem:[%s735 + $0x1c] sm:$0xf]
      %v3766 = vld [vmem:[%s735 + $0x20] sm:$0xf]
      %v3767 = vld [vmem:[%s735 + $0x24] sm:$0xf]
      %v3768 = vld [vmem:[%s735 + $0x28] sm:$0xf]
      %v3769 = vld [vmem:[%s735 + $0x2c] sm:$0xf]
      %v3770 = vld [vmem:[%s735 + $0x30] sm:$0xf]
      %v3771 = vld [vmem:[%s735 + $0x34] sm:$0xf]
      %v3772 = vld [vmem:[%s735 + $0x38] sm:$0xf]
      %v3773 = vld [vmem:[%s735 + $0x3c] sm:$0xf]
      %v3774 = vld [vmem:[%s735 + $0x40] sm:$0xf]
      %v3775 = vld [vmem:[%s735 + $0x44] sm:$0xf]
      %v3776 = vld [vmem:[%s735 + $0x48] sm:$0xf]
      %v3777 = vld [vmem:[%s735 + $0x4c] sm:$0xf]
      %v3778 = vld [vmem:[%s735 + $0x50] sm:$0xf]
      %v3779 = vld [vmem:[%s735 + $0x54] sm:$0xf]
      %v3780 = vld [vmem:[%s735 + $0x58] sm:$0xf]
      %v3781 = vld [vmem:[%s735 + $0x5c] sm:$0xf]
      %v3782 = vld [vmem:[%s735 + $0x60] sm:$0xf]
      %v3783 = vld [vmem:[%s735 + $0x64] sm:$0xf]
      %v3784 = vld [vmem:[%s735 + $0x68] sm:$0xf]
      %v3785 = vld [vmem:[%s735 + $0x6c] sm:$0xf]
      %v3786 = vld [vmem:[%s735 + $0x70] sm:$0xf]
      %v3787 = vld [vmem:[%s735 + $0x74] sm:$0xf]
      %v3788 = vld [vmem:[%s735 + $0x78] sm:$0xf]
      %v3789 = vld [vmem:[%s735 + $0x7c] sm:$0xf]
      %v3790 = vld [vmem:[%s738] sm:$0x1]
      %v3792 = vlaneseq
      %v3793 = vshrl.u32 %v3792, 7
      %v3794 = vsub.s32 0, %v3793
      %v3795 = vrot.slane %v3790, %v3794
      %v3829 = vunpack.c.l.b16 %v3758
      %v3830 = vunpack.c.l.b16 %v3759
      %v3831 = vunpack.c.l.b16 %v3760
      %v3832 = vunpack.c.l.b16 %v3761
      %v3833 = vunpack.c.l.b16 %v3762
      %v3834 = vunpack.c.l.b16 %v3763
      %v3835 = vunpack.c.l.b16 %v3764
      %v3836 = vunpack.c.l.b16 %v3765
      %v3837 = vunpack.c.l.b16 %v3766
      %v3838 = vunpack.c.l.b16 %v3767
      %v3839 = vunpack.c.l.b16 %v3768
      %v3840 = vunpack.c.l.b16 %v3769
      %v3841 = vunpack.c.l.b16 %v3770
      %v3842 = vunpack.c.l.b16 %v3771
      %v3843 = vunpack.c.l.b16 %v3772
      %v3844 = vunpack.c.l.b16 %v3773
      %v3845 = vunpack.c.l.b16 %v3774
      %v3846 = vunpack.c.l.b16 %v3775
      %v3847 = vunpack.c.l.b16 %v3776
      %v3848 = vunpack.c.l.b16 %v3777
      %v3849 = vunpack.c.l.b16 %v3778
      %v3850 = vunpack.c.l.b16 %v3779
      %v3851 = vunpack.c.l.b16 %v3780
      %v3852 = vunpack.c.l.b16 %v3781
      %v3853 = vunpack.c.l.b16 %v3782
      %v3854 = vunpack.c.l.b16 %v3783
      %v3855 = vunpack.c.l.b16 %v3784
      %v3856 = vunpack.c.l.b16 %v3785
      %v3857 = vunpack.c.l.b16 %v3786
      %v3858 = vunpack.c.l.b16 %v3787
      %v3859 = vunpack.c.l.b16 %v3788
      %v3860 = vunpack.c.l.b16 %v3789
      %v3861 = vpack.c.b16 %v3830, %v3829
      %v3862 = vpack.c.b16 %v3832, %v3831
      %v3863 = vpack.c.b16 %v3834, %v3833
      %v3864 = vpack.c.b16 %v3836, %v3835
      %v3865 = vpack.c.b16 %v3838, %v3837
      %v3866 = vpack.c.b16 %v3840, %v3839
      %v3867 = vpack.c.b16 %v3842, %v3841
      %v3868 = vpack.c.b16 %v3844, %v3843
      %v3869 = vpack.c.b16 %v3846, %v3845
      %v3870 = vpack.c.b16 %v3848, %v3847
      %v3871 = vpack.c.b16 %v3850, %v3849
      %v3872 = vpack.c.b16 %v3852, %v3851
      %v3873 = vpack.c.b16 %v3854, %v3853
      %v3874 = vpack.c.b16 %v3856, %v3855
      %v3875 = vpack.c.b16 %v3858, %v3857
      %v3876 = vpack.c.b16 %v3860, %v3859
      %3893 = vmatprep.subr.bf16.mxu0 0
      %3894 = vmatpush1.bf16.msra.mxu0 %v3861
      %3895 = vmatprep.subr.bf16.mxu0 0
      %3896 = vmatpush1.bf16.msra.mxu0 %v3862
      %3897 = vmatprep.subr.bf16.mxu0 0
      %3898 = vmatpush1.bf16.msra.mxu0 %v3863
      %3899 = vmatprep.subr.bf16.mxu0 0
      %3900 = vmatpush1.bf16.msra.mxu0 %v3864
      %3901 = vmatprep.subr.bf16.mxu0 0
      %3902 = vmatpush1.bf16.msra.mxu0 %v3865
      %3903 = vmatprep.subr.bf16.mxu0 0
      %3904 = vmatpush1.bf16.msra.mxu0 %v3866
      %3905 = vmatprep.subr.bf16.mxu0 0
      %3906 = vmatpush1.bf16.msra.mxu0 %v3867
      %3907 = vmatprep.subr.bf16.mxu0 0
      %3908 = vmatpush1.bf16.msra.mxu0 %v3868
      %3909 = vmatprep.subr.bf16.mxu0 0
      %3910 = vmatpush1.bf16.msra.mxu0 %v3869
      %3911 = vmatprep.subr.bf16.mxu0 0
      %3912 = vmatpush1.bf16.msra.mxu0 %v3870
      %3913 = vmatprep.subr.bf16.mxu0 0
      %3914 = vmatpush1.bf16.msra.mxu0 %v3871
      %3915 = vmatprep.subr.bf16.mxu0 0
      %3916 = vmatpush1.bf16.msra.mxu0 %v3872
      %3917 = vmatprep.subr.bf16.mxu0 0
      %3918 = vmatpush1.bf16.msra.mxu0 %v3873
      %3919 = vmatprep.subr.bf16.mxu0 0
      %3920 = vmatpush1.bf16.msra.mxu0 %v3874
      %3921 = vmatprep.subr.bf16.mxu0 0
      %3922 = vmatpush1.bf16.msra.mxu0 %v3875
      %3923 = vmatprep.subr.bf16.mxu0 0
      %3924 = vmatpush1.bf16.msra.mxu0 %v3876
      %3925 = vmatprep.mubr.bf16.mxu0 %v3757
      %3926 = vmatmul.mubr.bf16.gmra.mrb[0].mxu0 %v3756
      %v3927 = vpop.f32.mrb[0].mxu0
      %v3928 = vadd.f32 %v3795, %v3927
      %v3929 = vpop.f32.mrb[0].mxu0
      %v3930 = vpop.f32.mrb[0].mxu0
      %v3931 = vpop.f32.mrb[0].mxu0
      %3932 = vdwg.mxu0
      %vm3933 = vcmask 3072
      %3934 = vst.msk [vmem:[%s742] sm:$0xf] %vm3933, %v3928
      %p3935 = scmp.lt.s32.totalorder %s28, 1
      %s3936 = scalar_select %p3935, %s28, 1
      %s3937 = smul.addr %s3936, 4
      %s3938 = scalar_lea.vmem %s17, %s3937
      // Predicated region
      $region89: #{agent_forward_critic.1} parent=87 // pred_check
        %p3939 = pneg %p463
      $region90: #{agent_forward_critic.1} parent=87 // pred_check_branch
        %3941 = sbr.rel (%p3939) target = $region92
      $region91: #{agent_forward_critic.1} parent=87 // pred_region
        _
      $region92: #{agent_forward_critic.1} parent=87 // pred_fallthru
        _
    $region88: #{agent_forward_critic.1} parent=5 // pred_fallthru
      _
    %p3942 = scmp.le.s32.totalorder 2, %s23
    // Predicated region
    $region93: #{agent_forward_critic.1} parent=5 // pred_check
      %p3943 = pneg %p3942
    $region94: #{agent_forward_critic.1} parent=5 // pred_check_branch
      %3945 = sbr.rel (%p3943) target = $region96
    $region95: #{agent_forward_critic.1} parent=5 // pred_region
      %s3946 = ssub.s32 %s23, 2
      // Predicated region
      $region97: #{agent_forward_critic.1} parent=95 // pred_check
        %p3947 = pneg %p469
      $region98: #{agent_forward_critic.1} parent=95 // pred_check_branch
        %3949 = sbr.rel (%p3947) target = $region100
      $region99: #{agent_forward_critic.1} parent=95 // pred_region
        %p3950 = scmp.lt.s32.totalorder %s29, 1
        %s3951 = scalar_select %p3950, %s29, 1
        %s3952 = smul.addr %s3951, 4
        %s3953 = scalar_lea.vmem %s17, %s3952
      $region100: #{agent_forward_critic.1} parent=95 // pred_fallthru
        _
    $region96: #{agent_forward_critic.1} parent=5 // pred_fallthru
      _
  $region6: #{agent_forward_critic.1} parent=0 // loop_footer
    %s27 = sadd.s32 1, %s23
  $region7: #{agent_forward_critic.1} parent=0 // loop_footer_branch
    %22 = sbr.rel target = $region3
  $region8: #{agent_forward_critic.1} parent=0 // loop_exit
    _

</llo_original>
